<compile_context>
chip_gen: v6e
topology: v6e:2x2x1
jax: 0.10.0
libtpu: 0.0.40
codegen_flags: <defaults>
</compile_context>

<pallas_src>
import math

import jax
import jax.numpy as jnp
import numpy as np
from jax import lax
from jax.experimental import pallas as pl
from jax.experimental.pallas import tpu as pltpu


# ---------------------------------------------------------------------------
# k-th smallest selection network (pure VPU min/max, no cross-lane work)
# ---------------------------------------------------------------------------
def _kth_smallest(vals, k):
    """k-th smallest (1-indexed) across a Python list of equal-shape arrays."""
    vals = list(vals)
    n = len(vals)
    assert 1 <= k <= n
    if n == 1:
        return vals[0]
    if k == 1:                                   # minimum: n-1 ops
        t = vals[0]
        for v in vals[1:]:
            t = jnp.minimum(t, v)
        return t
    if k == n:                                   # maximum: n-1 ops
        t = vals[0]
        for v in vals[1:]:
            t = jnp.maximum(t, v)
        return t
    if n == 4 and k in (2, 3):                   # minimal 7-op tournaments
        l1, h1 = jnp.minimum(vals[0], vals[1]), jnp.maximum(vals[0], vals[1])
        l2, h2 = jnp.minimum(vals[2], vals[3]), jnp.maximum(vals[2], vals[3])
        if k == 2:   # 2nd smallest
            return jnp.minimum(jnp.maximum(l1, l2), jnp.minimum(h1, h2))
        return jnp.maximum(jnp.minimum(h1, h2), jnp.maximum(l1, l2))   # 2nd largest
    # General fallback: truncated bubble network in the cheaper direction.
    if n - k + 1 <= k:
        # Push maxima right; after n-k+1 passes index k-1 is final.
        for i in range(n - k + 1):
            for j in range(n - 1 - i):
                lo = jnp.minimum(vals[j], vals[j + 1])
                hi = jnp.maximum(vals[j], vals[j + 1])
                vals[j], vals[j + 1] = lo, hi
    else:
        # Push minima left; after k passes index k-1 is final.
        for i in range(k):
            for j in range(n - 1, i, -1):
                lo = jnp.minimum(vals[j - 1], vals[j])
                hi = jnp.maximum(vals[j - 1], vals[j])
                vals[j - 1], vals[j] = lo, hi
    return vals[k - 1]


# ---------------------------------------------------------------------------
# Kernel
# ---------------------------------------------------------------------------
def make_uncertainnet_kernel(num_layers, ensemble_n, dout, k, beta, compute_dtype):
    """num_layers = number of EnsembleLinear layers, k = 1-indexed kth-smallest."""
    # f32 path: force a true-f32 MXU matmul so numerics match the PyTorch module;
    # bf16 path: bf16 inputs, f32 accumulation (fast MXU path on v5e/v6e/v7x).
    precision = lax.Precision.HIGHEST if compute_dtype == jnp.float32 else None

    def kernel(*refs):
        # refs: x, W0, b0, W1, b1, ..., W_{L-1}, b_{L-1}, out
        x_ref, out_ref = refs[0], refs[-1]
        params = refs[1:-1]
        w_refs, b_refs = params[0::2], params[1::2]

        # Packed activations: (tb, M*D_l) after every layer -> ONE matmul per layer.
        h = x_ref[...]
        for l in range(num_layers):
            w = w_refs[l][...]                           # packed / block-diag weights
            b = b_refs[l][...]                           # (1, M*D_l) f32
            h = jnp.dot(h.astype(compute_dtype), w,
                        preferred_element_type=jnp.float32,
                        precision=precision) + b
            if l < num_layers - 1:
                h = jnp.maximum(h, 0.0)                  # ReLU on all but last (f32)

        # Last layer already emits [main | L_1 | ... | L_n] (the `ens - main`
        # subtraction is folded into the packed weights/bias).  Member m lives in
        # lanes [m*dout, (m+1)*dout).
        main = h[:, :dout]
        L = [h[:, (m + 1) * dout:(m + 2) * dout] for m in range(ensemble_n)]
        t = _kth_smallest(L, k)
        out_ref[...] = main - beta * t

    return kernel


# ---------------------------------------------------------------------------
# Wrapper helpers
# ---------------------------------------------------------------------------
def _round_up(x, m):
    return ((x + m - 1) // m) * m


def _num_tensorcores():
    """Best-effort TensorCore count (v7x: 2, v5e/v6e: 1).  Safe fallback: 1."""
    try:
        info = pltpu.get_tpu_info()
    except Exception:
        return 1
    for attr in ("num_cores", "core_count", "tensorcore_count", "num_tensorcores"):
        v = getattr(info, attr, None)
        if isinstance(v, int) and v > 0:
            return v
    return 1


def _choose_tb(batch, num_cores, cap=1024):
    """Large batch tile (amortizes the ~0.35us per-grid-step overhead).  Split into
    >= num_cores grid steps only on multi-TC chips (v7x) so both cores get work;
    on v5e/v6e (1 TC) the grid is a sequential loop and splitting is pure overhead."""
    bp = _round_up(max(batch, 8), 16)          # 16: friendly to bf16 sublane packing
    tb = min(cap, bp)
    if num_cores > 1:
        per_core = _round_up(-(-bp // num_cores), 16)
        tb = max(16, min(tb, per_core))
    return tb


def _prep_params(weights, biases, compute_dtype):
    """Fuse the ensemble into one weight matrix per layer; fold `ens - main` into the
    last layer.

    weights[l]: (M, in_l, out_l), biases[l]: (1, M, out_l)
      layer 0   : (Din, M*D1)  -- all members share x (expand=True), concat along lanes
      layer l>0 : block-diagonal (M*in_l, M*out_l); activations stay packed (tb, M*D)
      last layer: member column block m (m>=1) additionally gets -W_0 in row block 0
                  and bias b_m - b_0, so the matmul directly produces
                  [main | ens_1 - main | ... | ens_n - main].
    Biases stay f32 (added after the f32-accumulated matmul).
    """
    num_layers = len(weights)
    assert num_layers >= 2, "UncertainNet needs at least one hidden layer"
    M, din0, d1 = weights[0].shape

    ws = [jnp.transpose(weights[0], (1, 0, 2)).reshape(din0, M * d1)
          .astype(compute_dtype)]
    bs = [biases[0].reshape(1, M * d1).astype(jnp.float32)]

    for li, (w, b) in enumerate(zip(weights[1:], biases[1:]), start=1):
        _, din, dout = w.shape
        eye = jnp.eye(M, dtype=w.dtype)
        wbd = jnp.einsum('mab,mn->manb', w, eye)          # (M, din, M, dout) block-diag
        b2 = b.reshape(M, dout)
        if li == num_layers - 1:
            neg_w0 = jnp.broadcast_to(-w[0][:, None, :], (din, M - 1, dout))
            wbd = wbd.at[0, :, 1:, :].set(neg_w0)          # -W_0 feeds member columns
            b2 = jnp.concatenate([b2[:1], b2[1:] - b2[:1]], axis=0)
        ws.append(wbd.reshape(M * din, M * dout).astype(compute_dtype))
        bs.append(b2.reshape(1, M * dout).astype(jnp.float32))
    return ws, bs


# ---------------------------------------------------------------------------
# Public forward
# ---------------------------------------------------------------------------
def uncertainnet_forward(x, weights, biases, *, ensemble_n, alpha, beta,
                         upperbound=False, tb=None, tb_cap=1024,
                         compute_dtype=jnp.float32):
    """x: (B, input_dim).  weights[l]: (M, in_l, out_l).  biases[l]: (1, M, out_l).

    compute_dtype=jnp.bfloat16 feeds bf16 operands to the MXU (fast path on v5e, v6e
    and v7x) with f32 accumulation; bias-add, ReLU and the kthvalue selection network
    stay in f32.  Ragged B is handled by Pallas partial boundary blocks (no pad copy).
    """
    B, Din = x.shape
    num_layers = len(weights)
    M = weights[0].shape[0]
    Dout = weights[-1].shape[-1]
    assert M == 1 + ensemble_n

    if upperbound:
        k = 1 + int(alpha * ensemble_n)
    else:
        k = int((1.0 - alpha) * ensemble_n)
    if not (1 <= k <= ensemble_n):
        raise ValueError(
            f"alpha={alpha} gives kth-value index k={k}, outside [1, {ensemble_n}]")

    if tb is None:
        tb = _choose_tb(B, _num_tensorcores(), cap=tb_cap)
    tb = max(8, _round_up(int(tb), 8))

    # Cast x once in the wrapper (halves the dominant HBM input stream for bf16).
    x_in = x if x.dtype == compute_dtype else x.astype(compute_dtype)
    ws, bs = _prep_params(weights, biases, compute_dtype)

    in_specs = [pl.BlockSpec((tb, Din), lambda i: (i, 0))]
    params_flat = []
    for w, b in zip(ws, bs):
        in_specs.append(pl.BlockSpec(w.shape, lambda i: (0, 0)))   # full-array block
        in_specs.append(pl.BlockSpec(b.shape, lambda i: (0, 0)))   # full-array block
        params_flat += [w, b]

    # Block spans the full last dim (Dout), so the HBM writeback stays contiguous.
    out_spec = pl.BlockSpec((tb, Dout), lambda i: (i, 0))

    kernel = make_uncertainnet_kernel(num_layers, ensemble_n, Dout, k, float(beta),
                                      compute_dtype)

    out = pl.pallas_call(
        kernel,
        out_shape=jax.ShapeDtypeStruct((B, Dout), jnp.float32),
        grid_spec=pltpu.PrefetchScalarGridSpec(
            num_scalar_prefetch=0,
            grid=(pl.cdiv(B, tb),),
            in_specs=in_specs,
            out_specs=out_spec,
        ),
        compiler_params=pltpu.CompilerParams(
            dimension_semantics=("parallel",)),
    )(x_in, *params_flat)

    # TODO(synk): separate_ensemble=True (tuple output) and the output_dim==0 squeeze
    # are left to the caller (build with Dout=1 and squeeze the (B, 1) result).
    return out


# ---------------------------------------------------------------------------
# Pure-JAX reference mirroring the PyTorch module
# ---------------------------------------------------------------------------
def reference_forward(x, weights, biases, *, ensemble_n, alpha, beta,
                      upperbound=False, compute_dtype=jnp.float32):
    """bf16 matmul inputs are emulated by rounding operands through compute_dtype and
    contracting in f32 (same numerics as the MXU's bf16-in/f32-accumulate path), which
    avoids BF16 x BF16 = F32 dots that XLA:CPU's DotThunk rejects."""
    def rt(a):
        return a.astype(compute_dtype).astype(jnp.float32)

    prec = lax.Precision.HIGHEST
    h = jnp.einsum('bi,mio->bmo', rt(x), rt(weights[0]), precision=prec) + biases[0]
    h = jnp.maximum(h, 0.0)
    for w, b in zip(weights[1:-1], biases[1:-1]):
        h = jnp.einsum('bmi,mio->bmo', rt(h), rt(w), precision=prec) + b
        h = jnp.maximum(h, 0.0)
    out = jnp.einsum('bmi,mio->bmo', rt(h), rt(weights[-1]), precision=prec) + biases[-1]
    main = out[:, 0]
    ens = out[:, 1:]
    Ls = jnp.sort(ens - main[:, None, :], axis=1)
    if upperbound:
        k = 1 + int(alpha * ensemble_n)
    else:
        k = int((1.0 - alpha) * ensemble_n)
    return main - beta * Ls[:, k - 1, :]


# ---------------------------------------------------------------------------
# Demo / self-test
# ---------------------------------------------------------------------------
if __name__ == "__main__":
    # UncertainNet(input_dim=32, output_dim=8, ensemble_n=4, layers=(32, 32))
    # -> 3 EnsembleLinear layers with ens_size = 5.
    input_dim, output_dim, ensemble_n = 32, 8, 4
    hidden = (32, 32)
    alpha, beta = 0.5, 1.0

    M = 1 + ensemble_n
    dims_in = (input_dim,) + hidden
    dims_out = hidden + (output_dim,)

    key = jax.random.PRNGKey(0)
    bound = 1.0 / math.sqrt(5.0)
    weights, biases = [], []
    for d_in, d_out in zip(dims_in, dims_out):
        key, kw, kb = jax.random.split(key, 3)
        weights.append(jax.random.uniform(kw, (M, d_in, d_out), jnp.float32,
                                          minval=-bound, maxval=bound))
        biases.append(jax.random.uniform(kb, (1, M, d_out), jnp.float32,
                                         minval=-bound, maxval=bound))

    # --- f32 path (faithful numerics), k = int((1-0.5)*4) = 2 ---
    key, kx = jax.random.split(key)
    x = jax.random.normal(kx, (64, input_dim), jnp.float32)
    out = jax.block_until_ready(uncertainnet_forward(
        x, weights, biases, ensemble_n=ensemble_n, alpha=alpha, beta=beta))
    ref = jax.block_until_ready(reference_forward(
        x, weights, biases, ensemble_n=ensemble_n, alpha=alpha, beta=beta))
    np.testing.assert_allclose(np.asarray(out), np.asarray(ref), rtol=1e-4, atol=1e-4)

    # --- bf16 MXU path + ragged batch (partial last block) + upperbound (k=3) ---
    key, kx2 = jax.random.split(key)
    x2 = jax.random.normal(kx2, (50, input_dim), jnp.float32)
    out_bf = jax.block_until_ready(uncertainnet_forward(
        x2, weights, biases, ensemble_n=ensemble_n, alpha=alpha, beta=beta,
        upperbound=True, compute_dtype=jnp.bfloat16))
    ref_bf = jax.block_until_ready(reference_forward(
        x2, weights, biases, ensemble_n=ensemble_n, alpha=alpha, beta=beta,
        upperbound=True, compute_dtype=jnp.bfloat16))
    np.testing.assert_allclose(np.asarray(out_bf), np.asarray(ref_bf),
                               rtol=2e-2, atol=2e-2)

    print("KERNEL_OK")
</pallas_src>

<mosaic_0001>
module attributes {stable_mosaic.version = 11 : i64} {
  func.func @kernel(%arg0: i32, %arg1: memref<64x32xf32, #tpu.memory_space<vmem>>, %arg2: memref<32x160xf32, #tpu.memory_space<vmem>>, %arg3: memref<1x160xf32, #tpu.memory_space<vmem>>, %arg4: memref<160x160xf32, #tpu.memory_space<vmem>>, %arg5: memref<1x160xf32, #tpu.memory_space<vmem>>, %arg6: memref<160x40xf32, #tpu.memory_space<vmem>>, %arg7: memref<1x40xf32, #tpu.memory_space<vmem>>, %arg8: memref<64x8xf32, #tpu.memory_space<vmem>>) attributes {dimension_semantics = [#tpu.dimension_semantics<parallel>], iteration_bounds = array<i64: 1>, scalar_prefetch = 0 : i64, scratch_operands = 0 : i64, tpu.core_type = #tpu.core_type<tc>, window_params = [{transform_indices = @transform_0, window_bounds = array<i64: 64, 32>}, {pipeline_mode = #tpu.pipeline_mode<synchronous>, transform_indices = @transform_1, window_bounds = array<i64: 32, 160>}, {pipeline_mode = #tpu.pipeline_mode<synchronous>, transform_indices = @transform_2, window_bounds = array<i64: 1, 160>}, {pipeline_mode = #tpu.pipeline_mode<synchronous>, transform_indices = @transform_3, window_bounds = array<i64: 160, 160>}, {pipeline_mode = #tpu.pipeline_mode<synchronous>, transform_indices = @transform_4, window_bounds = array<i64: 1, 160>}, {pipeline_mode = #tpu.pipeline_mode<synchronous>, transform_indices = @transform_5, window_bounds = array<i64: 160, 40>}, {pipeline_mode = #tpu.pipeline_mode<synchronous>, transform_indices = @transform_6, window_bounds = array<i64: 1, 40>}, {transform_indices = @transform_7, window_bounds = array<i64: 64, 8>}]} {
    %c0 = arith.constant 0 : index
    %c0_0 = arith.constant 0 : index
    %0 = vector.load %arg1[%c0, %c0_0] : memref<64x32xf32, #tpu.memory_space<vmem>>, vector<64x32xf32>
    %c0_1 = arith.constant 0 : index
    %c0_2 = arith.constant 0 : index
    %1 = vector.load %arg2[%c0_1, %c0_2] : memref<32x160xf32, #tpu.memory_space<vmem>>, vector<32x160xf32>
    %c0_3 = arith.constant 0 : index
    %c0_4 = arith.constant 0 : index
    %2 = vector.load %arg3[%c0_3, %c0_4] : memref<1x160xf32, #tpu.memory_space<vmem>>, vector<1x160xf32>
    %cst = arith.constant dense<0.000000e+00> : vector<64x160xf32>
    %3 = tpu.matmul %0, %1, %cst {dimension_numbers = #tpu.dot_dimension_numbers<[1], [0], [0], [1], [0, 0, 1, 1], [], []>, precision = #tpu.contract_precision<fp32>} : vector<64x32xf32>, vector<32x160xf32>, vector<64x160xf32> -> vector<64x160xf32>
    %4 = vector.broadcast %2 : vector<1x160xf32> to vector<64x160xf32>
    %5 = arith.addf %3, %4 : vector<64x160xf32>
    %cst_5 = arith.constant 0.000000e+00 : f32
    %6 = vector.broadcast %cst_5 : f32 to vector<64x160xf32>
    %7 = arith.maximumf %5, %6 : vector<64x160xf32>
    %c0_6 = arith.constant 0 : index
    %c0_7 = arith.constant 0 : index
    %8 = vector.load %arg4[%c0_6, %c0_7] : memref<160x160xf32, #tpu.memory_space<vmem>>, vector<160x160xf32>
    %c0_8 = arith.constant 0 : index
    %c0_9 = arith.constant 0 : index
    %9 = vector.load %arg5[%c0_8, %c0_9] : memref<1x160xf32, #tpu.memory_space<vmem>>, vector<1x160xf32>
    %cst_10 = arith.constant dense<0.000000e+00> : vector<64x160xf32>
    %10 = tpu.matmul %7, %8, %cst_10 {dimension_numbers = #tpu.dot_dimension_numbers<[1], [0], [0], [1], [0, 0, 1, 1], [], []>, precision = #tpu.contract_precision<fp32>} : vector<64x160xf32>, vector<160x160xf32>, vector<64x160xf32> -> vector<64x160xf32>
    %11 = vector.broadcast %9 : vector<1x160xf32> to vector<64x160xf32>
    %12 = arith.addf %10, %11 : vector<64x160xf32>
    %cst_11 = arith.constant 0.000000e+00 : f32
    %13 = vector.broadcast %cst_11 : f32 to vector<64x160xf32>
    %14 = arith.maximumf %12, %13 : vector<64x160xf32>
    %c0_12 = arith.constant 0 : index
    %c0_13 = arith.constant 0 : index
    %15 = vector.load %arg6[%c0_12, %c0_13] : memref<160x40xf32, #tpu.memory_space<vmem>>, vector<160x40xf32>
    %c0_14 = arith.constant 0 : index
    %c0_15 = arith.constant 0 : index
    %16 = vector.load %arg7[%c0_14, %c0_15] : memref<1x40xf32, #tpu.memory_space<vmem>>, vector<1x40xf32>
    %cst_16 = arith.constant dense<0.000000e+00> : vector<64x40xf32>
    %17 = tpu.matmul %14, %15, %cst_16 {dimension_numbers = #tpu.dot_dimension_numbers<[1], [0], [0], [1], [0, 0, 1, 1], [], []>, precision = #tpu.contract_precision<fp32>} : vector<64x160xf32>, vector<160x40xf32>, vector<64x40xf32> -> vector<64x40xf32>
    %18 = vector.broadcast %16 : vector<1x40xf32> to vector<64x40xf32>
    %19 = arith.addf %17, %18 : vector<64x40xf32>
    %20 = vector.extract_strided_slice %19 {offsets = [0, 0], sizes = [64, 8], strides = [1, 1]} : vector<64x40xf32> to vector<64x8xf32>
    %21 = vector.extract_strided_slice %19 {offsets = [0, 8], sizes = [64, 8], strides = [1, 1]} : vector<64x40xf32> to vector<64x8xf32>
    %22 = vector.extract_strided_slice %19 {offsets = [0, 16], sizes = [64, 8], strides = [1, 1]} : vector<64x40xf32> to vector<64x8xf32>
    %23 = vector.extract_strided_slice %19 {offsets = [0, 24], sizes = [64, 8], strides = [1, 1]} : vector<64x40xf32> to vector<64x8xf32>
    %24 = vector.extract_strided_slice %19 {offsets = [0, 32], sizes = [64, 8], strides = [1, 1]} : vector<64x40xf32> to vector<64x8xf32>
    %25 = arith.minimumf %21, %22 : vector<64x8xf32>
    %26 = arith.maximumf %21, %22 : vector<64x8xf32>
    %27 = arith.minimumf %23, %24 : vector<64x8xf32>
    %28 = arith.maximumf %23, %24 : vector<64x8xf32>
    %29 = arith.maximumf %25, %27 : vector<64x8xf32>
    %30 = arith.minimumf %26, %28 : vector<64x8xf32>
    %31 = arith.minimumf %29, %30 : vector<64x8xf32>
    %cst_17 = arith.constant 1.000000e+00 : f32
    %32 = vector.broadcast %cst_17 : f32 to vector<64x8xf32>
    %33 = arith.mulf %32, %31 : vector<64x8xf32>
    %34 = arith.subf %20, %33 : vector<64x8xf32>
    %c0_18 = arith.constant 0 : index
    %c0_19 = arith.constant 0 : index
    %35 = vector.load %arg8[%c0_18, %c0_19] : memref<64x8xf32, #tpu.memory_space<vmem>>, vector<64x8xf32>
    tpu.vector_store %arg8[%c0_18, %c0_19], %34 {strides = array<i32>} : memref<64x8xf32, #tpu.memory_space<vmem>>, vector<64x8xf32>,
    return
  }
  func.func @transform_0(%arg0: i32) -> (i32, i32) {
    %c0_i32 = arith.constant 0 : i32
    %c0_i32_0 = arith.constant 0 : i32
    return %arg0, %c0_i32 : i32, i32
  }
  func.func @transform_1(%arg0: i32) -> (i32, i32) {
    %c0_i32 = arith.constant 0 : i32
    %c0_i32_0 = arith.constant 0 : i32
    %c0_i32_1 = arith.constant 0 : i32
    return %c0_i32, %c0_i32_0 : i32, i32
  }
  func.func @transform_2(%arg0: i32) -> (i32, i32) {
    %c0_i32 = arith.constant 0 : i32
    %c0_i32_0 = arith.constant 0 : i32
    %c0_i32_1 = arith.constant 0 : i32
    return %c0_i32, %c0_i32_0 : i32, i32
  }
  func.func @transform_3(%arg0: i32) -> (i32, i32) {
    %c0_i32 = arith.constant 0 : i32
    %c0_i32_0 = arith.constant 0 : i32
    %c0_i32_1 = arith.constant 0 : i32
    return %c0_i32, %c0_i32_0 : i32, i32
  }
  func.func @transform_4(%arg0: i32) -> (i32, i32) {
    %c0_i32 = arith.constant 0 : i32
    %c0_i32_0 = arith.constant 0 : i32
    %c0_i32_1 = arith.constant 0 : i32
    return %c0_i32, %c0_i32_0 : i32, i32
  }
  func.func @transform_5(%arg0: i32) -> (i32, i32) {
    %c0_i32 = arith.constant 0 : i32
    %c0_i32_0 = arith.constant 0 : i32
    %c0_i32_1 = arith.constant 0 : i32
    return %c0_i32, %c0_i32_0 : i32, i32
  }
  func.func @transform_6(%arg0: i32) -> (i32, i32) {
    %c0_i32 = arith.constant 0 : i32
    %c0_i32_0 = arith.constant 0 : i32
    %c0_i32_1 = arith.constant 0 : i32
    return %c0_i32, %c0_i32_0 : i32, i32
  }
  func.func @transform_7(%arg0: i32) -> (i32, i32) {
    %c0_i32 = arith.constant 0 : i32
    %c0_i32_0 = arith.constant 0 : i32
    return %arg0, %c0_i32 : i32, i32
  }
}

</mosaic_0001>

<llo_original>
// kernel: tpu_custom_call.1
$region0: #{tpu_custom_call.1}
  #allocation0 [shape = 'u32[]', space=smem, size = 0x4, offset = 0x4, fixed_abs, tag = 'smem constant byte address 0x4 - core index']
  #allocation1 [shape = 'u32[144,128]{1,0:T(1,128)}', space=vmem, size = 0x12000, scoped, tag = 'internal scratch']
  %s0 = inlined_call_operand.vmem [shape: f32[64,32], index: 0, kind: input, shape index: {}]
  %s1 = inlined_call_operand.hbm [shape: f32[32,160], index: 1, kind: input, shape index: {}]
  %s2 = inlined_call_operand.vmem [shape: f32[1,160], index: 2, kind: input, shape index: {}]
  %s3 = inlined_call_operand.vmem [shape: f32[160,160], index: 3, kind: input, shape index: {}]
  %s4 = inlined_call_operand.vmem [shape: f32[1,160], index: 4, kind: input, shape index: {}]
  %s5 = inlined_call_operand.vmem [shape: f32[160,40], index: 5, kind: input, shape index: {}]
  %s6 = inlined_call_operand.vmem [shape: f32[1,40], index: 6, kind: input, shape index: {}]
  %s7 = inlined_call_operand.vmem [shape: f32[64,8], index: 7, kind: output, shape index: {}]
  %s8 = sld [smem:[#allocation0]]
  $region42: #{tpu_custom_call.1} parent=0
    _
  %s10 = ssub.s32 1, %s8
  %s11 = scalar_select 0, %s10, %s8
  $region1: #{tpu_custom_call.1} parent=0
    #allocation2 [shape = 'u8[32768]{0}', space=vmem, size = 0x8000, scoped, tag = 'input window, operand 1, single buffered']
    #allocation3 [shape = 's32[1]{0}', space=sflag, size = 0x4, scoped, tag = 'scoped memory for tpu_custom_call.1']
    %12 = vsyncpa [#allocation3], 0
    // Predicated region
    $region2: #{tpu_custom_call.1} parent=1 // pred_check
      _
    $region3: #{tpu_custom_call.1} parent=1 // pred_check_branch
      %14 = sbr.rel (0) target = $region5
    $region4: #{tpu_custom_call.1} parent=1 // pred_region
      _
    $region5: #{tpu_custom_call.1} parent=1 // pred_fallthru
      _
    // Predicated region
    $region6: #{tpu_custom_call.1} parent=1 // pred_check
      _
    $region7: #{tpu_custom_call.1} parent=1 // pred_check_branch
      %16 = sbr.rel (0) target = $region9
    $region8: #{tpu_custom_call.1} parent=1 // pred_region
      %s18 = ssub.s32 1024, 1024
      %19 = vsyncadd [#allocation3], %s18
      %s20 = sshll.u32 [#allocation2], 4
      %s21 = int_to_ptr.vmem [resolvable:$true] %s20
      %26 = dma.hbm_to_vmem [thread:$0]  %s1, 1024, %s21, [#allocation3], 256, 256, 16
    $region9: #{tpu_custom_call.1} parent=1 // pred_fallthru
      _
    // Predicated region
    $region10: #{tpu_custom_call.1} parent=1 // pred_check
      _
    $region11: #{tpu_custom_call.1} parent=1 // pred_check_branch
      %28 = sbr.rel (0) target = $region13
    $region12: #{tpu_custom_call.1} parent=1 // pred_region
      _
    $region13: #{tpu_custom_call.1} parent=1 // pred_fallthru
      _
    // Predicated region
    $region14: #{tpu_custom_call.1} parent=1 // pred_check
      _
    $region15: #{tpu_custom_call.1} parent=1 // pred_check_branch
      %30 = sbr.rel (0) target = $region17
    $region16: #{tpu_custom_call.1} parent=1 // pred_region
      _
    $region17: #{tpu_custom_call.1} parent=1 // pred_fallthru
      _
    // Predicated region
    $region18: #{tpu_custom_call.1} parent=1 // pred_check
      _
    $region19: #{tpu_custom_call.1} parent=1 // pred_check_branch
      %32 = sbr.rel (0) target = $region21
    $region20: #{tpu_custom_call.1} parent=1 // pred_region
      _
    $region21: #{tpu_custom_call.1} parent=1 // pred_fallthru
      _
    // Predicated region
    $region22: #{tpu_custom_call.1} parent=1 // pred_check
      _
    $region23: #{tpu_custom_call.1} parent=1 // pred_check_branch
      %34 = sbr.rel (0) target = $region25
    $region24: #{tpu_custom_call.1} parent=1 // pred_region
      _
    $region25: #{tpu_custom_call.1} parent=1 // pred_fallthru
      _
    // Predicated region
    $region26: #{tpu_custom_call.1} parent=1 // pred_check
      _
    $region27: #{tpu_custom_call.1} parent=1 // pred_check_branch
      %36 = sbr.rel (0) target = $region29
    $region28: #{tpu_custom_call.1} parent=1 // pred_region
      _
    $region29: #{tpu_custom_call.1} parent=1 // pred_fallthru
      _
    // Predicated region
    $region30: #{tpu_custom_call.1} parent=1 // pred_check
      _
    $region31: #{tpu_custom_call.1} parent=1 // pred_check_branch
      %38 = sbr.rel (0) target = $region33
    $region32: #{tpu_custom_call.1} parent=1 // pred_region
      %39 = dma.done [#allocation3], 1024
    $region33: #{tpu_custom_call.1} parent=1 // pred_fallthru
      _
    %v40 = vld [vmem:[%s0] sm:$0xff]
    %v41 = vld [vmem:[%s0 + $0x8] sm:$0xff]
    %v42 = vld [vmem:[%s0 + $0x10] sm:$0xff]
    %v43 = vld [vmem:[%s0 + $0x18] sm:$0xff]
    %v44 = vld [vmem:[%s0 + $0x20] sm:$0xff]
    %v45 = vld [vmem:[%s0 + $0x28] sm:$0xff]
    %v46 = vld [vmem:[%s0 + $0x30] sm:$0xff]
    %v47 = vld [vmem:[%s0 + $0x38] sm:$0xff]
    %v48 = vld [vmem:[#allocation2] sm:$0xff]
    %v49 = vld [vmem:[#allocation2 + $0x8] sm:$0xff]
    %v50 = vld [vmem:[#allocation2 + $0x10] sm:$0xff]
    %v51 = vld [vmem:[#allocation2 + $0x18] sm:$0xff]
    %v52 = vld [vmem:[#allocation2 + $0x20] sm:$0xff]
    %v53 = vld [vmem:[#allocation2 + $0x28] sm:$0xff]
    %v54 = vld [vmem:[#allocation2 + $0x30] sm:$0xff]
    %v55 = vld [vmem:[#allocation2 + $0x38] sm:$0xff]
    %v56 = vld [vmem:[%s2] sm:$0x3]
    %v58 = vlaneseq
    %v59 = vshrl.u32 %v58, 7
    %v60 = vsub.s32 0, %v59
    %v61 = vrot.slane %v56, %v60
    %v62 = vlaneseq
    %v63 = vshrl.u32 %v62, 7
    %v64 = vsub.s32 1, %v63
    %v65 = vrot.slane %v56, %v64
    %vm68 = vcmask 261120
    %v70 = vsel %vm68, %v40, 0
    %v73 = vsel %vm68, %v41, 0
    %v76 = vsel %vm68, %v42, 0
    %v79 = vsel %vm68, %v43, 0
    %v82 = vsel %vm68, %v44, 0
    %v85 = vsel %vm68, %v45, 0
    %v88 = vsel %vm68, %v46, 0
    %v91 = vsel %vm68, %v47, 0
    %93 = vmatprep.subr.mxu0 0.0
    %94 = vmatpush1.msra.mxu0 0.0
    %95 = vmatprep.subr.mxu0 0.0
    %96 = vmatpush1.msra.mxu0 0.0
    %97 = vmatprep.subr.mxu0 0.0
    %98 = vmatpush1.msra.mxu0 0.0
    %99 = vmatprep.subr.mxu0 0.0
    %100 = vmatpush1.msra.mxu0 0.0
    %101 = vmatprep.subr.mxu0 0.0
    %102 = vmatpush1.msra.mxu0 0.0
    %103 = vmatprep.subr.mxu0 0.0
    %104 = vmatpush1.msra.mxu0 0.0
    %105 = vmatprep.subr.mxu0 0.0
    %106 = vmatpush1.msra.mxu0 0.0
    %107 = vmatprep.subr.mxu0 0.0
    %108 = vmatpush1.msra.mxu0 0.0
    %109 = vmatprep.subr.mxu0 0.0
    %110 = vmatpush1.msra.mxu0 0.0
    %111 = vmatprep.subr.mxu0 0.0
    %112 = vmatpush1.msra.mxu0 0.0
    %113 = vmatprep.subr.mxu0 0.0
    %114 = vmatpush1.msra.mxu0 0.0
    %115 = vmatprep.subr.mxu0 0.0
    %116 = vmatpush1.msra.mxu0 0.0
    %v117 = vand.u32 %v55, 4294901760
    %118 = vmatprep.subr.mxu0 %v117
    %v119 = vand.u32 %v54, 4294901760
    %120 = vmatpush1.msra.mxu0 %v119
    %v121 = vand.u32 %v53, 4294901760
    %122 = vmatprep.subr.mxu0 %v121
    %v123 = vand.u32 %v52, 4294901760
    %124 = vmatpush1.msra.mxu0 %v123
    %v125 = vand.u32 %v51, 4294901760
    %126 = vmatprep.subr.mxu0 %v125
    %v127 = vand.u32 %v50, 4294901760
    %128 = vmatpush1.msra.mxu0 %v127
    %v129 = vand.u32 %v49, 4294901760
    %130 = vmatprep.subr.mxu0 %v129
    %v131 = vand.u32 %v48, 4294901760
    %132 = vmatpush1.msra.mxu0 %v131
    %133 = vmatprep.subr.mxu0 0.0
    %134 = vmatpush2.msra.mxu0 0.0
    %135 = vmatprep.subr.mxu0 0.0
    %136 = vmatpush2.msra.mxu0 0.0
    %137 = vmatprep.subr.mxu0 0.0
    %138 = vmatpush2.msra.mxu0 0.0
    %139 = vmatprep.subr.mxu0 0.0
    %140 = vmatpush2.msra.mxu0 0.0
    %141 = vmatprep.subr.mxu0 0.0
    %142 = vmatpush2.msra.mxu0 0.0
    %143 = vmatprep.subr.mxu0 0.0
    %144 = vmatpush2.msra.mxu0 0.0
    %145 = vmatprep.subr.mxu0 0.0
    %146 = vmatpush2.msra.mxu0 0.0
    %147 = vmatprep.subr.mxu0 0.0
    %148 = vmatpush2.msra.mxu0 0.0
    %149 = vmatprep.subr.mxu0 0.0
    %150 = vmatpush2.msra.mxu0 0.0
    %151 = vmatprep.subr.mxu0 0.0
    %152 = vmatpush2.msra.mxu0 0.0
    %153 = vmatprep.subr.mxu0 0.0
    %154 = vmatpush2.msra.mxu0 0.0
    %155 = vmatprep.subr.mxu0 0.0
    %156 = vmatpush2.msra.mxu0 0.0
    %157 = vmatprep.subr.mxu0 0.0
    %158 = vmatpush2.msra.mxu0 0.0
    %159 = vmatprep.subr.mxu0 0.0
    %160 = vmatpush2.msra.mxu0 0.0
    %161 = vmatprep.subr.mxu0 0.0
    %162 = vmatpush2.msra.mxu0 0.0
    %163 = vmatprep.subr.mxu0 0.0
    %164 = vmatpush2.msra.mxu0 0.0
    %165 = vmatprep.mubr.f32.mxu0 0.0
    %v166 = vand.u32 %v70, 4294901760
    %v167 = vsub.f32 %v70, %v166
    %v168 = vand.u32 %v167, 4294901760
    %v169 = vsub.f32 %v167, %v168
    %v170 = vand.u32 %v169, 4294901760
    %171 = vmatmul.mubr.f32.gmra.mxu0 %v170
    %v172 = vpop.f32.mrf.mxu0
    %v173 = vadd.f32 %v61, %v172
    %v174 = vpop.f32.mrf.mxu0
    %v175 = vadd.f32 %v65, %v174
    %176 = vmatprep.mubr.f32.mxu0 0.0
    %v177 = vand.u32 %v73, 4294901760
    %v178 = vsub.f32 %v73, %v177
    %v179 = vand.u32 %v178, 4294901760
    %v180 = vsub.f32 %v178, %v179
    %v181 = vand.u32 %v180, 4294901760
    %182 = vmatmul.mubr.f32.gmra.mxu0 %v181
    %v183 = vpop.f32.mrf.mxu0
    %v184 = vadd.f32 %v61, %v183
    %v185 = vpop.f32.mrf.mxu0
    %v186 = vadd.f32 %v65, %v185
    %187 = vmatprep.mubr.f32.mxu0 0.0
    %v188 = vand.u32 %v76, 4294901760
    %v189 = vsub.f32 %v76, %v188
    %v190 = vand.u32 %v189, 4294901760
    %v191 = vsub.f32 %v189, %v190
    %v192 = vand.u32 %v191, 4294901760
    %193 = vmatmul.mubr.f32.gmra.mxu0 %v192
    %v194 = vpop.f32.mrf.mxu0
    %v195 = vadd.f32 %v61, %v194
    %v196 = vpop.f32.mrf.mxu0
    %v197 = vadd.f32 %v65, %v196
    %198 = vmatprep.mubr.f32.mxu0 0.0
    %v199 = vand.u32 %v79, 4294901760
    %v200 = vsub.f32 %v79, %v199
    %v201 = vand.u32 %v200, 4294901760
    %v202 = vsub.f32 %v200, %v201
    %v203 = vand.u32 %v202, 4294901760
    %204 = vmatmul.mubr.f32.gmra.mxu0 %v203
    %v205 = vpop.f32.mrf.mxu0
    %v206 = vadd.f32 %v61, %v205
    %v207 = vpop.f32.mrf.mxu0
    %v208 = vadd.f32 %v65, %v207
    %209 = vmatprep.mubr.f32.mxu0 0.0
    %v210 = vand.u32 %v82, 4294901760
    %v211 = vsub.f32 %v82, %v210
    %v212 = vand.u32 %v211, 4294901760
    %v213 = vsub.f32 %v211, %v212
    %v214 = vand.u32 %v213, 4294901760
    %215 = vmatmul.mubr.f32.gmra.mxu0 %v214
    %v216 = vpop.f32.mrf.mxu0
    %v217 = vadd.f32 %v61, %v216
    %v218 = vpop.f32.mrf.mxu0
    %v219 = vadd.f32 %v65, %v218
    %220 = vmatprep.mubr.f32.mxu0 0.0
    %v221 = vand.u32 %v85, 4294901760
    %v222 = vsub.f32 %v85, %v221
    %v223 = vand.u32 %v222, 4294901760
    %v224 = vsub.f32 %v222, %v223
    %v225 = vand.u32 %v224, 4294901760
    %226 = vmatmul.mubr.f32.gmra.mxu0 %v225
    %v227 = vpop.f32.mrf.mxu0
    %v228 = vadd.f32 %v61, %v227
    %v229 = vpop.f32.mrf.mxu0
    %v230 = vadd.f32 %v65, %v229
    %231 = vmatprep.mubr.f32.mxu0 0.0
    %v232 = vand.u32 %v88, 4294901760
    %v233 = vsub.f32 %v88, %v232
    %v234 = vand.u32 %v233, 4294901760
    %v235 = vsub.f32 %v233, %v234
    %v236 = vand.u32 %v235, 4294901760
    %237 = vmatmul.mubr.f32.gmra.mxu0 %v236
    %v238 = vpop.f32.mrf.mxu0
    %v239 = vadd.f32 %v61, %v238
    %v240 = vpop.f32.mrf.mxu0
    %v241 = vadd.f32 %v65, %v240
    %242 = vmatprep.mubr.f32.mxu0 0.0
    %v243 = vand.u32 %v91, 4294901760
    %v244 = vsub.f32 %v91, %v243
    %v245 = vand.u32 %v244, 4294901760
    %v246 = vsub.f32 %v244, %v245
    %v247 = vand.u32 %v246, 4294901760
    %248 = vmatmul.mubr.f32.gmra.mxu0 %v247
    %v249 = vpop.f32.mrf.mxu0
    %v250 = vadd.f32 %v61, %v249
    %v251 = vpop.f32.mrf.mxu0
    %v252 = vadd.f32 %v65, %v251
    %253 = vdwg.mxu0
    %254 = vmatprep.subr.mxu0 0.0
    %255 = vmatpush1.msra.mxu0 0.0
    %256 = vmatprep.subr.mxu0 0.0
    %257 = vmatpush1.msra.mxu0 0.0
    %258 = vmatprep.subr.mxu0 0.0
    %259 = vmatpush1.msra.mxu0 0.0
    %260 = vmatprep.subr.mxu0 0.0
    %261 = vmatpush1.msra.mxu0 0.0
    %262 = vmatprep.subr.mxu0 0.0
    %263 = vmatpush1.msra.mxu0 0.0
    %264 = vmatprep.subr.mxu0 0.0
    %265 = vmatpush1.msra.mxu0 0.0
    %266 = vmatprep.subr.mxu0 0.0
    %267 = vmatpush1.msra.mxu0 0.0
    %268 = vmatprep.subr.mxu0 0.0
    %269 = vmatpush1.msra.mxu0 0.0
    %270 = vmatprep.subr.mxu0 0.0
    %271 = vmatpush1.msra.mxu0 0.0
    %272 = vmatprep.subr.mxu0 0.0
    %273 = vmatpush1.msra.mxu0 0.0
    %274 = vmatprep.subr.mxu0 0.0
    %275 = vmatpush1.msra.mxu0 0.0
    %276 = vmatprep.subr.mxu0 0.0
    %277 = vmatpush1.msra.mxu0 0.0
    %v278 = vand.u32 %v55, 4294901760
    %v279 = vsub.f32 %v55, %v278
    %v280 = vand.u32 %v279, 4294901760
    %v281 = vsub.f32 %v279, %v280
    %v282 = vand.u32 %v281, 4294901760
    %283 = vmatprep.subr.mxu0 %v282
    %v284 = vand.u32 %v54, 4294901760
    %v285 = vsub.f32 %v54, %v284
    %v286 = vand.u32 %v285, 4294901760
    %v287 = vsub.f32 %v285, %v286
    %v288 = vand.u32 %v287, 4294901760
    %289 = vmatpush1.msra.mxu0 %v288
    %v290 = vand.u32 %v53, 4294901760
    %v291 = vsub.f32 %v53, %v290
    %v292 = vand.u32 %v291, 4294901760
    %v293 = vsub.f32 %v291, %v292
    %v294 = vand.u32 %v293, 4294901760
    %295 = vmatprep.subr.mxu0 %v294
    %v296 = vand.u32 %v52, 4294901760
    %v297 = vsub.f32 %v52, %v296
    %v298 = vand.u32 %v297, 4294901760
    %v299 = vsub.f32 %v297, %v298
    %v300 = vand.u32 %v299, 4294901760
    %301 = vmatpush1.msra.mxu0 %v300
    %v302 = vand.u32 %v51, 4294901760
    %v303 = vsub.f32 %v51, %v302
    %v304 = vand.u32 %v303, 4294901760
    %v305 = vsub.f32 %v303, %v304
    %v306 = vand.u32 %v305, 4294901760
    %307 = vmatprep.subr.mxu0 %v306
    %v308 = vand.u32 %v50, 4294901760
    %v309 = vsub.f32 %v50, %v308
    %v310 = vand.u32 %v309, 4294901760
    %v311 = vsub.f32 %v309, %v310
    %v312 = vand.u32 %v311, 4294901760
    %313 = vmatpush1.msra.mxu0 %v312
    %v314 = vand.u32 %v49, 4294901760
    %v315 = vsub.f32 %v49, %v314
    %v316 = vand.u32 %v315, 4294901760
    %v317 = vsub.f32 %v315, %v316
    %v318 = vand.u32 %v317, 4294901760
    %319 = vmatprep.subr.mxu0 %v318
    %v320 = vand.u32 %v48, 4294901760
    %v321 = vsub.f32 %v48, %v320
    %v322 = vand.u32 %v321, 4294901760
    %v323 = vsub.f32 %v321, %v322
    %v324 = vand.u32 %v323, 4294901760
    %325 = vmatpush1.msra.mxu0 %v324
    %326 = vmatprep.subr.mxu0 0.0
    %327 = vmatpush2.msra.mxu0 0.0
    %328 = vmatprep.subr.mxu0 0.0
    %329 = vmatpush2.msra.mxu0 0.0
    %330 = vmatprep.subr.mxu0 0.0
    %331 = vmatpush2.msra.mxu0 0.0
    %332 = vmatprep.subr.mxu0 0.0
    %333 = vmatpush2.msra.mxu0 0.0
    %334 = vmatprep.subr.mxu0 0.0
    %335 = vmatpush2.msra.mxu0 0.0
    %336 = vmatprep.subr.mxu0 0.0
    %337 = vmatpush2.msra.mxu0 0.0
    %338 = vmatprep.subr.mxu0 0.0
    %339 = vmatpush2.msra.mxu0 0.0
    %340 = vmatprep.subr.mxu0 0.0
    %341 = vmatpush2.msra.mxu0 0.0
    %342 = vmatprep.subr.mxu0 0.0
    %343 = vmatpush2.msra.mxu0 0.0
    %344 = vmatprep.subr.mxu0 0.0
    %345 = vmatpush2.msra.mxu0 0.0
    %346 = vmatprep.subr.mxu0 0.0
    %347 = vmatpush2.msra.mxu0 0.0
    %348 = vmatprep.subr.mxu0 0.0
    %349 = vmatpush2.msra.mxu0 0.0
    %350 = vmatprep.subr.mxu0 0.0
    %351 = vmatpush2.msra.mxu0 0.0
    %352 = vmatprep.subr.mxu0 0.0
    %353 = vmatpush2.msra.mxu0 0.0
    %354 = vmatprep.subr.mxu0 0.0
    %355 = vmatpush2.msra.mxu0 0.0
    %356 = vmatprep.subr.mxu0 0.0
    %357 = vmatpush2.msra.mxu0 0.0
    %358 = vmatprep.mubr.f32.mxu0 0.0
    %v359 = vand.u32 %v70, 4294901760
    %360 = vmatmul.mubr.f32.gmra.mxu0 %v359
    %v361 = vpop.f32.mrf.mxu0
    %v362 = vadd.f32 %v173, %v361
    %v363 = vpop.f32.mrf.mxu0
    %v364 = vadd.f32 %v175, %v363
    %365 = vmatprep.mubr.f32.mxu0 0.0
    %v366 = vand.u32 %v73, 4294901760
    %367 = vmatmul.mubr.f32.gmra.mxu0 %v366
    %v368 = vpop.f32.mrf.mxu0
    %v369 = vadd.f32 %v184, %v368
    %v370 = vpop.f32.mrf.mxu0
    %v371 = vadd.f32 %v186, %v370
    %372 = vmatprep.mubr.f32.mxu0 0.0
    %v373 = vand.u32 %v76, 4294901760
    %374 = vmatmul.mubr.f32.gmra.mxu0 %v373
    %v375 = vpop.f32.mrf.mxu0
    %v376 = vadd.f32 %v195, %v375
    %v377 = vpop.f32.mrf.mxu0
    %v378 = vadd.f32 %v197, %v377
    %379 = vmatprep.mubr.f32.mxu0 0.0
    %v380 = vand.u32 %v79, 4294901760
    %381 = vmatmul.mubr.f32.gmra.mxu0 %v380
    %v382 = vpop.f32.mrf.mxu0
    %v383 = vadd.f32 %v206, %v382
    %v384 = vpop.f32.mrf.mxu0
    %v385 = vadd.f32 %v208, %v384
    %386 = vmatprep.mubr.f32.mxu0 0.0
    %v387 = vand.u32 %v82, 4294901760
    %388 = vmatmul.mubr.f32.gmra.mxu0 %v387
    %v389 = vpop.f32.mrf.mxu0
    %v390 = vadd.f32 %v217, %v389
    %v391 = vpop.f32.mrf.mxu0
    %v392 = vadd.f32 %v219, %v391
    %393 = vmatprep.mubr.f32.mxu0 0.0
    %v394 = vand.u32 %v85, 4294901760
    %395 = vmatmul.mubr.f32.gmra.mxu0 %v394
    %v396 = vpop.f32.mrf.mxu0
    %v397 = vadd.f32 %v228, %v396
    %v398 = vpop.f32.mrf.mxu0
    %v399 = vadd.f32 %v230, %v398
    %400 = vmatprep.mubr.f32.mxu0 0.0
    %v401 = vand.u32 %v88, 4294901760
    %402 = vmatmul.mubr.f32.gmra.mxu0 %v401
    %v403 = vpop.f32.mrf.mxu0
    %v404 = vadd.f32 %v239, %v403
    %v405 = vpop.f32.mrf.mxu0
    %v406 = vadd.f32 %v241, %v405
    %407 = vmatprep.mubr.f32.mxu0 0.0
    %v408 = vand.u32 %v91, 4294901760
    %409 = vmatmul.mubr.f32.gmra.mxu0 %v408
    %v410 = vpop.f32.mrf.mxu0
    %v411 = vadd.f32 %v250, %v410
    %v412 = vpop.f32.mrf.mxu0
    %v413 = vadd.f32 %v252, %v412
    %414 = vdwg.mxu0
    %415 = vmatprep.subr.mxu0 0.0
    %416 = vmatpush1.msra.mxu0 0.0
    %417 = vmatprep.subr.mxu0 0.0
    %418 = vmatpush1.msra.mxu0 0.0
    %419 = vmatprep.subr.mxu0 0.0
    %420 = vmatpush1.msra.mxu0 0.0
    %421 = vmatprep.subr.mxu0 0.0
    %422 = vmatpush1.msra.mxu0 0.0
    %423 = vmatprep.subr.mxu0 0.0
    %424 = vmatpush1.msra.mxu0 0.0
    %425 = vmatprep.subr.mxu0 0.0
    %426 = vmatpush1.msra.mxu0 0.0
    %427 = vmatprep.subr.mxu0 0.0
    %428 = vmatpush1.msra.mxu0 0.0
    %429 = vmatprep.subr.mxu0 0.0
    %430 = vmatpush1.msra.mxu0 0.0
    %431 = vmatprep.subr.mxu0 0.0
    %432 = vmatpush1.msra.mxu0 0.0
    %433 = vmatprep.subr.mxu0 0.0
    %434 = vmatpush1.msra.mxu0 0.0
    %435 = vmatprep.subr.mxu0 0.0
    %436 = vmatpush1.msra.mxu0 0.0
    %437 = vmatprep.subr.mxu0 0.0
    %438 = vmatpush1.msra.mxu0 0.0
    %v439 = vand.u32 %v55, 4294901760
    %v440 = vsub.f32 %v55, %v439
    %441 = vmatprep.subr.mxu0 %v440
    %v442 = vand.u32 %v54, 4294901760
    %v443 = vsub.f32 %v54, %v442
    %444 = vmatpush1.msra.mxu0 %v443
    %v445 = vand.u32 %v53, 4294901760
    %v446 = vsub.f32 %v53, %v445
    %447 = vmatprep.subr.mxu0 %v446
    %v448 = vand.u32 %v52, 4294901760
    %v449 = vsub.f32 %v52, %v448
    %450 = vmatpush1.msra.mxu0 %v449
    %v451 = vand.u32 %v51, 4294901760
    %v452 = vsub.f32 %v51, %v451
    %453 = vmatprep.subr.mxu0 %v452
    %v454 = vand.u32 %v50, 4294901760
    %v455 = vsub.f32 %v50, %v454
    %456 = vmatpush1.msra.mxu0 %v455
    %v457 = vand.u32 %v49, 4294901760
    %v458 = vsub.f32 %v49, %v457
    %459 = vmatprep.subr.mxu0 %v458
    %v460 = vand.u32 %v48, 4294901760
    %v461 = vsub.f32 %v48, %v460
    %462 = vmatpush1.msra.mxu0 %v461
    %463 = vmatprep.subr.mxu0 0.0
    %464 = vmatpush2.msra.mxu0 0.0
    %465 = vmatprep.subr.mxu0 0.0
    %466 = vmatpush2.msra.mxu0 0.0
    %467 = vmatprep.subr.mxu0 0.0
    %468 = vmatpush2.msra.mxu0 0.0
    %469 = vmatprep.subr.mxu0 0.0
    %470 = vmatpush2.msra.mxu0 0.0
    %471 = vmatprep.subr.mxu0 0.0
    %472 = vmatpush2.msra.mxu0 0.0
    %473 = vmatprep.subr.mxu0 0.0
    %474 = vmatpush2.msra.mxu0 0.0
    %475 = vmatprep.subr.mxu0 0.0
    %476 = vmatpush2.msra.mxu0 0.0
    %477 = vmatprep.subr.mxu0 0.0
    %478 = vmatpush2.msra.mxu0 0.0
    %479 = vmatprep.subr.mxu0 0.0
    %480 = vmatpush2.msra.mxu0 0.0
    %481 = vmatprep.subr.mxu0 0.0
    %482 = vmatpush2.msra.mxu0 0.0
    %483 = vmatprep.subr.mxu0 0.0
    %484 = vmatpush2.msra.mxu0 0.0
    %485 = vmatprep.subr.mxu0 0.0
    %486 = vmatpush2.msra.mxu0 0.0
    %487 = vmatprep.subr.mxu0 0.0
    %488 = vmatpush2.msra.mxu0 0.0
    %489 = vmatprep.subr.mxu0 0.0
    %490 = vmatpush2.msra.mxu0 0.0
    %491 = vmatprep.subr.mxu0 0.0
    %492 = vmatpush2.msra.mxu0 0.0
    %493 = vmatprep.subr.mxu0 0.0
    %494 = vmatpush2.msra.mxu0 0.0
    %495 = vmatprep.mubr.f32.mxu0 0.0
    %v496 = vand.u32 %v70, 4294901760
    %v497 = vsub.f32 %v70, %v496
    %498 = vmatmul.mubr.f32.gmra.mxu0 %v497
    %v499 = vpop.f32.mrf.mxu0
    %v500 = vadd.f32 %v362, %v499
    %v501 = vpop.f32.mrf.mxu0
    %v502 = vadd.f32 %v364, %v501
    %503 = vmatprep.mubr.f32.mxu0 0.0
    %v504 = vand.u32 %v73, 4294901760
    %v505 = vsub.f32 %v73, %v504
    %506 = vmatmul.mubr.f32.gmra.mxu0 %v505
    %v507 = vpop.f32.mrf.mxu0
    %v508 = vadd.f32 %v369, %v507
    %v509 = vpop.f32.mrf.mxu0
    %v510 = vadd.f32 %v371, %v509
    %511 = vmatprep.mubr.f32.mxu0 0.0
    %v512 = vand.u32 %v76, 4294901760
    %v513 = vsub.f32 %v76, %v512
    %514 = vmatmul.mubr.f32.gmra.mxu0 %v513
    %v515 = vpop.f32.mrf.mxu0
    %v516 = vadd.f32 %v376, %v515
    %v517 = vpop.f32.mrf.mxu0
    %v518 = vadd.f32 %v378, %v517
    %519 = vmatprep.mubr.f32.mxu0 0.0
    %v520 = vand.u32 %v79, 4294901760
    %v521 = vsub.f32 %v79, %v520
    %522 = vmatmul.mubr.f32.gmra.mxu0 %v521
    %v523 = vpop.f32.mrf.mxu0
    %v524 = vadd.f32 %v383, %v523
    %v525 = vpop.f32.mrf.mxu0
    %v526 = vadd.f32 %v385, %v525
    %527 = vmatprep.mubr.f32.mxu0 0.0
    %v528 = vand.u32 %v82, 4294901760
    %v529 = vsub.f32 %v82, %v528
    %530 = vmatmul.mubr.f32.gmra.mxu0 %v529
    %v531 = vpop.f32.mrf.mxu0
    %v532 = vadd.f32 %v390, %v531
    %v533 = vpop.f32.mrf.mxu0
    %v534 = vadd.f32 %v392, %v533
    %535 = vmatprep.mubr.f32.mxu0 0.0
    %v536 = vand.u32 %v85, 4294901760
    %v537 = vsub.f32 %v85, %v536
    %538 = vmatmul.mubr.f32.gmra.mxu0 %v537
    %v539 = vpop.f32.mrf.mxu0
    %v540 = vadd.f32 %v397, %v539
    %v541 = vpop.f32.mrf.mxu0
    %v542 = vadd.f32 %v399, %v541
    %543 = vmatprep.mubr.f32.mxu0 0.0
    %v544 = vand.u32 %v88, 4294901760
    %v545 = vsub.f32 %v88, %v544
    %546 = vmatmul.mubr.f32.gmra.mxu0 %v545
    %v547 = vpop.f32.mrf.mxu0
    %v548 = vadd.f32 %v404, %v547
    %v549 = vpop.f32.mrf.mxu0
    %v550 = vadd.f32 %v406, %v549
    %551 = vmatprep.mubr.f32.mxu0 0.0
    %v552 = vand.u32 %v91, 4294901760
    %v553 = vsub.f32 %v91, %v552
    %554 = vmatmul.mubr.f32.gmra.mxu0 %v553
    %v555 = vpop.f32.mrf.mxu0
    %v556 = vadd.f32 %v411, %v555
    %v557 = vpop.f32.mrf.mxu0
    %v558 = vadd.f32 %v413, %v557
    %559 = vdwg.mxu0
    %560 = vmatprep.subr.mxu0 0.0
    %561 = vmatpush1.msra.mxu0 0.0
    %562 = vmatprep.subr.mxu0 0.0
    %563 = vmatpush1.msra.mxu0 0.0
    %564 = vmatprep.subr.mxu0 0.0
    %565 = vmatpush1.msra.mxu0 0.0
    %566 = vmatprep.subr.mxu0 0.0
    %567 = vmatpush1.msra.mxu0 0.0
    %568 = vmatprep.subr.mxu0 0.0
    %569 = vmatpush1.msra.mxu0 0.0
    %570 = vmatprep.subr.mxu0 0.0
    %571 = vmatpush1.msra.mxu0 0.0
    %572 = vmatprep.subr.mxu0 0.0
    %573 = vmatpush1.msra.mxu0 0.0
    %574 = vmatprep.subr.mxu0 0.0
    %575 = vmatpush1.msra.mxu0 0.0
    %576 = vmatprep.subr.mxu0 0.0
    %577 = vmatpush1.msra.mxu0 0.0
    %578 = vmatprep.subr.mxu0 0.0
    %579 = vmatpush1.msra.mxu0 0.0
    %580 = vmatprep.subr.mxu0 0.0
    %581 = vmatpush1.msra.mxu0 0.0
    %582 = vmatprep.subr.mxu0 0.0
    %583 = vmatpush1.msra.mxu0 0.0
    %v584 = vand.u32 %v55, 4294901760
    %585 = vmatprep.subr.mxu0 %v584
    %v586 = vand.u32 %v54, 4294901760
    %587 = vmatpush1.msra.mxu0 %v586
    %v588 = vand.u32 %v53, 4294901760
    %589 = vmatprep.subr.mxu0 %v588
    %v590 = vand.u32 %v52, 4294901760
    %591 = vmatpush1.msra.mxu0 %v590
    %v592 = vand.u32 %v51, 4294901760
    %593 = vmatprep.subr.mxu0 %v592
    %v594 = vand.u32 %v50, 4294901760
    %595 = vmatpush1.msra.mxu0 %v594
    %v596 = vand.u32 %v49, 4294901760
    %597 = vmatprep.subr.mxu0 %v596
    %v598 = vand.u32 %v48, 4294901760
    %599 = vmatpush1.msra.mxu0 %v598
    %600 = vmatprep.subr.mxu0 0.0
    %601 = vmatpush2.msra.mxu0 0.0
    %602 = vmatprep.subr.mxu0 0.0
    %603 = vmatpush2.msra.mxu0 0.0
    %604 = vmatprep.subr.mxu0 0.0
    %605 = vmatpush2.msra.mxu0 0.0
    %606 = vmatprep.subr.mxu0 0.0
    %607 = vmatpush2.msra.mxu0 0.0
    %608 = vmatprep.subr.mxu0 0.0
    %609 = vmatpush2.msra.mxu0 0.0
    %610 = vmatprep.subr.mxu0 0.0
    %611 = vmatpush2.msra.mxu0 0.0
    %612 = vmatprep.subr.mxu0 0.0
    %613 = vmatpush2.msra.mxu0 0.0
    %614 = vmatprep.subr.mxu0 0.0
    %615 = vmatpush2.msra.mxu0 0.0
    %616 = vmatprep.subr.mxu0 0.0
    %617 = vmatpush2.msra.mxu0 0.0
    %618 = vmatprep.subr.mxu0 0.0
    %619 = vmatpush2.msra.mxu0 0.0
    %620 = vmatprep.subr.mxu0 0.0
    %621 = vmatpush2.msra.mxu0 0.0
    %622 = vmatprep.subr.mxu0 0.0
    %623 = vmatpush2.msra.mxu0 0.0
    %624 = vmatprep.subr.mxu0 0.0
    %625 = vmatpush2.msra.mxu0 0.0
    %626 = vmatprep.subr.mxu0 0.0
    %627 = vmatpush2.msra.mxu0 0.0
    %628 = vmatprep.subr.mxu0 0.0
    %629 = vmatpush2.msra.mxu0 0.0
    %630 = vmatprep.subr.mxu0 0.0
    %631 = vmatpush2.msra.mxu0 0.0
    %632 = vmatprep.mubr.f32.mxu0 0.0
    %v633 = vand.u32 %v70, 4294901760
    %v634 = vsub.f32 %v70, %v633
    %v635 = vand.u32 %v634, 4294901760
    %636 = vmatmul.mubr.f32.gmra.mxu0 %v635
    %v637 = vpop.f32.mrf.mxu0
    %v638 = vadd.f32 %v500, %v637
    %v639 = vpop.f32.mrf.mxu0
    %v640 = vadd.f32 %v502, %v639
    %641 = vmatprep.mubr.f32.mxu0 0.0
    %v642 = vand.u32 %v73, 4294901760
    %v643 = vsub.f32 %v73, %v642
    %v644 = vand.u32 %v643, 4294901760
    %645 = vmatmul.mubr.f32.gmra.mxu0 %v644
    %v646 = vpop.f32.mrf.mxu0
    %v647 = vadd.f32 %v508, %v646
    %v648 = vpop.f32.mrf.mxu0
    %v649 = vadd.f32 %v510, %v648
    %650 = vmatprep.mubr.f32.mxu0 0.0
    %v651 = vand.u32 %v76, 4294901760
    %v652 = vsub.f32 %v76, %v651
    %v653 = vand.u32 %v652, 4294901760
    %654 = vmatmul.mubr.f32.gmra.mxu0 %v653
    %v655 = vpop.f32.mrf.mxu0
    %v656 = vadd.f32 %v516, %v655
    %v657 = vpop.f32.mrf.mxu0
    %v658 = vadd.f32 %v518, %v657
    %659 = vmatprep.mubr.f32.mxu0 0.0
    %v660 = vand.u32 %v79, 4294901760
    %v661 = vsub.f32 %v79, %v660
    %v662 = vand.u32 %v661, 4294901760
    %663 = vmatmul.mubr.f32.gmra.mxu0 %v662
    %v664 = vpop.f32.mrf.mxu0
    %v665 = vadd.f32 %v524, %v664
    %v666 = vpop.f32.mrf.mxu0
    %v667 = vadd.f32 %v526, %v666
    %668 = vmatprep.mubr.f32.mxu0 0.0
    %v669 = vand.u32 %v82, 4294901760
    %v670 = vsub.f32 %v82, %v669
    %v671 = vand.u32 %v670, 4294901760
    %672 = vmatmul.mubr.f32.gmra.mxu0 %v671
    %v673 = vpop.f32.mrf.mxu0
    %v674 = vadd.f32 %v532, %v673
    %v675 = vpop.f32.mrf.mxu0
    %v676 = vadd.f32 %v534, %v675
    %677 = vmatprep.mubr.f32.mxu0 0.0
    %v678 = vand.u32 %v85, 4294901760
    %v679 = vsub.f32 %v85, %v678
    %v680 = vand.u32 %v679, 4294901760
    %681 = vmatmul.mubr.f32.gmra.mxu0 %v680
    %v682 = vpop.f32.mrf.mxu0
    %v683 = vadd.f32 %v540, %v682
    %v684 = vpop.f32.mrf.mxu0
    %v685 = vadd.f32 %v542, %v684
    %686 = vmatprep.mubr.f32.mxu0 0.0
    %v687 = vand.u32 %v88, 4294901760
    %v688 = vsub.f32 %v88, %v687
    %v689 = vand.u32 %v688, 4294901760
    %690 = vmatmul.mubr.f32.gmra.mxu0 %v689
    %v691 = vpop.f32.mrf.mxu0
    %v692 = vadd.f32 %v548, %v691
    %v693 = vpop.f32.mrf.mxu0
    %v694 = vadd.f32 %v550, %v693
    %695 = vmatprep.mubr.f32.mxu0 0.0
    %v696 = vand.u32 %v91, 4294901760
    %v697 = vsub.f32 %v91, %v696
    %v698 = vand.u32 %v697, 4294901760
    %699 = vmatmul.mubr.f32.gmra.mxu0 %v698
    %v700 = vpop.f32.mrf.mxu0
    %v701 = vadd.f32 %v556, %v700
    %v702 = vpop.f32.mrf.mxu0
    %v703 = vadd.f32 %v558, %v702
    %704 = vdwg.mxu0
    %705 = vmatprep.subr.mxu0 0.0
    %706 = vmatpush1.msra.mxu0 0.0
    %707 = vmatprep.subr.mxu0 0.0
    %708 = vmatpush1.msra.mxu0 0.0
    %709 = vmatprep.subr.mxu0 0.0
    %710 = vmatpush1.msra.mxu0 0.0
    %711 = vmatprep.subr.mxu0 0.0
    %712 = vmatpush1.msra.mxu0 0.0
    %713 = vmatprep.subr.mxu0 0.0
    %714 = vmatpush1.msra.mxu0 0.0
    %715 = vmatprep.subr.mxu0 0.0
    %716 = vmatpush1.msra.mxu0 0.0
    %717 = vmatprep.subr.mxu0 0.0
    %718 = vmatpush1.msra.mxu0 0.0
    %719 = vmatprep.subr.mxu0 0.0
    %720 = vmatpush1.msra.mxu0 0.0
    %721 = vmatprep.subr.mxu0 0.0
    %722 = vmatpush1.msra.mxu0 0.0
    %723 = vmatprep.subr.mxu0 0.0
    %724 = vmatpush1.msra.mxu0 0.0
    %725 = vmatprep.subr.mxu0 0.0
    %726 = vmatpush1.msra.mxu0 0.0
    %727 = vmatprep.subr.mxu0 0.0
    %728 = vmatpush1.msra.mxu0 0.0
    %v729 = vand.u32 %v55, 4294901760
    %v730 = vsub.f32 %v55, %v729
    %v731 = vand.u32 %v730, 4294901760
    %732 = vmatprep.subr.mxu0 %v731
    %v733 = vand.u32 %v54, 4294901760
    %v734 = vsub.f32 %v54, %v733
    %v735 = vand.u32 %v734, 4294901760
    %736 = vmatpush1.msra.mxu0 %v735
    %v737 = vand.u32 %v53, 4294901760
    %v738 = vsub.f32 %v53, %v737
    %v739 = vand.u32 %v738, 4294901760
    %740 = vmatprep.subr.mxu0 %v739
    %v741 = vand.u32 %v52, 4294901760
    %v742 = vsub.f32 %v52, %v741
    %v743 = vand.u32 %v742, 4294901760
    %744 = vmatpush1.msra.mxu0 %v743
    %v745 = vand.u32 %v51, 4294901760
    %v746 = vsub.f32 %v51, %v745
    %v747 = vand.u32 %v746, 4294901760
    %748 = vmatprep.subr.mxu0 %v747
    %v749 = vand.u32 %v50, 4294901760
    %v750 = vsub.f32 %v50, %v749
    %v751 = vand.u32 %v750, 4294901760
    %752 = vmatpush1.msra.mxu0 %v751
    %v753 = vand.u32 %v49, 4294901760
    %v754 = vsub.f32 %v49, %v753
    %v755 = vand.u32 %v754, 4294901760
    %756 = vmatprep.subr.mxu0 %v755
    %v757 = vand.u32 %v48, 4294901760
    %v758 = vsub.f32 %v48, %v757
    %v759 = vand.u32 %v758, 4294901760
    %760 = vmatpush1.msra.mxu0 %v759
    %761 = vmatprep.subr.mxu0 0.0
    %762 = vmatpush2.msra.mxu0 0.0
    %763 = vmatprep.subr.mxu0 0.0
    %764 = vmatpush2.msra.mxu0 0.0
    %765 = vmatprep.subr.mxu0 0.0
    %766 = vmatpush2.msra.mxu0 0.0
    %767 = vmatprep.subr.mxu0 0.0
    %768 = vmatpush2.msra.mxu0 0.0
    %769 = vmatprep.subr.mxu0 0.0
    %770 = vmatpush2.msra.mxu0 0.0
    %771 = vmatprep.subr.mxu0 0.0
    %772 = vmatpush2.msra.mxu0 0.0
    %773 = vmatprep.subr.mxu0 0.0
    %774 = vmatpush2.msra.mxu0 0.0
    %775 = vmatprep.subr.mxu0 0.0
    %776 = vmatpush2.msra.mxu0 0.0
    %777 = vmatprep.subr.mxu0 0.0
    %778 = vmatpush2.msra.mxu0 0.0
    %779 = vmatprep.subr.mxu0 0.0
    %780 = vmatpush2.msra.mxu0 0.0
    %781 = vmatprep.subr.mxu0 0.0
    %782 = vmatpush2.msra.mxu0 0.0
    %783 = vmatprep.subr.mxu0 0.0
    %784 = vmatpush2.msra.mxu0 0.0
    %785 = vmatprep.subr.mxu0 0.0
    %786 = vmatpush2.msra.mxu0 0.0
    %787 = vmatprep.subr.mxu0 0.0
    %788 = vmatpush2.msra.mxu0 0.0
    %789 = vmatprep.subr.mxu0 0.0
    %790 = vmatpush2.msra.mxu0 0.0
    %791 = vmatprep.subr.mxu0 0.0
    %792 = vmatpush2.msra.mxu0 0.0
    %793 = vmatprep.mubr.f32.mxu0 0.0
    %v794 = vand.u32 %v70, 4294901760
    %795 = vmatmul.mubr.f32.gmra.mxu0 %v794
    %v796 = vpop.f32.mrf.mxu0
    %v797 = vadd.f32 %v638, %v796
    %v798 = vpop.f32.mrf.mxu0
    %v799 = vadd.f32 %v640, %v798
    %800 = vmatprep.mubr.f32.mxu0 0.0
    %v801 = vand.u32 %v73, 4294901760
    %802 = vmatmul.mubr.f32.gmra.mxu0 %v801
    %v803 = vpop.f32.mrf.mxu0
    %v804 = vadd.f32 %v647, %v803
    %v805 = vpop.f32.mrf.mxu0
    %v806 = vadd.f32 %v649, %v805
    %807 = vmatprep.mubr.f32.mxu0 0.0
    %v808 = vand.u32 %v76, 4294901760
    %809 = vmatmul.mubr.f32.gmra.mxu0 %v808
    %v810 = vpop.f32.mrf.mxu0
    %v811 = vadd.f32 %v656, %v810
    %v812 = vpop.f32.mrf.mxu0
    %v813 = vadd.f32 %v658, %v812
    %814 = vmatprep.mubr.f32.mxu0 0.0
    %v815 = vand.u32 %v79, 4294901760
    %816 = vmatmul.mubr.f32.gmra.mxu0 %v815
    %v817 = vpop.f32.mrf.mxu0
    %v818 = vadd.f32 %v665, %v817
    %v819 = vpop.f32.mrf.mxu0
    %v820 = vadd.f32 %v667, %v819
    %821 = vmatprep.mubr.f32.mxu0 0.0
    %v822 = vand.u32 %v82, 4294901760
    %823 = vmatmul.mubr.f32.gmra.mxu0 %v822
    %v824 = vpop.f32.mrf.mxu0
    %v825 = vadd.f32 %v674, %v824
    %v826 = vpop.f32.mrf.mxu0
    %v827 = vadd.f32 %v676, %v826
    %828 = vmatprep.mubr.f32.mxu0 0.0
    %v829 = vand.u32 %v85, 4294901760
    %830 = vmatmul.mubr.f32.gmra.mxu0 %v829
    %v831 = vpop.f32.mrf.mxu0
    %v832 = vadd.f32 %v683, %v831
    %v833 = vpop.f32.mrf.mxu0
    %v834 = vadd.f32 %v685, %v833
    %835 = vmatprep.mubr.f32.mxu0 0.0
    %v836 = vand.u32 %v88, 4294901760
    %837 = vmatmul.mubr.f32.gmra.mxu0 %v836
    %v838 = vpop.f32.mrf.mxu0
    %v839 = vadd.f32 %v692, %v838
    %v840 = vpop.f32.mrf.mxu0
    %v841 = vadd.f32 %v694, %v840
    %842 = vmatprep.mubr.f32.mxu0 0.0
    %v843 = vand.u32 %v91, 4294901760
    %844 = vmatmul.mubr.f32.gmra.mxu0 %v843
    %v845 = vpop.f32.mrf.mxu0
    %v846 = vadd.f32 %v701, %v845
    %v847 = vpop.f32.mrf.mxu0
    %v848 = vadd.f32 %v703, %v847
    %849 = vdwg.mxu0
    %850 = vmatprep.subr.mxu0 0.0
    %851 = vmatpush1.msra.mxu0 0.0
    %852 = vmatprep.subr.mxu0 0.0
    %853 = vmatpush1.msra.mxu0 0.0
    %854 = vmatprep.subr.mxu0 0.0
    %855 = vmatpush1.msra.mxu0 0.0
    %856 = vmatprep.subr.mxu0 0.0
    %857 = vmatpush1.msra.mxu0 0.0
    %858 = vmatprep.subr.mxu0 0.0
    %859 = vmatpush1.msra.mxu0 0.0
    %860 = vmatprep.subr.mxu0 0.0
    %861 = vmatpush1.msra.mxu0 0.0
    %862 = vmatprep.subr.mxu0 0.0
    %863 = vmatpush1.msra.mxu0 0.0
    %864 = vmatprep.subr.mxu0 0.0
    %865 = vmatpush1.msra.mxu0 0.0
    %866 = vmatprep.subr.mxu0 0.0
    %867 = vmatpush1.msra.mxu0 0.0
    %868 = vmatprep.subr.mxu0 0.0
    %869 = vmatpush1.msra.mxu0 0.0
    %870 = vmatprep.subr.mxu0 0.0
    %871 = vmatpush1.msra.mxu0 0.0
    %872 = vmatprep.subr.mxu0 0.0
    %873 = vmatpush1.msra.mxu0 0.0
    %v874 = vand.u32 %v55, 4294901760
    %875 = vmatprep.subr.mxu0 %v874
    %v876 = vand.u32 %v54, 4294901760
    %877 = vmatpush1.msra.mxu0 %v876
    %v878 = vand.u32 %v53, 4294901760
    %879 = vmatprep.subr.mxu0 %v878
    %v880 = vand.u32 %v52, 4294901760
    %881 = vmatpush1.msra.mxu0 %v880
    %v882 = vand.u32 %v51, 4294901760
    %883 = vmatprep.subr.mxu0 %v882
    %v884 = vand.u32 %v50, 4294901760
    %885 = vmatpush1.msra.mxu0 %v884
    %v886 = vand.u32 %v49, 4294901760
    %887 = vmatprep.subr.mxu0 %v886
    %v888 = vand.u32 %v48, 4294901760
    %889 = vmatpush1.msra.mxu0 %v888
    %890 = vmatprep.subr.mxu0 0.0
    %891 = vmatpush2.msra.mxu0 0.0
    %892 = vmatprep.subr.mxu0 0.0
    %893 = vmatpush2.msra.mxu0 0.0
    %894 = vmatprep.subr.mxu0 0.0
    %895 = vmatpush2.msra.mxu0 0.0
    %896 = vmatprep.subr.mxu0 0.0
    %897 = vmatpush2.msra.mxu0 0.0
    %898 = vmatprep.subr.mxu0 0.0
    %899 = vmatpush2.msra.mxu0 0.0
    %900 = vmatprep.subr.mxu0 0.0
    %901 = vmatpush2.msra.mxu0 0.0
    %902 = vmatprep.subr.mxu0 0.0
    %903 = vmatpush2.msra.mxu0 0.0
    %904 = vmatprep.subr.mxu0 0.0
    %905 = vmatpush2.msra.mxu0 0.0
    %906 = vmatprep.subr.mxu0 0.0
    %907 = vmatpush2.msra.mxu0 0.0
    %908 = vmatprep.subr.mxu0 0.0
    %909 = vmatpush2.msra.mxu0 0.0
    %910 = vmatprep.subr.mxu0 0.0
    %911 = vmatpush2.msra.mxu0 0.0
    %912 = vmatprep.subr.mxu0 0.0
    %913 = vmatpush2.msra.mxu0 0.0
    %914 = vmatprep.subr.mxu0 0.0
    %915 = vmatpush2.msra.mxu0 0.0
    %916 = vmatprep.subr.mxu0 0.0
    %917 = vmatpush2.msra.mxu0 0.0
    %918 = vmatprep.subr.mxu0 0.0
    %919 = vmatpush2.msra.mxu0 0.0
    %920 = vmatprep.subr.mxu0 0.0
    %921 = vmatpush2.msra.mxu0 0.0
    %922 = vmatprep.mubr.f32.mxu0 0.0
    %v923 = vand.u32 %v70, 4294901760
    %924 = vmatmul.mubr.f32.gmra.mxu0 %v923
    %v925 = vpop.f32.mrf.mxu0
    %v926 = vadd.f32 %v797, %v925
    %v927 = vpop.f32.mrf.mxu0
    %v928 = vadd.f32 %v799, %v927
    %929 = vmatprep.mubr.f32.mxu0 0.0
    %v930 = vand.u32 %v73, 4294901760
    %931 = vmatmul.mubr.f32.gmra.mxu0 %v930
    %v932 = vpop.f32.mrf.mxu0
    %v933 = vadd.f32 %v804, %v932
    %v934 = vpop.f32.mrf.mxu0
    %v935 = vadd.f32 %v806, %v934
    %936 = vmatprep.mubr.f32.mxu0 0.0
    %v937 = vand.u32 %v76, 4294901760
    %938 = vmatmul.mubr.f32.gmra.mxu0 %v937
    %v939 = vpop.f32.mrf.mxu0
    %v940 = vadd.f32 %v811, %v939
    %v941 = vpop.f32.mrf.mxu0
    %v942 = vadd.f32 %v813, %v941
    %943 = vmatprep.mubr.f32.mxu0 0.0
    %v944 = vand.u32 %v79, 4294901760
    %945 = vmatmul.mubr.f32.gmra.mxu0 %v944
    %v946 = vpop.f32.mrf.mxu0
    %v947 = vadd.f32 %v818, %v946
    %v948 = vpop.f32.mrf.mxu0
    %v949 = vadd.f32 %v820, %v948
    %950 = vmatprep.mubr.f32.mxu0 0.0
    %v951 = vand.u32 %v82, 4294901760
    %952 = vmatmul.mubr.f32.gmra.mxu0 %v951
    %v953 = vpop.f32.mrf.mxu0
    %v954 = vadd.f32 %v825, %v953
    %v955 = vpop.f32.mrf.mxu0
    %v956 = vadd.f32 %v827, %v955
    %957 = vmatprep.mubr.f32.mxu0 0.0
    %v958 = vand.u32 %v85, 4294901760
    %959 = vmatmul.mubr.f32.gmra.mxu0 %v958
    %v960 = vpop.f32.mrf.mxu0
    %v961 = vadd.f32 %v832, %v960
    %v962 = vpop.f32.mrf.mxu0
    %v963 = vadd.f32 %v834, %v962
    %964 = vmatprep.mubr.f32.mxu0 0.0
    %v965 = vand.u32 %v88, 4294901760
    %966 = vmatmul.mubr.f32.gmra.mxu0 %v965
    %v967 = vpop.f32.mrf.mxu0
    %v968 = vadd.f32 %v839, %v967
    %v969 = vpop.f32.mrf.mxu0
    %v970 = vadd.f32 %v841, %v969
    %971 = vmatprep.mubr.f32.mxu0 0.0
    %v972 = vand.u32 %v91, 4294901760
    %973 = vmatmul.mubr.f32.gmra.mxu0 %v972
    %v974 = vpop.f32.mrf.mxu0
    %v975 = vadd.f32 %v846, %v974
    %v976 = vpop.f32.mrf.mxu0
    %v977 = vadd.f32 %v848, %v976
    %978 = vdwg.mxu0
    %v979 = vmax.f32 %v926, 0.0
    %v980 = vmax.f32 %v928, 0.0
    %v981 = vmax.f32 %v933, 0.0
    %v982 = vmax.f32 %v935, 0.0
    %v983 = vmax.f32 %v940, 0.0
    %v984 = vmax.f32 %v942, 0.0
    %v985 = vmax.f32 %v947, 0.0
    %v986 = vmax.f32 %v949, 0.0
    %v987 = vmax.f32 %v954, 0.0
    %v988 = vmax.f32 %v956, 0.0
    %v989 = vmax.f32 %v961, 0.0
    %v990 = vmax.f32 %v963, 0.0
    %v991 = vmax.f32 %v968, 0.0
    %v992 = vmax.f32 %v970, 0.0
    %v993 = vmax.f32 %v975, 0.0
    %v994 = vmax.f32 %v977, 0.0
    %v995 = vld [vmem:[%s3] sm:$0xff]
    %v996 = vld [vmem:[%s3 + $0x8] sm:$0xff]
    %v997 = vld [vmem:[%s3 + $0x10] sm:$0xff]
    %v998 = vld [vmem:[%s3 + $0x18] sm:$0xff]
    %v999 = vld [vmem:[%s3 + $0x20] sm:$0xff]
    %v1000 = vld [vmem:[%s3 + $0x28] sm:$0xff]
    %v1001 = vld [vmem:[%s3 + $0x30] sm:$0xff]
    %v1002 = vld [vmem:[%s3 + $0x38] sm:$0xff]
    %v1003 = vld [vmem:[%s3 + $0x40] sm:$0xff]
    %v1004 = vld [vmem:[%s3 + $0x48] sm:$0xff]
    %v1005 = vld [vmem:[%s3 + $0x50] sm:$0xff]
    %v1006 = vld [vmem:[%s3 + $0x58] sm:$0xff]
    %v1007 = vld [vmem:[%s3 + $0x60] sm:$0xff]
    %v1008 = vld [vmem:[%s3 + $0x68] sm:$0xff]
    %v1009 = vld [vmem:[%s3 + $0x70] sm:$0xff]
    %v1010 = vld [vmem:[%s3 + $0x78] sm:$0xff]
    %v1011 = vld [vmem:[%s3 + $0x80] sm:$0xff]
    %v1012 = vld [vmem:[%s3 + $0x88] sm:$0xff]
    %v1013 = vld [vmem:[%s3 + $0x90] sm:$0xff]
    %v1014 = vld [vmem:[%s3 + $0x98] sm:$0xff]
    %v1015 = vld [vmem:[%s3 + $0xa0] sm:$0xff]
    %v1016 = vld [vmem:[%s3 + $0xa8] sm:$0xff]
    %v1017 = vld [vmem:[%s3 + $0xb0] sm:$0xff]
    %v1018 = vld [vmem:[%s3 + $0xb8] sm:$0xff]
    %v1019 = vld [vmem:[%s3 + $0xc0] sm:$0xff]
    %v1020 = vld [vmem:[%s3 + $0xc8] sm:$0xff]
    %v1021 = vld [vmem:[%s3 + $0xd0] sm:$0xff]
    %v1022 = vld [vmem:[%s3 + $0xd8] sm:$0xff]
    %v1023 = vld [vmem:[%s3 + $0xe0] sm:$0xff]
    %v1024 = vld [vmem:[%s3 + $0xe8] sm:$0xff]
    %v1025 = vld [vmem:[%s3 + $0xf0] sm:$0xff]
    %v1026 = vld [vmem:[%s3 + $0xf8] sm:$0xff]
    %v1027 = vld [vmem:[%s3 + $0x100] sm:$0xff]
    %v1028 = vld [vmem:[%s3 + $0x108] sm:$0xff]
    %v1029 = vld [vmem:[%s3 + $0x110] sm:$0xff]
    %v1030 = vld [vmem:[%s3 + $0x118] sm:$0xff]
    %v1031 = vld [vmem:[%s3 + $0x120] sm:$0xff]
    %v1032 = vld [vmem:[%s3 + $0x128] sm:$0xff]
    %v1033 = vld [vmem:[%s3 + $0x130] sm:$0xff]
    %v1034 = vld [vmem:[%s3 + $0x138] sm:$0xff]
    %v1035 = vld [vmem:[%s4] sm:$0x3]
    %v1037 = vlaneseq
    %v1038 = vshrl.u32 %v1037, 7
    %v1039 = vsub.s32 0, %v1038
    %v1040 = vrot.slane %v1035, %v1039
    %v1041 = vlaneseq
    %v1042 = vshrl.u32 %v1041, 7
    %v1043 = vsub.s32 1, %v1042
    %v1044 = vrot.slane %v1035, %v1043
    %v1048 = vsel %vm68, %v980, 0
    %v1051 = vsel %vm68, %v982, 0
    %v1054 = vsel %vm68, %v984, 0
    %v1057 = vsel %vm68, %v986, 0
    %v1060 = vsel %vm68, %v988, 0
    %v1063 = vsel %vm68, %v990, 0
    %v1066 = vsel %vm68, %v992, 0
    %v1069 = vsel %vm68, %v994, 0
    %v1071 = vand.u32 %v1026, 4294901760
    %1072 = vmatprep.subr.mxu0 %v1071
    %v1073 = vand.u32 %v1025, 4294901760
    %1074 = vmatpush1.msra.mxu0 %v1073
    %v1075 = vand.u32 %v1024, 4294901760
    %1076 = vmatprep.subr.mxu0 %v1075
    %v1077 = vand.u32 %v1023, 4294901760
    %1078 = vmatpush1.msra.mxu0 %v1077
    %v1079 = vand.u32 %v1022, 4294901760
    %1080 = vmatprep.subr.mxu0 %v1079
    %v1081 = vand.u32 %v1021, 4294901760
    %1082 = vmatpush1.msra.mxu0 %v1081
    %v1083 = vand.u32 %v1020, 4294901760
    %1084 = vmatprep.subr.mxu0 %v1083
    %v1085 = vand.u32 %v1019, 4294901760
    %1086 = vmatpush1.msra.mxu0 %v1085
    %v1087 = vand.u32 %v1018, 4294901760
    %1088 = vmatprep.subr.mxu0 %v1087
    %v1089 = vand.u32 %v1017, 4294901760
    %1090 = vmatpush1.msra.mxu0 %v1089
    %v1091 = vand.u32 %v1016, 4294901760
    %1092 = vmatprep.subr.mxu0 %v1091
    %v1093 = vand.u32 %v1015, 4294901760
    %1094 = vmatpush1.msra.mxu0 %v1093
    %v1095 = vand.u32 %v1014, 4294901760
    %1096 = vmatprep.subr.mxu0 %v1095
    %v1097 = vand.u32 %v1013, 4294901760
    %1098 = vmatpush1.msra.mxu0 %v1097
    %v1099 = vand.u32 %v1012, 4294901760
    %1100 = vmatprep.subr.mxu0 %v1099
    %v1101 = vand.u32 %v1011, 4294901760
    %1102 = vmatpush1.msra.mxu0 %v1101
    %v1103 = vand.u32 %v1010, 4294901760
    %1104 = vmatprep.subr.mxu0 %v1103
    %v1105 = vand.u32 %v1009, 4294901760
    %1106 = vmatpush1.msra.mxu0 %v1105
    %v1107 = vand.u32 %v1008, 4294901760
    %1108 = vmatprep.subr.mxu0 %v1107
    %v1109 = vand.u32 %v1007, 4294901760
    %1110 = vmatpush1.msra.mxu0 %v1109
    %v1111 = vand.u32 %v1006, 4294901760
    %1112 = vmatprep.subr.mxu0 %v1111
    %v1113 = vand.u32 %v1005, 4294901760
    %1114 = vmatpush1.msra.mxu0 %v1113
    %v1115 = vand.u32 %v1004, 4294901760
    %1116 = vmatprep.subr.mxu0 %v1115
    %v1117 = vand.u32 %v1003, 4294901760
    %1118 = vmatpush1.msra.mxu0 %v1117
    %v1119 = vand.u32 %v1002, 4294901760
    %1120 = vmatprep.subr.mxu0 %v1119
    %v1121 = vand.u32 %v1001, 4294901760
    %1122 = vmatpush1.msra.mxu0 %v1121
    %v1123 = vand.u32 %v1000, 4294901760
    %1124 = vmatprep.subr.mxu0 %v1123
    %v1125 = vand.u32 %v999, 4294901760
    %1126 = vmatpush1.msra.mxu0 %v1125
    %v1127 = vand.u32 %v998, 4294901760
    %1128 = vmatprep.subr.mxu0 %v1127
    %v1129 = vand.u32 %v997, 4294901760
    %1130 = vmatpush1.msra.mxu0 %v1129
    %v1131 = vand.u32 %v996, 4294901760
    %1132 = vmatprep.subr.mxu0 %v1131
    %v1133 = vand.u32 %v995, 4294901760
    %1134 = vmatpush1.msra.mxu0 %v1133
    %1135 = vmatprep.subr.mxu0 0.0
    %1136 = vmatpush2.msra.mxu0 0.0
    %1137 = vmatprep.subr.mxu0 0.0
    %1138 = vmatpush2.msra.mxu0 0.0
    %1139 = vmatprep.subr.mxu0 0.0
    %1140 = vmatpush2.msra.mxu0 0.0
    %1141 = vmatprep.subr.mxu0 0.0
    %1142 = vmatpush2.msra.mxu0 0.0
    %1143 = vmatprep.subr.mxu0 0.0
    %1144 = vmatpush2.msra.mxu0 0.0
    %1145 = vmatprep.subr.mxu0 0.0
    %1146 = vmatpush2.msra.mxu0 0.0
    %1147 = vmatprep.subr.mxu0 0.0
    %1148 = vmatpush2.msra.mxu0 0.0
    %1149 = vmatprep.subr.mxu0 0.0
    %1150 = vmatpush2.msra.mxu0 0.0
    %1151 = vmatprep.subr.mxu0 0.0
    %1152 = vmatpush2.msra.mxu0 0.0
    %1153 = vmatprep.subr.mxu0 0.0
    %1154 = vmatpush2.msra.mxu0 0.0
    %1155 = vmatprep.subr.mxu0 0.0
    %1156 = vmatpush2.msra.mxu0 0.0
    %1157 = vmatprep.subr.mxu0 0.0
    %1158 = vmatpush2.msra.mxu0 0.0
    %v1159 = vand.u32 %v1034, 4294901760
    %1160 = vmatprep.subr.mxu0 %v1159
    %v1161 = vand.u32 %v1033, 4294901760
    %1162 = vmatpush2.msra.mxu0 %v1161
    %v1163 = vand.u32 %v1032, 4294901760
    %1164 = vmatprep.subr.mxu0 %v1163
    %v1165 = vand.u32 %v1031, 4294901760
    %1166 = vmatpush2.msra.mxu0 %v1165
    %v1167 = vand.u32 %v1030, 4294901760
    %1168 = vmatprep.subr.mxu0 %v1167
    %v1169 = vand.u32 %v1029, 4294901760
    %1170 = vmatpush2.msra.mxu0 %v1169
    %v1171 = vand.u32 %v1028, 4294901760
    %1172 = vmatprep.subr.mxu0 %v1171
    %v1173 = vand.u32 %v1027, 4294901760
    %1174 = vmatpush2.msra.mxu0 %v1173
    %v1175 = vand.u32 %v1048, 4294901760
    %v1176 = vsub.f32 %v1048, %v1175
    %v1177 = vand.u32 %v1176, 4294901760
    %v1178 = vsub.f32 %v1176, %v1177
    %v1179 = vand.u32 %v1178, 4294901760
    %1180 = vmatprep.mubr.f32.mxu0 %v1179
    %v1181 = vand.u32 %v979, 4294901760
    %v1182 = vsub.f32 %v979, %v1181
    %v1183 = vand.u32 %v1182, 4294901760
    %v1184 = vsub.f32 %v1182, %v1183
    %v1185 = vand.u32 %v1184, 4294901760
    %1186 = vmatmul.mubr.f32.gmra.mxu0 %v1185
    %v1187 = vpop.f32.mrf.mxu0
    %v1188 = vadd.f32 %v1040, %v1187
    %v1189 = vpop.f32.mrf.mxu0
    %v1190 = vadd.f32 %v1044, %v1189
    %v1191 = vand.u32 %v1051, 4294901760
    %v1192 = vsub.f32 %v1051, %v1191
    %v1193 = vand.u32 %v1192, 4294901760
    %v1194 = vsub.f32 %v1192, %v1193
    %v1195 = vand.u32 %v1194, 4294901760
    %1196 = vmatprep.mubr.f32.mxu0 %v1195
    %v1197 = vand.u32 %v981, 4294901760
    %v1198 = vsub.f32 %v981, %v1197
    %v1199 = vand.u32 %v1198, 4294901760
    %v1200 = vsub.f32 %v1198, %v1199
    %v1201 = vand.u32 %v1200, 4294901760
    %1202 = vmatmul.mubr.f32.gmra.mxu0 %v1201
    %v1203 = vpop.f32.mrf.mxu0
    %v1204 = vadd.f32 %v1040, %v1203
    %v1205 = vpop.f32.mrf.mxu0
    %v1206 = vadd.f32 %v1044, %v1205
    %v1207 = vand.u32 %v1054, 4294901760
    %v1208 = vsub.f32 %v1054, %v1207
    %v1209 = vand.u32 %v1208, 4294901760
    %v1210 = vsub.f32 %v1208, %v1209
    %v1211 = vand.u32 %v1210, 4294901760
    %1212 = vmatprep.mubr.f32.mxu0 %v1211
    %v1213 = vand.u32 %v983, 4294901760
    %v1214 = vsub.f32 %v983, %v1213
    %v1215 = vand.u32 %v1214, 4294901760
    %v1216 = vsub.f32 %v1214, %v1215
    %v1217 = vand.u32 %v1216, 4294901760
    %1218 = vmatmul.mubr.f32.gmra.mxu0 %v1217
    %v1219 = vpop.f32.mrf.mxu0
    %v1220 = vadd.f32 %v1040, %v1219
    %v1221 = vpop.f32.mrf.mxu0
    %v1222 = vadd.f32 %v1044, %v1221
    %v1223 = vand.u32 %v1057, 4294901760
    %v1224 = vsub.f32 %v1057, %v1223
    %v1225 = vand.u32 %v1224, 4294901760
    %v1226 = vsub.f32 %v1224, %v1225
    %v1227 = vand.u32 %v1226, 4294901760
    %1228 = vmatprep.mubr.f32.mxu0 %v1227
    %v1229 = vand.u32 %v985, 4294901760
    %v1230 = vsub.f32 %v985, %v1229
    %v1231 = vand.u32 %v1230, 4294901760
    %v1232 = vsub.f32 %v1230, %v1231
    %v1233 = vand.u32 %v1232, 4294901760
    %1234 = vmatmul.mubr.f32.gmra.mxu0 %v1233
    %v1235 = vpop.f32.mrf.mxu0
    %v1236 = vadd.f32 %v1040, %v1235
    %v1237 = vpop.f32.mrf.mxu0
    %v1238 = vadd.f32 %v1044, %v1237
    %v1239 = vand.u32 %v1060, 4294901760
    %v1240 = vsub.f32 %v1060, %v1239
    %v1241 = vand.u32 %v1240, 4294901760
    %v1242 = vsub.f32 %v1240, %v1241
    %v1243 = vand.u32 %v1242, 4294901760
    %1244 = vmatprep.mubr.f32.mxu0 %v1243
    %v1245 = vand.u32 %v987, 4294901760
    %v1246 = vsub.f32 %v987, %v1245
    %v1247 = vand.u32 %v1246, 4294901760
    %v1248 = vsub.f32 %v1246, %v1247
    %v1249 = vand.u32 %v1248, 4294901760
    %1250 = vmatmul.mubr.f32.gmra.mxu0 %v1249
    %v1251 = vpop.f32.mrf.mxu0
    %v1252 = vadd.f32 %v1040, %v1251
    %v1253 = vpop.f32.mrf.mxu0
    %v1254 = vadd.f32 %v1044, %v1253
    %v1255 = vand.u32 %v1063, 4294901760
    %v1256 = vsub.f32 %v1063, %v1255
    %v1257 = vand.u32 %v1256, 4294901760
    %v1258 = vsub.f32 %v1256, %v1257
    %v1259 = vand.u32 %v1258, 4294901760
    %1260 = vmatprep.mubr.f32.mxu0 %v1259
    %v1261 = vand.u32 %v989, 4294901760
    %v1262 = vsub.f32 %v989, %v1261
    %v1263 = vand.u32 %v1262, 4294901760
    %v1264 = vsub.f32 %v1262, %v1263
    %v1265 = vand.u32 %v1264, 4294901760
    %1266 = vmatmul.mubr.f32.gmra.mxu0 %v1265
    %v1267 = vpop.f32.mrf.mxu0
    %v1268 = vadd.f32 %v1040, %v1267
    %v1269 = vpop.f32.mrf.mxu0
    %v1270 = vadd.f32 %v1044, %v1269
    %v1271 = vand.u32 %v1066, 4294901760
    %v1272 = vsub.f32 %v1066, %v1271
    %v1273 = vand.u32 %v1272, 4294901760
    %v1274 = vsub.f32 %v1272, %v1273
    %v1275 = vand.u32 %v1274, 4294901760
    %1276 = vmatprep.mubr.f32.mxu0 %v1275
    %v1277 = vand.u32 %v991, 4294901760
    %v1278 = vsub.f32 %v991, %v1277
    %v1279 = vand.u32 %v1278, 4294901760
    %v1280 = vsub.f32 %v1278, %v1279
    %v1281 = vand.u32 %v1280, 4294901760
    %1282 = vmatmul.mubr.f32.gmra.mxu0 %v1281
    %v1283 = vpop.f32.mrf.mxu0
    %v1284 = vadd.f32 %v1040, %v1283
    %v1285 = vpop.f32.mrf.mxu0
    %v1286 = vadd.f32 %v1044, %v1285
    %v1287 = vand.u32 %v1069, 4294901760
    %v1288 = vsub.f32 %v1069, %v1287
    %v1289 = vand.u32 %v1288, 4294901760
    %v1290 = vsub.f32 %v1288, %v1289
    %v1291 = vand.u32 %v1290, 4294901760
    %1292 = vmatprep.mubr.f32.mxu0 %v1291
    %v1293 = vand.u32 %v993, 4294901760
    %v1294 = vsub.f32 %v993, %v1293
    %v1295 = vand.u32 %v1294, 4294901760
    %v1296 = vsub.f32 %v1294, %v1295
    %v1297 = vand.u32 %v1296, 4294901760
    %1298 = vmatmul.mubr.f32.gmra.mxu0 %v1297
    %v1299 = vpop.f32.mrf.mxu0
    %v1300 = vadd.f32 %v1040, %v1299
    %v1301 = vpop.f32.mrf.mxu0
    %v1302 = vadd.f32 %v1044, %v1301
    %1303 = vdwg.mxu0
    %v1304 = vand.u32 %v1026, 4294901760
    %v1305 = vsub.f32 %v1026, %v1304
    %v1306 = vand.u32 %v1305, 4294901760
    %v1307 = vsub.f32 %v1305, %v1306
    %v1308 = vand.u32 %v1307, 4294901760
    %1309 = vmatprep.subr.mxu0 %v1308
    %v1310 = vand.u32 %v1025, 4294901760
    %v1311 = vsub.f32 %v1025, %v1310
    %v1312 = vand.u32 %v1311, 4294901760
    %v1313 = vsub.f32 %v1311, %v1312
    %v1314 = vand.u32 %v1313, 4294901760
    %1315 = vmatpush1.msra.mxu0 %v1314
    %v1316 = vand.u32 %v1024, 4294901760
    %v1317 = vsub.f32 %v1024, %v1316
    %v1318 = vand.u32 %v1317, 4294901760
    %v1319 = vsub.f32 %v1317, %v1318
    %v1320 = vand.u32 %v1319, 4294901760
    %1321 = vmatprep.subr.mxu0 %v1320
    %v1322 = vand.u32 %v1023, 4294901760
    %v1323 = vsub.f32 %v1023, %v1322
    %v1324 = vand.u32 %v1323, 4294901760
    %v1325 = vsub.f32 %v1323, %v1324
    %v1326 = vand.u32 %v1325, 4294901760
    %1327 = vmatpush1.msra.mxu0 %v1326
    %v1328 = vand.u32 %v1022, 4294901760
    %v1329 = vsub.f32 %v1022, %v1328
    %v1330 = vand.u32 %v1329, 4294901760
    %v1331 = vsub.f32 %v1329, %v1330
    %v1332 = vand.u32 %v1331, 4294901760
    %1333 = vmatprep.subr.mxu0 %v1332
    %v1334 = vand.u32 %v1021, 4294901760
    %v1335 = vsub.f32 %v1021, %v1334
    %v1336 = vand.u32 %v1335, 4294901760
    %v1337 = vsub.f32 %v1335, %v1336
    %v1338 = vand.u32 %v1337, 4294901760
    %1339 = vmatpush1.msra.mxu0 %v1338
    %v1340 = vand.u32 %v1020, 4294901760
    %v1341 = vsub.f32 %v1020, %v1340
    %v1342 = vand.u32 %v1341, 4294901760
    %v1343 = vsub.f32 %v1341, %v1342
    %v1344 = vand.u32 %v1343, 4294901760
    %1345 = vmatprep.subr.mxu0 %v1344
    %v1346 = vand.u32 %v1019, 4294901760
    %v1347 = vsub.f32 %v1019, %v1346
    %v1348 = vand.u32 %v1347, 4294901760
    %v1349 = vsub.f32 %v1347, %v1348
    %v1350 = vand.u32 %v1349, 4294901760
    %1351 = vmatpush1.msra.mxu0 %v1350
    %v1352 = vand.u32 %v1018, 4294901760
    %v1353 = vsub.f32 %v1018, %v1352
    %v1354 = vand.u32 %v1353, 4294901760
    %v1355 = vsub.f32 %v1353, %v1354
    %v1356 = vand.u32 %v1355, 4294901760
    %1357 = vmatprep.subr.mxu0 %v1356
    %v1358 = vand.u32 %v1017, 4294901760
    %v1359 = vsub.f32 %v1017, %v1358
    %v1360 = vand.u32 %v1359, 4294901760
    %v1361 = vsub.f32 %v1359, %v1360
    %v1362 = vand.u32 %v1361, 4294901760
    %1363 = vmatpush1.msra.mxu0 %v1362
    %v1364 = vand.u32 %v1016, 4294901760
    %v1365 = vsub.f32 %v1016, %v1364
    %v1366 = vand.u32 %v1365, 4294901760
    %v1367 = vsub.f32 %v1365, %v1366
    %v1368 = vand.u32 %v1367, 4294901760
    %1369 = vmatprep.subr.mxu0 %v1368
    %v1370 = vand.u32 %v1015, 4294901760
    %v1371 = vsub.f32 %v1015, %v1370
    %v1372 = vand.u32 %v1371, 4294901760
    %v1373 = vsub.f32 %v1371, %v1372
    %v1374 = vand.u32 %v1373, 4294901760
    %1375 = vmatpush1.msra.mxu0 %v1374
    %v1376 = vand.u32 %v1014, 4294901760
    %v1377 = vsub.f32 %v1014, %v1376
    %v1378 = vand.u32 %v1377, 4294901760
    %v1379 = vsub.f32 %v1377, %v1378
    %v1380 = vand.u32 %v1379, 4294901760
    %1381 = vmatprep.subr.mxu0 %v1380
    %v1382 = vand.u32 %v1013, 4294901760
    %v1383 = vsub.f32 %v1013, %v1382
    %v1384 = vand.u32 %v1383, 4294901760
    %v1385 = vsub.f32 %v1383, %v1384
    %v1386 = vand.u32 %v1385, 4294901760
    %1387 = vmatpush1.msra.mxu0 %v1386
    %v1388 = vand.u32 %v1012, 4294901760
    %v1389 = vsub.f32 %v1012, %v1388
    %v1390 = vand.u32 %v1389, 4294901760
    %v1391 = vsub.f32 %v1389, %v1390
    %v1392 = vand.u32 %v1391, 4294901760
    %1393 = vmatprep.subr.mxu0 %v1392
    %v1394 = vand.u32 %v1011, 4294901760
    %v1395 = vsub.f32 %v1011, %v1394
    %v1396 = vand.u32 %v1395, 4294901760
    %v1397 = vsub.f32 %v1395, %v1396
    %v1398 = vand.u32 %v1397, 4294901760
    %1399 = vmatpush1.msra.mxu0 %v1398
    %v1400 = vand.u32 %v1010, 4294901760
    %v1401 = vsub.f32 %v1010, %v1400
    %v1402 = vand.u32 %v1401, 4294901760
    %v1403 = vsub.f32 %v1401, %v1402
    %v1404 = vand.u32 %v1403, 4294901760
    %1405 = vmatprep.subr.mxu0 %v1404
    %v1406 = vand.u32 %v1009, 4294901760
    %v1407 = vsub.f32 %v1009, %v1406
    %v1408 = vand.u32 %v1407, 4294901760
    %v1409 = vsub.f32 %v1407, %v1408
    %v1410 = vand.u32 %v1409, 4294901760
    %1411 = vmatpush1.msra.mxu0 %v1410
    %v1412 = vand.u32 %v1008, 4294901760
    %v1413 = vsub.f32 %v1008, %v1412
    %v1414 = vand.u32 %v1413, 4294901760
    %v1415 = vsub.f32 %v1413, %v1414
    %v1416 = vand.u32 %v1415, 4294901760
    %1417 = vmatprep.subr.mxu0 %v1416
    %v1418 = vand.u32 %v1007, 4294901760
    %v1419 = vsub.f32 %v1007, %v1418
    %v1420 = vand.u32 %v1419, 4294901760
    %v1421 = vsub.f32 %v1419, %v1420
    %v1422 = vand.u32 %v1421, 4294901760
    %1423 = vmatpush1.msra.mxu0 %v1422
    %v1424 = vand.u32 %v1006, 4294901760
    %v1425 = vsub.f32 %v1006, %v1424
    %v1426 = vand.u32 %v1425, 4294901760
    %v1427 = vsub.f32 %v1425, %v1426
    %v1428 = vand.u32 %v1427, 4294901760
    %1429 = vmatprep.subr.mxu0 %v1428
    %v1430 = vand.u32 %v1005, 4294901760
    %v1431 = vsub.f32 %v1005, %v1430
    %v1432 = vand.u32 %v1431, 4294901760
    %v1433 = vsub.f32 %v1431, %v1432
    %v1434 = vand.u32 %v1433, 4294901760
    %1435 = vmatpush1.msra.mxu0 %v1434
    %v1436 = vand.u32 %v1004, 4294901760
    %v1437 = vsub.f32 %v1004, %v1436
    %v1438 = vand.u32 %v1437, 4294901760
    %v1439 = vsub.f32 %v1437, %v1438
    %v1440 = vand.u32 %v1439, 4294901760
    %1441 = vmatprep.subr.mxu0 %v1440
    %v1442 = vand.u32 %v1003, 4294901760
    %v1443 = vsub.f32 %v1003, %v1442
    %v1444 = vand.u32 %v1443, 4294901760
    %v1445 = vsub.f32 %v1443, %v1444
    %v1446 = vand.u32 %v1445, 4294901760
    %1447 = vmatpush1.msra.mxu0 %v1446
    %v1448 = vand.u32 %v1002, 4294901760
    %v1449 = vsub.f32 %v1002, %v1448
    %v1450 = vand.u32 %v1449, 4294901760
    %v1451 = vsub.f32 %v1449, %v1450
    %v1452 = vand.u32 %v1451, 4294901760
    %1453 = vmatprep.subr.mxu0 %v1452
    %v1454 = vand.u32 %v1001, 4294901760
    %v1455 = vsub.f32 %v1001, %v1454
    %v1456 = vand.u32 %v1455, 4294901760
    %v1457 = vsub.f32 %v1455, %v1456
    %v1458 = vand.u32 %v1457, 4294901760
    %1459 = vmatpush1.msra.mxu0 %v1458
    %v1460 = vand.u32 %v1000, 4294901760
    %v1461 = vsub.f32 %v1000, %v1460
    %v1462 = vand.u32 %v1461, 4294901760
    %v1463 = vsub.f32 %v1461, %v1462
    %v1464 = vand.u32 %v1463, 4294901760
    %1465 = vmatprep.subr.mxu0 %v1464
    %v1466 = vand.u32 %v999, 4294901760
    %v1467 = vsub.f32 %v999, %v1466
    %v1468 = vand.u32 %v1467, 4294901760
    %v1469 = vsub.f32 %v1467, %v1468
    %v1470 = vand.u32 %v1469, 4294901760
    %1471 = vmatpush1.msra.mxu0 %v1470
    %v1472 = vand.u32 %v998, 4294901760
    %v1473 = vsub.f32 %v998, %v1472
    %v1474 = vand.u32 %v1473, 4294901760
    %v1475 = vsub.f32 %v1473, %v1474
    %v1476 = vand.u32 %v1475, 4294901760
    %1477 = vmatprep.subr.mxu0 %v1476
    %v1478 = vand.u32 %v997, 4294901760
    %v1479 = vsub.f32 %v997, %v1478
    %v1480 = vand.u32 %v1479, 4294901760
    %v1481 = vsub.f32 %v1479, %v1480
    %v1482 = vand.u32 %v1481, 4294901760
    %1483 = vmatpush1.msra.mxu0 %v1482
    %v1484 = vand.u32 %v996, 4294901760
    %v1485 = vsub.f32 %v996, %v1484
    %v1486 = vand.u32 %v1485, 4294901760
    %v1487 = vsub.f32 %v1485, %v1486
    %v1488 = vand.u32 %v1487, 4294901760
    %1489 = vmatprep.subr.mxu0 %v1488
    %v1490 = vand.u32 %v995, 4294901760
    %v1491 = vsub.f32 %v995, %v1490
    %v1492 = vand.u32 %v1491, 4294901760
    %v1493 = vsub.f32 %v1491, %v1492
    %v1494 = vand.u32 %v1493, 4294901760
    %1495 = vmatpush1.msra.mxu0 %v1494
    %1496 = vmatprep.subr.mxu0 0.0
    %1497 = vmatpush2.msra.mxu0 0.0
    %1498 = vmatprep.subr.mxu0 0.0
    %1499 = vmatpush2.msra.mxu0 0.0
    %1500 = vmatprep.subr.mxu0 0.0
    %1501 = vmatpush2.msra.mxu0 0.0
    %1502 = vmatprep.subr.mxu0 0.0
    %1503 = vmatpush2.msra.mxu0 0.0
    %1504 = vmatprep.subr.mxu0 0.0
    %1505 = vmatpush2.msra.mxu0 0.0
    %1506 = vmatprep.subr.mxu0 0.0
    %1507 = vmatpush2.msra.mxu0 0.0
    %1508 = vmatprep.subr.mxu0 0.0
    %1509 = vmatpush2.msra.mxu0 0.0
    %1510 = vmatprep.subr.mxu0 0.0
    %1511 = vmatpush2.msra.mxu0 0.0
    %1512 = vmatprep.subr.mxu0 0.0
    %1513 = vmatpush2.msra.mxu0 0.0
    %1514 = vmatprep.subr.mxu0 0.0
    %1515 = vmatpush2.msra.mxu0 0.0
    %1516 = vmatprep.subr.mxu0 0.0
    %1517 = vmatpush2.msra.mxu0 0.0
    %1518 = vmatprep.subr.mxu0 0.0
    %1519 = vmatpush2.msra.mxu0 0.0
    %v1520 = vand.u32 %v1034, 4294901760
    %v1521 = vsub.f32 %v1034, %v1520
    %v1522 = vand.u32 %v1521, 4294901760
    %v1523 = vsub.f32 %v1521, %v1522
    %v1524 = vand.u32 %v1523, 4294901760
    %1525 = vmatprep.subr.mxu0 %v1524
    %v1526 = vand.u32 %v1033, 4294901760
    %v1527 = vsub.f32 %v1033, %v1526
    %v1528 = vand.u32 %v1527, 4294901760
    %v1529 = vsub.f32 %v1527, %v1528
    %v1530 = vand.u32 %v1529, 4294901760
    %1531 = vmatpush2.msra.mxu0 %v1530
    %v1532 = vand.u32 %v1032, 4294901760
    %v1533 = vsub.f32 %v1032, %v1532
    %v1534 = vand.u32 %v1533, 4294901760
    %v1535 = vsub.f32 %v1533, %v1534
    %v1536 = vand.u32 %v1535, 4294901760
    %1537 = vmatprep.subr.mxu0 %v1536
    %v1538 = vand.u32 %v1031, 4294901760
    %v1539 = vsub.f32 %v1031, %v1538
    %v1540 = vand.u32 %v1539, 4294901760
    %v1541 = vsub.f32 %v1539, %v1540
    %v1542 = vand.u32 %v1541, 4294901760
    %1543 = vmatpush2.msra.mxu0 %v1542
    %v1544 = vand.u32 %v1030, 4294901760
    %v1545 = vsub.f32 %v1030, %v1544
    %v1546 = vand.u32 %v1545, 4294901760
    %v1547 = vsub.f32 %v1545, %v1546
    %v1548 = vand.u32 %v1547, 4294901760
    %1549 = vmatprep.subr.mxu0 %v1548
    %v1550 = vand.u32 %v1029, 4294901760
    %v1551 = vsub.f32 %v1029, %v1550
    %v1552 = vand.u32 %v1551, 4294901760
    %v1553 = vsub.f32 %v1551, %v1552
    %v1554 = vand.u32 %v1553, 4294901760
    %1555 = vmatpush2.msra.mxu0 %v1554
    %v1556 = vand.u32 %v1028, 4294901760
    %v1557 = vsub.f32 %v1028, %v1556
    %v1558 = vand.u32 %v1557, 4294901760
    %v1559 = vsub.f32 %v1557, %v1558
    %v1560 = vand.u32 %v1559, 4294901760
    %1561 = vmatprep.subr.mxu0 %v1560
    %v1562 = vand.u32 %v1027, 4294901760
    %v1563 = vsub.f32 %v1027, %v1562
    %v1564 = vand.u32 %v1563, 4294901760
    %v1565 = vsub.f32 %v1563, %v1564
    %v1566 = vand.u32 %v1565, 4294901760
    %1567 = vmatpush2.msra.mxu0 %v1566
    %v1568 = vand.u32 %v1048, 4294901760
    %1569 = vmatprep.mubr.f32.mxu0 %v1568
    %v1570 = vand.u32 %v979, 4294901760
    %1571 = vmatmul.mubr.f32.gmra.mxu0 %v1570
    %v1572 = vpop.f32.mrf.mxu0
    %v1573 = vadd.f32 %v1188, %v1572
    %v1574 = vpop.f32.mrf.mxu0
    %v1575 = vadd.f32 %v1190, %v1574
    %v1576 = vand.u32 %v1051, 4294901760
    %1577 = vmatprep.mubr.f32.mxu0 %v1576
    %v1578 = vand.u32 %v981, 4294901760
    %1579 = vmatmul.mubr.f32.gmra.mxu0 %v1578
    %v1580 = vpop.f32.mrf.mxu0
    %v1581 = vadd.f32 %v1204, %v1580
    %v1582 = vpop.f32.mrf.mxu0
    %v1583 = vadd.f32 %v1206, %v1582
    %v1584 = vand.u32 %v1054, 4294901760
    %1585 = vmatprep.mubr.f32.mxu0 %v1584
    %v1586 = vand.u32 %v983, 4294901760
    %1587 = vmatmul.mubr.f32.gmra.mxu0 %v1586
    %v1588 = vpop.f32.mrf.mxu0
    %v1589 = vadd.f32 %v1220, %v1588
    %v1590 = vpop.f32.mrf.mxu0
    %v1591 = vadd.f32 %v1222, %v1590
    %v1592 = vand.u32 %v1057, 4294901760
    %1593 = vmatprep.mubr.f32.mxu0 %v1592
    %v1594 = vand.u32 %v985, 4294901760
    %1595 = vmatmul.mubr.f32.gmra.mxu0 %v1594
    %v1596 = vpop.f32.mrf.mxu0
    %v1597 = vadd.f32 %v1236, %v1596
    %v1598 = vpop.f32.mrf.mxu0
    %v1599 = vadd.f32 %v1238, %v1598
    %v1600 = vand.u32 %v1060, 4294901760
    %1601 = vmatprep.mubr.f32.mxu0 %v1600
    %v1602 = vand.u32 %v987, 4294901760
    %1603 = vmatmul.mubr.f32.gmra.mxu0 %v1602
    %v1604 = vpop.f32.mrf.mxu0
    %v1605 = vadd.f32 %v1252, %v1604
    %v1606 = vpop.f32.mrf.mxu0
    %v1607 = vadd.f32 %v1254, %v1606
    %v1608 = vand.u32 %v1063, 4294901760
    %1609 = vmatprep.mubr.f32.mxu0 %v1608
    %v1610 = vand.u32 %v989, 4294901760
    %1611 = vmatmul.mubr.f32.gmra.mxu0 %v1610
    %v1612 = vpop.f32.mrf.mxu0
    %v1613 = vadd.f32 %v1268, %v1612
    %v1614 = vpop.f32.mrf.mxu0
    %v1615 = vadd.f32 %v1270, %v1614
    %v1616 = vand.u32 %v1066, 4294901760
    %1617 = vmatprep.mubr.f32.mxu0 %v1616
    %v1618 = vand.u32 %v991, 4294901760
    %1619 = vmatmul.mubr.f32.gmra.mxu0 %v1618
    %v1620 = vpop.f32.mrf.mxu0
    %v1621 = vadd.f32 %v1284, %v1620
    %v1622 = vpop.f32.mrf.mxu0
    %v1623 = vadd.f32 %v1286, %v1622
    %v1624 = vand.u32 %v1069, 4294901760
    %1625 = vmatprep.mubr.f32.mxu0 %v1624
    %v1626 = vand.u32 %v993, 4294901760
    %1627 = vmatmul.mubr.f32.gmra.mxu0 %v1626
    %v1628 = vpop.f32.mrf.mxu0
    %v1629 = vadd.f32 %v1300, %v1628
    %v1630 = vpop.f32.mrf.mxu0
    %v1631 = vadd.f32 %v1302, %v1630
    %1632 = vdwg.mxu0
    %v1633 = vand.u32 %v1026, 4294901760
    %v1634 = vsub.f32 %v1026, %v1633
    %1635 = vmatprep.subr.mxu0 %v1634
    %v1636 = vand.u32 %v1025, 4294901760
    %v1637 = vsub.f32 %v1025, %v1636
    %1638 = vmatpush1.msra.mxu0 %v1637
    %v1639 = vand.u32 %v1024, 4294901760
    %v1640 = vsub.f32 %v1024, %v1639
    %1641 = vmatprep.subr.mxu0 %v1640
    %v1642 = vand.u32 %v1023, 4294901760
    %v1643 = vsub.f32 %v1023, %v1642
    %1644 = vmatpush1.msra.mxu0 %v1643
    %v1645 = vand.u32 %v1022, 4294901760
    %v1646 = vsub.f32 %v1022, %v1645
    %1647 = vmatprep.subr.mxu0 %v1646
    %v1648 = vand.u32 %v1021, 4294901760
    %v1649 = vsub.f32 %v1021, %v1648
    %1650 = vmatpush1.msra.mxu0 %v1649
    %v1651 = vand.u32 %v1020, 4294901760
    %v1652 = vsub.f32 %v1020, %v1651
    %1653 = vmatprep.subr.mxu0 %v1652
    %v1654 = vand.u32 %v1019, 4294901760
    %v1655 = vsub.f32 %v1019, %v1654
    %1656 = vmatpush1.msra.mxu0 %v1655
    %v1657 = vand.u32 %v1018, 4294901760
    %v1658 = vsub.f32 %v1018, %v1657
    %1659 = vmatprep.subr.mxu0 %v1658
    %v1660 = vand.u32 %v1017, 4294901760
    %v1661 = vsub.f32 %v1017, %v1660
    %1662 = vmatpush1.msra.mxu0 %v1661
    %v1663 = vand.u32 %v1016, 4294901760
    %v1664 = vsub.f32 %v1016, %v1663
    %1665 = vmatprep.subr.mxu0 %v1664
    %v1666 = vand.u32 %v1015, 4294901760
    %v1667 = vsub.f32 %v1015, %v1666
    %1668 = vmatpush1.msra.mxu0 %v1667
    %v1669 = vand.u32 %v1014, 4294901760
    %v1670 = vsub.f32 %v1014, %v1669
    %1671 = vmatprep.subr.mxu0 %v1670
    %v1672 = vand.u32 %v1013, 4294901760
    %v1673 = vsub.f32 %v1013, %v1672
    %1674 = vmatpush1.msra.mxu0 %v1673
    %v1675 = vand.u32 %v1012, 4294901760
    %v1676 = vsub.f32 %v1012, %v1675
    %1677 = vmatprep.subr.mxu0 %v1676
    %v1678 = vand.u32 %v1011, 4294901760
    %v1679 = vsub.f32 %v1011, %v1678
    %1680 = vmatpush1.msra.mxu0 %v1679
    %v1681 = vand.u32 %v1010, 4294901760
    %v1682 = vsub.f32 %v1010, %v1681
    %1683 = vmatprep.subr.mxu0 %v1682
    %v1684 = vand.u32 %v1009, 4294901760
    %v1685 = vsub.f32 %v1009, %v1684
    %1686 = vmatpush1.msra.mxu0 %v1685
    %v1687 = vand.u32 %v1008, 4294901760
    %v1688 = vsub.f32 %v1008, %v1687
    %1689 = vmatprep.subr.mxu0 %v1688
    %v1690 = vand.u32 %v1007, 4294901760
    %v1691 = vsub.f32 %v1007, %v1690
    %1692 = vmatpush1.msra.mxu0 %v1691
    %v1693 = vand.u32 %v1006, 4294901760
    %v1694 = vsub.f32 %v1006, %v1693
    %1695 = vmatprep.subr.mxu0 %v1694
    %v1696 = vand.u32 %v1005, 4294901760
    %v1697 = vsub.f32 %v1005, %v1696
    %1698 = vmatpush1.msra.mxu0 %v1697
    %v1699 = vand.u32 %v1004, 4294901760
    %v1700 = vsub.f32 %v1004, %v1699
    %1701 = vmatprep.subr.mxu0 %v1700
    %v1702 = vand.u32 %v1003, 4294901760
    %v1703 = vsub.f32 %v1003, %v1702
    %1704 = vmatpush1.msra.mxu0 %v1703
    %v1705 = vand.u32 %v1002, 4294901760
    %v1706 = vsub.f32 %v1002, %v1705
    %1707 = vmatprep.subr.mxu0 %v1706
    %v1708 = vand.u32 %v1001, 4294901760
    %v1709 = vsub.f32 %v1001, %v1708
    %1710 = vmatpush1.msra.mxu0 %v1709
    %v1711 = vand.u32 %v1000, 4294901760
    %v1712 = vsub.f32 %v1000, %v1711
    %1713 = vmatprep.subr.mxu0 %v1712
    %v1714 = vand.u32 %v999, 4294901760
    %v1715 = vsub.f32 %v999, %v1714
    %1716 = vmatpush1.msra.mxu0 %v1715
    %v1717 = vand.u32 %v998, 4294901760
    %v1718 = vsub.f32 %v998, %v1717
    %1719 = vmatprep.subr.mxu0 %v1718
    %v1720 = vand.u32 %v997, 4294901760
    %v1721 = vsub.f32 %v997, %v1720
    %1722 = vmatpush1.msra.mxu0 %v1721
    %v1723 = vand.u32 %v996, 4294901760
    %v1724 = vsub.f32 %v996, %v1723
    %1725 = vmatprep.subr.mxu0 %v1724
    %v1726 = vand.u32 %v995, 4294901760
    %v1727 = vsub.f32 %v995, %v1726
    %1728 = vmatpush1.msra.mxu0 %v1727
    %1729 = vmatprep.subr.mxu0 0.0
    %1730 = vmatpush2.msra.mxu0 0.0
    %1731 = vmatprep.subr.mxu0 0.0
    %1732 = vmatpush2.msra.mxu0 0.0
    %1733 = vmatprep.subr.mxu0 0.0
    %1734 = vmatpush2.msra.mxu0 0.0
    %1735 = vmatprep.subr.mxu0 0.0
    %1736 = vmatpush2.msra.mxu0 0.0
    %1737 = vmatprep.subr.mxu0 0.0
    %1738 = vmatpush2.msra.mxu0 0.0
    %1739 = vmatprep.subr.mxu0 0.0
    %1740 = vmatpush2.msra.mxu0 0.0
    %1741 = vmatprep.subr.mxu0 0.0
    %1742 = vmatpush2.msra.mxu0 0.0
    %1743 = vmatprep.subr.mxu0 0.0
    %1744 = vmatpush2.msra.mxu0 0.0
    %1745 = vmatprep.subr.mxu0 0.0
    %1746 = vmatpush2.msra.mxu0 0.0
    %1747 = vmatprep.subr.mxu0 0.0
    %1748 = vmatpush2.msra.mxu0 0.0
    %1749 = vmatprep.subr.mxu0 0.0
    %1750 = vmatpush2.msra.mxu0 0.0
    %1751 = vmatprep.subr.mxu0 0.0
    %1752 = vmatpush2.msra.mxu0 0.0
    %v1753 = vand.u32 %v1034, 4294901760
    %v1754 = vsub.f32 %v1034, %v1753
    %1755 = vmatprep.subr.mxu0 %v1754
    %v1756 = vand.u32 %v1033, 4294901760
    %v1757 = vsub.f32 %v1033, %v1756
    %1758 = vmatpush2.msra.mxu0 %v1757
    %v1759 = vand.u32 %v1032, 4294901760
    %v1760 = vsub.f32 %v1032, %v1759
    %1761 = vmatprep.subr.mxu0 %v1760
    %v1762 = vand.u32 %v1031, 4294901760
    %v1763 = vsub.f32 %v1031, %v1762
    %1764 = vmatpush2.msra.mxu0 %v1763
    %v1765 = vand.u32 %v1030, 4294901760
    %v1766 = vsub.f32 %v1030, %v1765
    %1767 = vmatprep.subr.mxu0 %v1766
    %v1768 = vand.u32 %v1029, 4294901760
    %v1769 = vsub.f32 %v1029, %v1768
    %1770 = vmatpush2.msra.mxu0 %v1769
    %v1771 = vand.u32 %v1028, 4294901760
    %v1772 = vsub.f32 %v1028, %v1771
    %1773 = vmatprep.subr.mxu0 %v1772
    %v1774 = vand.u32 %v1027, 4294901760
    %v1775 = vsub.f32 %v1027, %v1774
    %1776 = vmatpush2.msra.mxu0 %v1775
    %v1777 = vand.u32 %v1048, 4294901760
    %v1778 = vsub.f32 %v1048, %v1777
    %1779 = vmatprep.mubr.f32.mxu0 %v1778
    %v1780 = vand.u32 %v979, 4294901760
    %v1781 = vsub.f32 %v979, %v1780
    %1782 = vmatmul.mubr.f32.gmra.mxu0 %v1781
    %v1783 = vpop.f32.mrf.mxu0
    %v1784 = vadd.f32 %v1573, %v1783
    %v1785 = vpop.f32.mrf.mxu0
    %v1786 = vadd.f32 %v1575, %v1785
    %v1787 = vand.u32 %v1051, 4294901760
    %v1788 = vsub.f32 %v1051, %v1787
    %1789 = vmatprep.mubr.f32.mxu0 %v1788
    %v1790 = vand.u32 %v981, 4294901760
    %v1791 = vsub.f32 %v981, %v1790
    %1792 = vmatmul.mubr.f32.gmra.mxu0 %v1791
    %v1793 = vpop.f32.mrf.mxu0
    %v1794 = vadd.f32 %v1581, %v1793
    %v1795 = vpop.f32.mrf.mxu0
    %v1796 = vadd.f32 %v1583, %v1795
    %v1797 = vand.u32 %v1054, 4294901760
    %v1798 = vsub.f32 %v1054, %v1797
    %1799 = vmatprep.mubr.f32.mxu0 %v1798
    %v1800 = vand.u32 %v983, 4294901760
    %v1801 = vsub.f32 %v983, %v1800
    %1802 = vmatmul.mubr.f32.gmra.mxu0 %v1801
    %v1803 = vpop.f32.mrf.mxu0
    %v1804 = vadd.f32 %v1589, %v1803
    %v1805 = vpop.f32.mrf.mxu0
    %v1806 = vadd.f32 %v1591, %v1805
    %v1807 = vand.u32 %v1057, 4294901760
    %v1808 = vsub.f32 %v1057, %v1807
    %1809 = vmatprep.mubr.f32.mxu0 %v1808
    %v1810 = vand.u32 %v985, 4294901760
    %v1811 = vsub.f32 %v985, %v1810
    %1812 = vmatmul.mubr.f32.gmra.mxu0 %v1811
    %v1813 = vpop.f32.mrf.mxu0
    %v1814 = vadd.f32 %v1597, %v1813
    %v1815 = vpop.f32.mrf.mxu0
    %v1816 = vadd.f32 %v1599, %v1815
    %v1817 = vand.u32 %v1060, 4294901760
    %v1818 = vsub.f32 %v1060, %v1817
    %1819 = vmatprep.mubr.f32.mxu0 %v1818
    %v1820 = vand.u32 %v987, 4294901760
    %v1821 = vsub.f32 %v987, %v1820
    %1822 = vmatmul.mubr.f32.gmra.mxu0 %v1821
    %v1823 = vpop.f32.mrf.mxu0
    %v1824 = vadd.f32 %v1605, %v1823
    %v1825 = vpop.f32.mrf.mxu0
    %v1826 = vadd.f32 %v1607, %v1825
    %v1827 = vand.u32 %v1063, 4294901760
    %v1828 = vsub.f32 %v1063, %v1827
    %1829 = vmatprep.mubr.f32.mxu0 %v1828
    %v1830 = vand.u32 %v989, 4294901760
    %v1831 = vsub.f32 %v989, %v1830
    %1832 = vmatmul.mubr.f32.gmra.mxu0 %v1831
    %v1833 = vpop.f32.mrf.mxu0
    %v1834 = vadd.f32 %v1613, %v1833
    %v1835 = vpop.f32.mrf.mxu0
    %v1836 = vadd.f32 %v1615, %v1835
    %v1837 = vand.u32 %v1066, 4294901760
    %v1838 = vsub.f32 %v1066, %v1837
    %1839 = vmatprep.mubr.f32.mxu0 %v1838
    %v1840 = vand.u32 %v991, 4294901760
    %v1841 = vsub.f32 %v991, %v1840
    %1842 = vmatmul.mubr.f32.gmra.mxu0 %v1841
    %v1843 = vpop.f32.mrf.mxu0
    %v1844 = vadd.f32 %v1621, %v1843
    %v1845 = vpop.f32.mrf.mxu0
    %v1846 = vadd.f32 %v1623, %v1845
    %v1847 = vand.u32 %v1069, 4294901760
    %v1848 = vsub.f32 %v1069, %v1847
    %1849 = vmatprep.mubr.f32.mxu0 %v1848
    %v1850 = vand.u32 %v993, 4294901760
    %v1851 = vsub.f32 %v993, %v1850
    %1852 = vmatmul.mubr.f32.gmra.mxu0 %v1851
    %v1853 = vpop.f32.mrf.mxu0
    %v1854 = vadd.f32 %v1629, %v1853
    %v1855 = vpop.f32.mrf.mxu0
    %v1856 = vadd.f32 %v1631, %v1855
    %1857 = vdwg.mxu0
    %v1858 = vand.u32 %v1026, 4294901760
    %1859 = vmatprep.subr.mxu0 %v1858
    %v1860 = vand.u32 %v1025, 4294901760
    %1861 = vmatpush1.msra.mxu0 %v1860
    %v1862 = vand.u32 %v1024, 4294901760
    %1863 = vmatprep.subr.mxu0 %v1862
    %v1864 = vand.u32 %v1023, 4294901760
    %1865 = vmatpush1.msra.mxu0 %v1864
    %v1866 = vand.u32 %v1022, 4294901760
    %1867 = vmatprep.subr.mxu0 %v1866
    %v1868 = vand.u32 %v1021, 4294901760
    %1869 = vmatpush1.msra.mxu0 %v1868
    %v1870 = vand.u32 %v1020, 4294901760
    %1871 = vmatprep.subr.mxu0 %v1870
    %v1872 = vand.u32 %v1019, 4294901760
    %1873 = vmatpush1.msra.mxu0 %v1872
    %v1874 = vand.u32 %v1018, 4294901760
    %1875 = vmatprep.subr.mxu0 %v1874
    %v1876 = vand.u32 %v1017, 4294901760
    %1877 = vmatpush1.msra.mxu0 %v1876
    %v1878 = vand.u32 %v1016, 4294901760
    %1879 = vmatprep.subr.mxu0 %v1878
    %v1880 = vand.u32 %v1015, 4294901760
    %1881 = vmatpush1.msra.mxu0 %v1880
    %v1882 = vand.u32 %v1014, 4294901760
    %1883 = vmatprep.subr.mxu0 %v1882
    %v1884 = vand.u32 %v1013, 4294901760
    %1885 = vmatpush1.msra.mxu0 %v1884
    %v1886 = vand.u32 %v1012, 4294901760
    %1887 = vmatprep.subr.mxu0 %v1886
    %v1888 = vand.u32 %v1011, 4294901760
    %1889 = vmatpush1.msra.mxu0 %v1888
    %v1890 = vand.u32 %v1010, 4294901760
    %1891 = vmatprep.subr.mxu0 %v1890
    %v1892 = vand.u32 %v1009, 4294901760
    %1893 = vmatpush1.msra.mxu0 %v1892
    %v1894 = vand.u32 %v1008, 4294901760
    %1895 = vmatprep.subr.mxu0 %v1894
    %v1896 = vand.u32 %v1007, 4294901760
    %1897 = vmatpush1.msra.mxu0 %v1896
    %v1898 = vand.u32 %v1006, 4294901760
    %1899 = vmatprep.subr.mxu0 %v1898
    %v1900 = vand.u32 %v1005, 4294901760
    %1901 = vmatpush1.msra.mxu0 %v1900
    %v1902 = vand.u32 %v1004, 4294901760
    %1903 = vmatprep.subr.mxu0 %v1902
    %v1904 = vand.u32 %v1003, 4294901760
    %1905 = vmatpush1.msra.mxu0 %v1904
    %v1906 = vand.u32 %v1002, 4294901760
    %1907 = vmatprep.subr.mxu0 %v1906
    %v1908 = vand.u32 %v1001, 4294901760
    %1909 = vmatpush1.msra.mxu0 %v1908
    %v1910 = vand.u32 %v1000, 4294901760
    %1911 = vmatprep.subr.mxu0 %v1910
    %v1912 = vand.u32 %v999, 4294901760
    %1913 = vmatpush1.msra.mxu0 %v1912
    %v1914 = vand.u32 %v998, 4294901760
    %1915 = vmatprep.subr.mxu0 %v1914
    %v1916 = vand.u32 %v997, 4294901760
    %1917 = vmatpush1.msra.mxu0 %v1916
    %v1918 = vand.u32 %v996, 4294901760
    %1919 = vmatprep.subr.mxu0 %v1918
    %v1920 = vand.u32 %v995, 4294901760
    %1921 = vmatpush1.msra.mxu0 %v1920
    %1922 = vmatprep.subr.mxu0 0.0
    %1923 = vmatpush2.msra.mxu0 0.0
    %1924 = vmatprep.subr.mxu0 0.0
    %1925 = vmatpush2.msra.mxu0 0.0
    %1926 = vmatprep.subr.mxu0 0.0
    %1927 = vmatpush2.msra.mxu0 0.0
    %1928 = vmatprep.subr.mxu0 0.0
    %1929 = vmatpush2.msra.mxu0 0.0
    %1930 = vmatprep.subr.mxu0 0.0
    %1931 = vmatpush2.msra.mxu0 0.0
    %1932 = vmatprep.subr.mxu0 0.0
    %1933 = vmatpush2.msra.mxu0 0.0
    %1934 = vmatprep.subr.mxu0 0.0
    %1935 = vmatpush2.msra.mxu0 0.0
    %1936 = vmatprep.subr.mxu0 0.0
    %1937 = vmatpush2.msra.mxu0 0.0
    %1938 = vmatprep.subr.mxu0 0.0
    %1939 = vmatpush2.msra.mxu0 0.0
    %1940 = vmatprep.subr.mxu0 0.0
    %1941 = vmatpush2.msra.mxu0 0.0
    %1942 = vmatprep.subr.mxu0 0.0
    %1943 = vmatpush2.msra.mxu0 0.0
    %1944 = vmatprep.subr.mxu0 0.0
    %1945 = vmatpush2.msra.mxu0 0.0
    %v1946 = vand.u32 %v1034, 4294901760
    %1947 = vmatprep.subr.mxu0 %v1946
    %v1948 = vand.u32 %v1033, 4294901760
    %1949 = vmatpush2.msra.mxu0 %v1948
    %v1950 = vand.u32 %v1032, 4294901760
    %1951 = vmatprep.subr.mxu0 %v1950
    %v1952 = vand.u32 %v1031, 4294901760
    %1953 = vmatpush2.msra.mxu0 %v1952
    %v1954 = vand.u32 %v1030, 4294901760
    %1955 = vmatprep.subr.mxu0 %v1954
    %v1956 = vand.u32 %v1029, 4294901760
    %1957 = vmatpush2.msra.mxu0 %v1956
    %v1958 = vand.u32 %v1028, 4294901760
    %1959 = vmatprep.subr.mxu0 %v1958
    %v1960 = vand.u32 %v1027, 4294901760
    %1961 = vmatpush2.msra.mxu0 %v1960
    %v1962 = vand.u32 %v1048, 4294901760
    %v1963 = vsub.f32 %v1048, %v1962
    %v1964 = vand.u32 %v1963, 4294901760
    %1965 = vmatprep.mubr.f32.mxu0 %v1964
    %v1966 = vand.u32 %v979, 4294901760
    %v1967 = vsub.f32 %v979, %v1966
    %v1968 = vand.u32 %v1967, 4294901760
    %1969 = vmatmul.mubr.f32.gmra.mxu0 %v1968
    %v1970 = vpop.f32.mrf.mxu0
    %v1971 = vadd.f32 %v1784, %v1970
    %v1972 = vpop.f32.mrf.mxu0
    %v1973 = vadd.f32 %v1786, %v1972
    %v1974 = vand.u32 %v1051, 4294901760
    %v1975 = vsub.f32 %v1051, %v1974
    %v1976 = vand.u32 %v1975, 4294901760
    %1977 = vmatprep.mubr.f32.mxu0 %v1976
    %v1978 = vand.u32 %v981, 4294901760
    %v1979 = vsub.f32 %v981, %v1978
    %v1980 = vand.u32 %v1979, 4294901760
    %1981 = vmatmul.mubr.f32.gmra.mxu0 %v1980
    %v1982 = vpop.f32.mrf.mxu0
    %v1983 = vadd.f32 %v1794, %v1982
    %v1984 = vpop.f32.mrf.mxu0
    %v1985 = vadd.f32 %v1796, %v1984
    %v1986 = vand.u32 %v1054, 4294901760
    %v1987 = vsub.f32 %v1054, %v1986
    %v1988 = vand.u32 %v1987, 4294901760
    %1989 = vmatprep.mubr.f32.mxu0 %v1988
    %v1990 = vand.u32 %v983, 4294901760
    %v1991 = vsub.f32 %v983, %v1990
    %v1992 = vand.u32 %v1991, 4294901760
    %1993 = vmatmul.mubr.f32.gmra.mxu0 %v1992
    %v1994 = vpop.f32.mrf.mxu0
    %v1995 = vadd.f32 %v1804, %v1994
    %v1996 = vpop.f32.mrf.mxu0
    %v1997 = vadd.f32 %v1806, %v1996
    %v1998 = vand.u32 %v1057, 4294901760
    %v1999 = vsub.f32 %v1057, %v1998
    %v2000 = vand.u32 %v1999, 4294901760
    %2001 = vmatprep.mubr.f32.mxu0 %v2000
    %v2002 = vand.u32 %v985, 4294901760
    %v2003 = vsub.f32 %v985, %v2002
    %v2004 = vand.u32 %v2003, 4294901760
    %2005 = vmatmul.mubr.f32.gmra.mxu0 %v2004
    %v2006 = vpop.f32.mrf.mxu0
    %v2007 = vadd.f32 %v1814, %v2006
    %v2008 = vpop.f32.mrf.mxu0
    %v2009 = vadd.f32 %v1816, %v2008
    %v2010 = vand.u32 %v1060, 4294901760
    %v2011 = vsub.f32 %v1060, %v2010
    %v2012 = vand.u32 %v2011, 4294901760
    %2013 = vmatprep.mubr.f32.mxu0 %v2012
    %v2014 = vand.u32 %v987, 4294901760
    %v2015 = vsub.f32 %v987, %v2014
    %v2016 = vand.u32 %v2015, 4294901760
    %2017 = vmatmul.mubr.f32.gmra.mxu0 %v2016
    %v2018 = vpop.f32.mrf.mxu0
    %v2019 = vadd.f32 %v1824, %v2018
    %v2020 = vpop.f32.mrf.mxu0
    %v2021 = vadd.f32 %v1826, %v2020
    %v2022 = vand.u32 %v1063, 4294901760
    %v2023 = vsub.f32 %v1063, %v2022
    %v2024 = vand.u32 %v2023, 4294901760
    %2025 = vmatprep.mubr.f32.mxu0 %v2024
    %v2026 = vand.u32 %v989, 4294901760
    %v2027 = vsub.f32 %v989, %v2026
    %v2028 = vand.u32 %v2027, 4294901760
    %2029 = vmatmul.mubr.f32.gmra.mxu0 %v2028
    %v2030 = vpop.f32.mrf.mxu0
    %v2031 = vadd.f32 %v1834, %v2030
    %v2032 = vpop.f32.mrf.mxu0
    %v2033 = vadd.f32 %v1836, %v2032
    %v2034 = vand.u32 %v1066, 4294901760
    %v2035 = vsub.f32 %v1066, %v2034
    %v2036 = vand.u32 %v2035, 4294901760
    %2037 = vmatprep.mubr.f32.mxu0 %v2036
    %v2038 = vand.u32 %v991, 4294901760
    %v2039 = vsub.f32 %v991, %v2038
    %v2040 = vand.u32 %v2039, 4294901760
    %2041 = vmatmul.mubr.f32.gmra.mxu0 %v2040
    %v2042 = vpop.f32.mrf.mxu0
    %v2043 = vadd.f32 %v1844, %v2042
    %v2044 = vpop.f32.mrf.mxu0
    %v2045 = vadd.f32 %v1846, %v2044
    %v2046 = vand.u32 %v1069, 4294901760
    %v2047 = vsub.f32 %v1069, %v2046
    %v2048 = vand.u32 %v2047, 4294901760
    %2049 = vmatprep.mubr.f32.mxu0 %v2048
    %v2050 = vand.u32 %v993, 4294901760
    %v2051 = vsub.f32 %v993, %v2050
    %v2052 = vand.u32 %v2051, 4294901760
    %2053 = vmatmul.mubr.f32.gmra.mxu0 %v2052
    %v2054 = vpop.f32.mrf.mxu0
    %v2055 = vadd.f32 %v1854, %v2054
    %v2056 = vpop.f32.mrf.mxu0
    %v2057 = vadd.f32 %v1856, %v2056
    %2058 = vdwg.mxu0
    %v2059 = vand.u32 %v1026, 4294901760
    %v2060 = vsub.f32 %v1026, %v2059
    %v2061 = vand.u32 %v2060, 4294901760
    %2062 = vmatprep.subr.mxu0 %v2061
    %v2063 = vand.u32 %v1025, 4294901760
    %v2064 = vsub.f32 %v1025, %v2063
    %v2065 = vand.u32 %v2064, 4294901760
    %2066 = vmatpush1.msra.mxu0 %v2065
    %v2067 = vand.u32 %v1024, 4294901760
    %v2068 = vsub.f32 %v1024, %v2067
    %v2069 = vand.u32 %v2068, 4294901760
    %2070 = vmatprep.subr.mxu0 %v2069
    %v2071 = vand.u32 %v1023, 4294901760
    %v2072 = vsub.f32 %v1023, %v2071
    %v2073 = vand.u32 %v2072, 4294901760
    %2074 = vmatpush1.msra.mxu0 %v2073
    %v2075 = vand.u32 %v1022, 4294901760
    %v2076 = vsub.f32 %v1022, %v2075
    %v2077 = vand.u32 %v2076, 4294901760
    %2078 = vmatprep.subr.mxu0 %v2077
    %v2079 = vand.u32 %v1021, 4294901760
    %v2080 = vsub.f32 %v1021, %v2079
    %v2081 = vand.u32 %v2080, 4294901760
    %2082 = vmatpush1.msra.mxu0 %v2081
    %v2083 = vand.u32 %v1020, 4294901760
    %v2084 = vsub.f32 %v1020, %v2083
    %v2085 = vand.u32 %v2084, 4294901760
    %2086 = vmatprep.subr.mxu0 %v2085
    %v2087 = vand.u32 %v1019, 4294901760
    %v2088 = vsub.f32 %v1019, %v2087
    %v2089 = vand.u32 %v2088, 4294901760
    %2090 = vmatpush1.msra.mxu0 %v2089
    %v2091 = vand.u32 %v1018, 4294901760
    %v2092 = vsub.f32 %v1018, %v2091
    %v2093 = vand.u32 %v2092, 4294901760
    %2094 = vmatprep.subr.mxu0 %v2093
    %v2095 = vand.u32 %v1017, 4294901760
    %v2096 = vsub.f32 %v1017, %v2095
    %v2097 = vand.u32 %v2096, 4294901760
    %2098 = vmatpush1.msra.mxu0 %v2097
    %v2099 = vand.u32 %v1016, 4294901760
    %v2100 = vsub.f32 %v1016, %v2099
    %v2101 = vand.u32 %v2100, 4294901760
    %2102 = vmatprep.subr.mxu0 %v2101
    %v2103 = vand.u32 %v1015, 4294901760
    %v2104 = vsub.f32 %v1015, %v2103
    %v2105 = vand.u32 %v2104, 4294901760
    %2106 = vmatpush1.msra.mxu0 %v2105
    %v2107 = vand.u32 %v1014, 4294901760
    %v2108 = vsub.f32 %v1014, %v2107
    %v2109 = vand.u32 %v2108, 4294901760
    %2110 = vmatprep.subr.mxu0 %v2109
    %v2111 = vand.u32 %v1013, 4294901760
    %v2112 = vsub.f32 %v1013, %v2111
    %v2113 = vand.u32 %v2112, 4294901760
    %2114 = vmatpush1.msra.mxu0 %v2113
    %v2115 = vand.u32 %v1012, 4294901760
    %v2116 = vsub.f32 %v1012, %v2115
    %v2117 = vand.u32 %v2116, 4294901760
    %2118 = vmatprep.subr.mxu0 %v2117
    %v2119 = vand.u32 %v1011, 4294901760
    %v2120 = vsub.f32 %v1011, %v2119
    %v2121 = vand.u32 %v2120, 4294901760
    %2122 = vmatpush1.msra.mxu0 %v2121
    %v2123 = vand.u32 %v1010, 4294901760
    %v2124 = vsub.f32 %v1010, %v2123
    %v2125 = vand.u32 %v2124, 4294901760
    %2126 = vmatprep.subr.mxu0 %v2125
    %v2127 = vand.u32 %v1009, 4294901760
    %v2128 = vsub.f32 %v1009, %v2127
    %v2129 = vand.u32 %v2128, 4294901760
    %2130 = vmatpush1.msra.mxu0 %v2129
    %v2131 = vand.u32 %v1008, 4294901760
    %v2132 = vsub.f32 %v1008, %v2131
    %v2133 = vand.u32 %v2132, 4294901760
    %2134 = vmatprep.subr.mxu0 %v2133
    %v2135 = vand.u32 %v1007, 4294901760
    %v2136 = vsub.f32 %v1007, %v2135
    %v2137 = vand.u32 %v2136, 4294901760
    %2138 = vmatpush1.msra.mxu0 %v2137
    %v2139 = vand.u32 %v1006, 4294901760
    %v2140 = vsub.f32 %v1006, %v2139
    %v2141 = vand.u32 %v2140, 4294901760
    %2142 = vmatprep.subr.mxu0 %v2141
    %v2143 = vand.u32 %v1005, 4294901760
    %v2144 = vsub.f32 %v1005, %v2143
    %v2145 = vand.u32 %v2144, 4294901760
    %2146 = vmatpush1.msra.mxu0 %v2145
    %v2147 = vand.u32 %v1004, 4294901760
    %v2148 = vsub.f32 %v1004, %v2147
    %v2149 = vand.u32 %v2148, 4294901760
    %2150 = vmatprep.subr.mxu0 %v2149
    %v2151 = vand.u32 %v1003, 4294901760
    %v2152 = vsub.f32 %v1003, %v2151
    %v2153 = vand.u32 %v2152, 4294901760
    %2154 = vmatpush1.msra.mxu0 %v2153
    %v2155 = vand.u32 %v1002, 4294901760
    %v2156 = vsub.f32 %v1002, %v2155
    %v2157 = vand.u32 %v2156, 4294901760
    %2158 = vmatprep.subr.mxu0 %v2157
    %v2159 = vand.u32 %v1001, 4294901760
    %v2160 = vsub.f32 %v1001, %v2159
    %v2161 = vand.u32 %v2160, 4294901760
    %2162 = vmatpush1.msra.mxu0 %v2161
    %v2163 = vand.u32 %v1000, 4294901760
    %v2164 = vsub.f32 %v1000, %v2163
    %v2165 = vand.u32 %v2164, 4294901760
    %2166 = vmatprep.subr.mxu0 %v2165
    %v2167 = vand.u32 %v999, 4294901760
    %v2168 = vsub.f32 %v999, %v2167
    %v2169 = vand.u32 %v2168, 4294901760
    %2170 = vmatpush1.msra.mxu0 %v2169
    %v2171 = vand.u32 %v998, 4294901760
    %v2172 = vsub.f32 %v998, %v2171
    %v2173 = vand.u32 %v2172, 4294901760
    %2174 = vmatprep.subr.mxu0 %v2173
    %v2175 = vand.u32 %v997, 4294901760
    %v2176 = vsub.f32 %v997, %v2175
    %v2177 = vand.u32 %v2176, 4294901760
    %2178 = vmatpush1.msra.mxu0 %v2177
    %v2179 = vand.u32 %v996, 4294901760
    %v2180 = vsub.f32 %v996, %v2179
    %v2181 = vand.u32 %v2180, 4294901760
    %2182 = vmatprep.subr.mxu0 %v2181
    %v2183 = vand.u32 %v995, 4294901760
    %v2184 = vsub.f32 %v995, %v2183
    %v2185 = vand.u32 %v2184, 4294901760
    %2186 = vmatpush1.msra.mxu0 %v2185
    %2187 = vmatprep.subr.mxu0 0.0
    %2188 = vmatpush2.msra.mxu0 0.0
    %2189 = vmatprep.subr.mxu0 0.0
    %2190 = vmatpush2.msra.mxu0 0.0
    %2191 = vmatprep.subr.mxu0 0.0
    %2192 = vmatpush2.msra.mxu0 0.0
    %2193 = vmatprep.subr.mxu0 0.0
    %2194 = vmatpush2.msra.mxu0 0.0
    %2195 = vmatprep.subr.mxu0 0.0
    %2196 = vmatpush2.msra.mxu0 0.0
    %2197 = vmatprep.subr.mxu0 0.0
    %2198 = vmatpush2.msra.mxu0 0.0
    %2199 = vmatprep.subr.mxu0 0.0
    %2200 = vmatpush2.msra.mxu0 0.0
    %2201 = vmatprep.subr.mxu0 0.0
    %2202 = vmatpush2.msra.mxu0 0.0
    %2203 = vmatprep.subr.mxu0 0.0
    %2204 = vmatpush2.msra.mxu0 0.0
    %2205 = vmatprep.subr.mxu0 0.0
    %2206 = vmatpush2.msra.mxu0 0.0
    %2207 = vmatprep.subr.mxu0 0.0
    %2208 = vmatpush2.msra.mxu0 0.0
    %2209 = vmatprep.subr.mxu0 0.0
    %2210 = vmatpush2.msra.mxu0 0.0
    %v2211 = vand.u32 %v1034, 4294901760
    %v2212 = vsub.f32 %v1034, %v2211
    %v2213 = vand.u32 %v2212, 4294901760
    %2214 = vmatprep.subr.mxu0 %v2213
    %v2215 = vand.u32 %v1033, 4294901760
    %v2216 = vsub.f32 %v1033, %v2215
    %v2217 = vand.u32 %v2216, 4294901760
    %2218 = vmatpush2.msra.mxu0 %v2217
    %v2219 = vand.u32 %v1032, 4294901760
    %v2220 = vsub.f32 %v1032, %v2219
    %v2221 = vand.u32 %v2220, 4294901760
    %2222 = vmatprep.subr.mxu0 %v2221
    %v2223 = vand.u32 %v1031, 4294901760
    %v2224 = vsub.f32 %v1031, %v2223
    %v2225 = vand.u32 %v2224, 4294901760
    %2226 = vmatpush2.msra.mxu0 %v2225
    %v2227 = vand.u32 %v1030, 4294901760
    %v2228 = vsub.f32 %v1030, %v2227
    %v2229 = vand.u32 %v2228, 4294901760
    %2230 = vmatprep.subr.mxu0 %v2229
    %v2231 = vand.u32 %v1029, 4294901760
    %v2232 = vsub.f32 %v1029, %v2231
    %v2233 = vand.u32 %v2232, 4294901760
    %2234 = vmatpush2.msra.mxu0 %v2233
    %v2235 = vand.u32 %v1028, 4294901760
    %v2236 = vsub.f32 %v1028, %v2235
    %v2237 = vand.u32 %v2236, 4294901760
    %2238 = vmatprep.subr.mxu0 %v2237
    %v2239 = vand.u32 %v1027, 4294901760
    %v2240 = vsub.f32 %v1027, %v2239
    %v2241 = vand.u32 %v2240, 4294901760
    %2242 = vmatpush2.msra.mxu0 %v2241
    %v2243 = vand.u32 %v1048, 4294901760
    %2244 = vmatprep.mubr.f32.mxu0 %v2243
    %v2245 = vand.u32 %v979, 4294901760
    %2246 = vmatmul.mubr.f32.gmra.mxu0 %v2245
    %v2247 = vpop.f32.mrf.mxu0
    %v2248 = vadd.f32 %v1971, %v2247
    %v2249 = vpop.f32.mrf.mxu0
    %v2250 = vadd.f32 %v1973, %v2249
    %v2251 = vand.u32 %v1051, 4294901760
    %2252 = vmatprep.mubr.f32.mxu0 %v2251
    %v2253 = vand.u32 %v981, 4294901760
    %2254 = vmatmul.mubr.f32.gmra.mxu0 %v2253
    %v2255 = vpop.f32.mrf.mxu0
    %v2256 = vadd.f32 %v1983, %v2255
    %v2257 = vpop.f32.mrf.mxu0
    %v2258 = vadd.f32 %v1985, %v2257
    %v2259 = vand.u32 %v1054, 4294901760
    %2260 = vmatprep.mubr.f32.mxu0 %v2259
    %v2261 = vand.u32 %v983, 4294901760
    %2262 = vmatmul.mubr.f32.gmra.mxu0 %v2261
    %v2263 = vpop.f32.mrf.mxu0
    %v2264 = vadd.f32 %v1995, %v2263
    %v2265 = vpop.f32.mrf.mxu0
    %v2266 = vadd.f32 %v1997, %v2265
    %v2267 = vand.u32 %v1057, 4294901760
    %2268 = vmatprep.mubr.f32.mxu0 %v2267
    %v2269 = vand.u32 %v985, 4294901760
    %2270 = vmatmul.mubr.f32.gmra.mxu0 %v2269
    %v2271 = vpop.f32.mrf.mxu0
    %v2272 = vadd.f32 %v2007, %v2271
    %v2273 = vpop.f32.mrf.mxu0
    %v2274 = vadd.f32 %v2009, %v2273
    %v2275 = vand.u32 %v1060, 4294901760
    %2276 = vmatprep.mubr.f32.mxu0 %v2275
    %v2277 = vand.u32 %v987, 4294901760
    %2278 = vmatmul.mubr.f32.gmra.mxu0 %v2277
    %v2279 = vpop.f32.mrf.mxu0
    %v2280 = vadd.f32 %v2019, %v2279
    %v2281 = vpop.f32.mrf.mxu0
    %v2282 = vadd.f32 %v2021, %v2281
    %v2283 = vand.u32 %v1063, 4294901760
    %2284 = vmatprep.mubr.f32.mxu0 %v2283
    %v2285 = vand.u32 %v989, 4294901760
    %2286 = vmatmul.mubr.f32.gmra.mxu0 %v2285
    %v2287 = vpop.f32.mrf.mxu0
    %v2288 = vadd.f32 %v2031, %v2287
    %v2289 = vpop.f32.mrf.mxu0
    %v2290 = vadd.f32 %v2033, %v2289
    %v2291 = vand.u32 %v1066, 4294901760
    %2292 = vmatprep.mubr.f32.mxu0 %v2291
    %v2293 = vand.u32 %v991, 4294901760
    %2294 = vmatmul.mubr.f32.gmra.mxu0 %v2293
    %v2295 = vpop.f32.mrf.mxu0
    %v2296 = vadd.f32 %v2043, %v2295
    %v2297 = vpop.f32.mrf.mxu0
    %v2298 = vadd.f32 %v2045, %v2297
    %v2299 = vand.u32 %v1069, 4294901760
    %2300 = vmatprep.mubr.f32.mxu0 %v2299
    %v2301 = vand.u32 %v993, 4294901760
    %2302 = vmatmul.mubr.f32.gmra.mxu0 %v2301
    %v2303 = vpop.f32.mrf.mxu0
    %v2304 = vadd.f32 %v2055, %v2303
    %v2305 = vpop.f32.mrf.mxu0
    %v2306 = vadd.f32 %v2057, %v2305
    %2307 = vdwg.mxu0
    %v2308 = vand.u32 %v1026, 4294901760
    %2309 = vmatprep.subr.mxu0 %v2308
    %v2310 = vand.u32 %v1025, 4294901760
    %2311 = vmatpush1.msra.mxu0 %v2310
    %v2312 = vand.u32 %v1024, 4294901760
    %2313 = vmatprep.subr.mxu0 %v2312
    %v2314 = vand.u32 %v1023, 4294901760
    %2315 = vmatpush1.msra.mxu0 %v2314
    %v2316 = vand.u32 %v1022, 4294901760
    %2317 = vmatprep.subr.mxu0 %v2316
    %v2318 = vand.u32 %v1021, 4294901760
    %2319 = vmatpush1.msra.mxu0 %v2318
    %v2320 = vand.u32 %v1020, 4294901760
    %2321 = vmatprep.subr.mxu0 %v2320
    %v2322 = vand.u32 %v1019, 4294901760
    %2323 = vmatpush1.msra.mxu0 %v2322
    %v2324 = vand.u32 %v1018, 4294901760
    %2325 = vmatprep.subr.mxu0 %v2324
    %v2326 = vand.u32 %v1017, 4294901760
    %2327 = vmatpush1.msra.mxu0 %v2326
    %v2328 = vand.u32 %v1016, 4294901760
    %2329 = vmatprep.subr.mxu0 %v2328
    %v2330 = vand.u32 %v1015, 4294901760
    %2331 = vmatpush1.msra.mxu0 %v2330
    %v2332 = vand.u32 %v1014, 4294901760
    %2333 = vmatprep.subr.mxu0 %v2332
    %v2334 = vand.u32 %v1013, 4294901760
    %2335 = vmatpush1.msra.mxu0 %v2334
    %v2336 = vand.u32 %v1012, 4294901760
    %2337 = vmatprep.subr.mxu0 %v2336
    %v2338 = vand.u32 %v1011, 4294901760
    %2339 = vmatpush1.msra.mxu0 %v2338
    %v2340 = vand.u32 %v1010, 4294901760
    %2341 = vmatprep.subr.mxu0 %v2340
    %v2342 = vand.u32 %v1009, 4294901760
    %2343 = vmatpush1.msra.mxu0 %v2342
    %v2344 = vand.u32 %v1008, 4294901760
    %2345 = vmatprep.subr.mxu0 %v2344
    %v2346 = vand.u32 %v1007, 4294901760
    %2347 = vmatpush1.msra.mxu0 %v2346
    %v2348 = vand.u32 %v1006, 4294901760
    %2349 = vmatprep.subr.mxu0 %v2348
    %v2350 = vand.u32 %v1005, 4294901760
    %2351 = vmatpush1.msra.mxu0 %v2350
    %v2352 = vand.u32 %v1004, 4294901760
    %2353 = vmatprep.subr.mxu0 %v2352
    %v2354 = vand.u32 %v1003, 4294901760
    %2355 = vmatpush1.msra.mxu0 %v2354
    %v2356 = vand.u32 %v1002, 4294901760
    %2357 = vmatprep.subr.mxu0 %v2356
    %v2358 = vand.u32 %v1001, 4294901760
    %2359 = vmatpush1.msra.mxu0 %v2358
    %v2360 = vand.u32 %v1000, 4294901760
    %2361 = vmatprep.subr.mxu0 %v2360
    %v2362 = vand.u32 %v999, 4294901760
    %2363 = vmatpush1.msra.mxu0 %v2362
    %v2364 = vand.u32 %v998, 4294901760
    %2365 = vmatprep.subr.mxu0 %v2364
    %v2366 = vand.u32 %v997, 4294901760
    %2367 = vmatpush1.msra.mxu0 %v2366
    %v2368 = vand.u32 %v996, 4294901760
    %2369 = vmatprep.subr.mxu0 %v2368
    %v2370 = vand.u32 %v995, 4294901760
    %2371 = vmatpush1.msra.mxu0 %v2370
    %2372 = vmatprep.subr.mxu0 0.0
    %2373 = vmatpush2.msra.mxu0 0.0
    %2374 = vmatprep.subr.mxu0 0.0
    %2375 = vmatpush2.msra.mxu0 0.0
    %2376 = vmatprep.subr.mxu0 0.0
    %2377 = vmatpush2.msra.mxu0 0.0
    %2378 = vmatprep.subr.mxu0 0.0
    %2379 = vmatpush2.msra.mxu0 0.0
    %2380 = vmatprep.subr.mxu0 0.0
    %2381 = vmatpush2.msra.mxu0 0.0
    %2382 = vmatprep.subr.mxu0 0.0
    %2383 = vmatpush2.msra.mxu0 0.0
    %2384 = vmatprep.subr.mxu0 0.0
    %2385 = vmatpush2.msra.mxu0 0.0
    %2386 = vmatprep.subr.mxu0 0.0
    %2387 = vmatpush2.msra.mxu0 0.0
    %2388 = vmatprep.subr.mxu0 0.0
    %2389 = vmatpush2.msra.mxu0 0.0
    %2390 = vmatprep.subr.mxu0 0.0
    %2391 = vmatpush2.msra.mxu0 0.0
    %2392 = vmatprep.subr.mxu0 0.0
    %2393 = vmatpush2.msra.mxu0 0.0
    %2394 = vmatprep.subr.mxu0 0.0
    %2395 = vmatpush2.msra.mxu0 0.0
    %v2396 = vand.u32 %v1034, 4294901760
    %2397 = vmatprep.subr.mxu0 %v2396
    %v2398 = vand.u32 %v1033, 4294901760
    %2399 = vmatpush2.msra.mxu0 %v2398
    %v2400 = vand.u32 %v1032, 4294901760
    %2401 = vmatprep.subr.mxu0 %v2400
    %v2402 = vand.u32 %v1031, 4294901760
    %2403 = vmatpush2.msra.mxu0 %v2402
    %v2404 = vand.u32 %v1030, 4294901760
    %2405 = vmatprep.subr.mxu0 %v2404
    %v2406 = vand.u32 %v1029, 4294901760
    %2407 = vmatpush2.msra.mxu0 %v2406
    %v2408 = vand.u32 %v1028, 4294901760
    %2409 = vmatprep.subr.mxu0 %v2408
    %v2410 = vand.u32 %v1027, 4294901760
    %2411 = vmatpush2.msra.mxu0 %v2410
    %v2412 = vand.u32 %v1048, 4294901760
    %2413 = vmatprep.mubr.f32.mxu0 %v2412
    %v2414 = vand.u32 %v979, 4294901760
    %2415 = vmatmul.mubr.f32.gmra.mxu0 %v2414
    %v2416 = vpop.f32.mrf.mxu0
    %v2417 = vadd.f32 %v2248, %v2416
    %v2418 = vpop.f32.mrf.mxu0
    %v2419 = vadd.f32 %v2250, %v2418
    %v2420 = vand.u32 %v1051, 4294901760
    %2421 = vmatprep.mubr.f32.mxu0 %v2420
    %v2422 = vand.u32 %v981, 4294901760
    %2423 = vmatmul.mubr.f32.gmra.mxu0 %v2422
    %v2424 = vpop.f32.mrf.mxu0
    %v2425 = vadd.f32 %v2256, %v2424
    %v2426 = vpop.f32.mrf.mxu0
    %v2427 = vadd.f32 %v2258, %v2426
    %v2428 = vand.u32 %v1054, 4294901760
    %2429 = vmatprep.mubr.f32.mxu0 %v2428
    %v2430 = vand.u32 %v983, 4294901760
    %2431 = vmatmul.mubr.f32.gmra.mxu0 %v2430
    %v2432 = vpop.f32.mrf.mxu0
    %v2433 = vadd.f32 %v2264, %v2432
    %v2434 = vpop.f32.mrf.mxu0
    %v2435 = vadd.f32 %v2266, %v2434
    %v2436 = vand.u32 %v1057, 4294901760
    %2437 = vmatprep.mubr.f32.mxu0 %v2436
    %v2438 = vand.u32 %v985, 4294901760
    %2439 = vmatmul.mubr.f32.gmra.mxu0 %v2438
    %v2440 = vpop.f32.mrf.mxu0
    %v2441 = vadd.f32 %v2272, %v2440
    %v2442 = vpop.f32.mrf.mxu0
    %v2443 = vadd.f32 %v2274, %v2442
    %v2444 = vand.u32 %v1060, 4294901760
    %2445 = vmatprep.mubr.f32.mxu0 %v2444
    %v2446 = vand.u32 %v987, 4294901760
    %2447 = vmatmul.mubr.f32.gmra.mxu0 %v2446
    %v2448 = vpop.f32.mrf.mxu0
    %v2449 = vadd.f32 %v2280, %v2448
    %v2450 = vpop.f32.mrf.mxu0
    %v2451 = vadd.f32 %v2282, %v2450
    %v2452 = vand.u32 %v1063, 4294901760
    %2453 = vmatprep.mubr.f32.mxu0 %v2452
    %v2454 = vand.u32 %v989, 4294901760
    %2455 = vmatmul.mubr.f32.gmra.mxu0 %v2454
    %v2456 = vpop.f32.mrf.mxu0
    %v2457 = vadd.f32 %v2288, %v2456
    %v2458 = vpop.f32.mrf.mxu0
    %v2459 = vadd.f32 %v2290, %v2458
    %v2460 = vand.u32 %v1066, 4294901760
    %2461 = vmatprep.mubr.f32.mxu0 %v2460
    %v2462 = vand.u32 %v991, 4294901760
    %2463 = vmatmul.mubr.f32.gmra.mxu0 %v2462
    %v2464 = vpop.f32.mrf.mxu0
    %v2465 = vadd.f32 %v2296, %v2464
    %v2466 = vpop.f32.mrf.mxu0
    %v2467 = vadd.f32 %v2298, %v2466
    %v2468 = vand.u32 %v1069, 4294901760
    %2469 = vmatprep.mubr.f32.mxu0 %v2468
    %v2470 = vand.u32 %v993, 4294901760
    %2471 = vmatmul.mubr.f32.gmra.mxu0 %v2470
    %v2472 = vpop.f32.mrf.mxu0
    %v2473 = vadd.f32 %v2304, %v2472
    %v2474 = vpop.f32.mrf.mxu0
    %v2475 = vadd.f32 %v2306, %v2474
    %2476 = vdwg.mxu0
    %v2477 = vmax.f32 %v2417, 0.0
    %v2478 = vmax.f32 %v2419, 0.0
    %v2479 = vmax.f32 %v2425, 0.0
    %v2480 = vmax.f32 %v2427, 0.0
    %v2481 = vmax.f32 %v2433, 0.0
    %v2482 = vmax.f32 %v2435, 0.0
    %v2483 = vmax.f32 %v2441, 0.0
    %v2484 = vmax.f32 %v2443, 0.0
    %v2485 = vmax.f32 %v2449, 0.0
    %v2486 = vmax.f32 %v2451, 0.0
    %v2487 = vmax.f32 %v2457, 0.0
    %v2488 = vmax.f32 %v2459, 0.0
    %v2489 = vmax.f32 %v2465, 0.0
    %v2490 = vmax.f32 %v2467, 0.0
    %v2491 = vmax.f32 %v2473, 0.0
    %v2492 = vmax.f32 %v2475, 0.0
    %v2493 = vld [vmem:[%s5] sm:$0xff]
    %v2494 = vld [vmem:[%s5 + $0x8] sm:$0xff]
    %v2495 = vld [vmem:[%s5 + $0x10] sm:$0xff]
    %v2496 = vld [vmem:[%s5 + $0x18] sm:$0xff]
    %v2497 = vld [vmem:[%s5 + $0x20] sm:$0xff]
    %v2498 = vld [vmem:[%s5 + $0x28] sm:$0xff]
    %v2499 = vld [vmem:[%s5 + $0x30] sm:$0xff]
    %v2500 = vld [vmem:[%s5 + $0x38] sm:$0xff]
    %v2501 = vld [vmem:[%s5 + $0x40] sm:$0xff]
    %v2502 = vld [vmem:[%s5 + $0x48] sm:$0xff]
    %v2503 = vld [vmem:[%s5 + $0x50] sm:$0xff]
    %v2504 = vld [vmem:[%s5 + $0x58] sm:$0xff]
    %v2505 = vld [vmem:[%s5 + $0x60] sm:$0xff]
    %v2506 = vld [vmem:[%s5 + $0x68] sm:$0xff]
    %v2507 = vld [vmem:[%s5 + $0x70] sm:$0xff]
    %v2508 = vld [vmem:[%s5 + $0x78] sm:$0xff]
    %v2509 = vld [vmem:[%s5 + $0x80] sm:$0xff]
    %v2510 = vld [vmem:[%s5 + $0x88] sm:$0xff]
    %v2511 = vld [vmem:[%s5 + $0x90] sm:$0xff]
    %v2512 = vld [vmem:[%s5 + $0x98] sm:$0xff]
    %v2513 = vld [vmem:[%s6] sm:$0x1]
    %v2515 = vlaneseq
    %v2516 = vshrl.u32 %v2515, 7
    %v2517 = vsub.s32 0, %v2516
    %v2518 = vrot.slane %v2513, %v2517
    %v2521 = vsel %vm68, %v2478, 0
    %v2524 = vsel %vm68, %v2480, 0
    %v2527 = vsel %vm68, %v2482, 0
    %v2530 = vsel %vm68, %v2484, 0
    %v2533 = vsel %vm68, %v2486, 0
    %v2536 = vsel %vm68, %v2488, 0
    %v2539 = vsel %vm68, %v2490, 0
    %v2542 = vsel %vm68, %v2492, 0
    %2544 = vmatprep.subr.mxu0 0.0
    %v2545 = vand.u32 %v2508, 4294901760
    %2546 = vmatpush1.msra.mxu0 %v2545
    %2547 = vmatprep.subr.mxu0 0.0
    %v2548 = vand.u32 %v2507, 4294901760
    %2549 = vmatpush1.msra.mxu0 %v2548
    %2550 = vmatprep.subr.mxu0 0.0
    %v2551 = vand.u32 %v2506, 4294901760
    %2552 = vmatpush1.msra.mxu0 %v2551
    %2553 = vmatprep.subr.mxu0 0.0
    %v2554 = vand.u32 %v2505, 4294901760
    %2555 = vmatpush1.msra.mxu0 %v2554
    %2556 = vmatprep.subr.mxu0 0.0
    %v2557 = vand.u32 %v2504, 4294901760
    %2558 = vmatpush1.msra.mxu0 %v2557
    %2559 = vmatprep.subr.mxu0 0.0
    %v2560 = vand.u32 %v2503, 4294901760
    %2561 = vmatpush1.msra.mxu0 %v2560
    %2562 = vmatprep.subr.mxu0 0.0
    %v2563 = vand.u32 %v2502, 4294901760
    %2564 = vmatpush1.msra.mxu0 %v2563
    %2565 = vmatprep.subr.mxu0 0.0
    %v2566 = vand.u32 %v2501, 4294901760
    %2567 = vmatpush1.msra.mxu0 %v2566
    %2568 = vmatprep.subr.mxu0 0.0
    %v2569 = vand.u32 %v2500, 4294901760
    %2570 = vmatpush1.msra.mxu0 %v2569
    %2571 = vmatprep.subr.mxu0 0.0
    %v2572 = vand.u32 %v2499, 4294901760
    %2573 = vmatpush1.msra.mxu0 %v2572
    %2574 = vmatprep.subr.mxu0 0.0
    %v2575 = vand.u32 %v2498, 4294901760
    %2576 = vmatpush1.msra.mxu0 %v2575
    %2577 = vmatprep.subr.mxu0 0.0
    %v2578 = vand.u32 %v2497, 4294901760
    %2579 = vmatpush1.msra.mxu0 %v2578
    %2580 = vmatprep.subr.mxu0 0.0
    %v2581 = vand.u32 %v2496, 4294901760
    %2582 = vmatpush1.msra.mxu0 %v2581
    %2583 = vmatprep.subr.mxu0 0.0
    %v2584 = vand.u32 %v2495, 4294901760
    %2585 = vmatpush1.msra.mxu0 %v2584
    %2586 = vmatprep.subr.mxu0 0.0
    %v2587 = vand.u32 %v2494, 4294901760
    %2588 = vmatpush1.msra.mxu0 %v2587
    %2589 = vmatprep.subr.mxu0 0.0
    %v2590 = vand.u32 %v2493, 4294901760
    %2591 = vmatpush1.msra.mxu0 %v2590
    %2592 = vmatprep.subr.mxu0 0.0
    %2593 = vmatpush2.msra.mxu0 0.0
    %2594 = vmatprep.subr.mxu0 0.0
    %2595 = vmatpush2.msra.mxu0 0.0
    %2596 = vmatprep.subr.mxu0 0.0
    %2597 = vmatpush2.msra.mxu0 0.0
    %2598 = vmatprep.subr.mxu0 0.0
    %2599 = vmatpush2.msra.mxu0 0.0
    %2600 = vmatprep.subr.mxu0 0.0
    %2601 = vmatpush2.msra.mxu0 0.0
    %2602 = vmatprep.subr.mxu0 0.0
    %2603 = vmatpush2.msra.mxu0 0.0
    %2604 = vmatprep.subr.mxu0 0.0
    %2605 = vmatpush2.msra.mxu0 0.0
    %2606 = vmatprep.subr.mxu0 0.0
    %2607 = vmatpush2.msra.mxu0 0.0
    %2608 = vmatprep.subr.mxu0 0.0
    %2609 = vmatpush2.msra.mxu0 0.0
    %2610 = vmatprep.subr.mxu0 0.0
    %2611 = vmatpush2.msra.mxu0 0.0
    %2612 = vmatprep.subr.mxu0 0.0
    %2613 = vmatpush2.msra.mxu0 0.0
    %2614 = vmatprep.subr.mxu0 0.0
    %2615 = vmatpush2.msra.mxu0 0.0
    %2616 = vmatprep.subr.mxu0 0.0
    %v2617 = vand.u32 %v2512, 4294901760
    %2618 = vmatpush2.msra.mxu0 %v2617
    %2619 = vmatprep.subr.mxu0 0.0
    %v2620 = vand.u32 %v2511, 4294901760
    %2621 = vmatpush2.msra.mxu0 %v2620
    %2622 = vmatprep.subr.mxu0 0.0
    %v2623 = vand.u32 %v2510, 4294901760
    %2624 = vmatpush2.msra.mxu0 %v2623
    %2625 = vmatprep.subr.mxu0 0.0
    %v2626 = vand.u32 %v2509, 4294901760
    %2627 = vmatpush2.msra.mxu0 %v2626
    %v2628 = vand.u32 %v2521, 4294901760
    %v2629 = vsub.f32 %v2521, %v2628
    %v2630 = vand.u32 %v2629, 4294901760
    %v2631 = vsub.f32 %v2629, %v2630
    %v2632 = vand.u32 %v2631, 4294901760
    %2633 = vmatprep.mubr.f32.mxu0 %v2632
    %v2634 = vand.u32 %v2477, 4294901760
    %v2635 = vsub.f32 %v2477, %v2634
    %v2636 = vand.u32 %v2635, 4294901760
    %v2637 = vsub.f32 %v2635, %v2636
    %v2638 = vand.u32 %v2637, 4294901760
    %2639 = vmatmul.mubr.f32.gmra.mxu0 %v2638
    %v2640 = vpop.f32.mrf.mxu0
    %v2641 = vadd.f32 %v2518, %v2640
    %v2642 = vpop.f32.mrf.mxu0
    %v2643 = vand.u32 %v2524, 4294901760
    %v2644 = vsub.f32 %v2524, %v2643
    %v2645 = vand.u32 %v2644, 4294901760
    %v2646 = vsub.f32 %v2644, %v2645
    %v2647 = vand.u32 %v2646, 4294901760
    %2648 = vmatprep.mubr.f32.mxu0 %v2647
    %v2649 = vand.u32 %v2479, 4294901760
    %v2650 = vsub.f32 %v2479, %v2649
    %v2651 = vand.u32 %v2650, 4294901760
    %v2652 = vsub.f32 %v2650, %v2651
    %v2653 = vand.u32 %v2652, 4294901760
    %2654 = vmatmul.mubr.f32.gmra.mxu0 %v2653
    %v2655 = vpop.f32.mrf.mxu0
    %v2656 = vadd.f32 %v2518, %v2655
    %v2657 = vpop.f32.mrf.mxu0
    %v2658 = vand.u32 %v2527, 4294901760
    %v2659 = vsub.f32 %v2527, %v2658
    %v2660 = vand.u32 %v2659, 4294901760
    %v2661 = vsub.f32 %v2659, %v2660
    %v2662 = vand.u32 %v2661, 4294901760
    %2663 = vmatprep.mubr.f32.mxu0 %v2662
    %v2664 = vand.u32 %v2481, 4294901760
    %v2665 = vsub.f32 %v2481, %v2664
    %v2666 = vand.u32 %v2665, 4294901760
    %v2667 = vsub.f32 %v2665, %v2666
    %v2668 = vand.u32 %v2667, 4294901760
    %2669 = vmatmul.mubr.f32.gmra.mxu0 %v2668
    %v2670 = vpop.f32.mrf.mxu0
    %v2671 = vadd.f32 %v2518, %v2670
    %v2672 = vpop.f32.mrf.mxu0
    %v2673 = vand.u32 %v2530, 4294901760
    %v2674 = vsub.f32 %v2530, %v2673
    %v2675 = vand.u32 %v2674, 4294901760
    %v2676 = vsub.f32 %v2674, %v2675
    %v2677 = vand.u32 %v2676, 4294901760
    %2678 = vmatprep.mubr.f32.mxu0 %v2677
    %v2679 = vand.u32 %v2483, 4294901760
    %v2680 = vsub.f32 %v2483, %v2679
    %v2681 = vand.u32 %v2680, 4294901760
    %v2682 = vsub.f32 %v2680, %v2681
    %v2683 = vand.u32 %v2682, 4294901760
    %2684 = vmatmul.mubr.f32.gmra.mxu0 %v2683
    %v2685 = vpop.f32.mrf.mxu0
    %v2686 = vadd.f32 %v2518, %v2685
    %v2687 = vpop.f32.mrf.mxu0
    %v2688 = vand.u32 %v2533, 4294901760
    %v2689 = vsub.f32 %v2533, %v2688
    %v2690 = vand.u32 %v2689, 4294901760
    %v2691 = vsub.f32 %v2689, %v2690
    %v2692 = vand.u32 %v2691, 4294901760
    %2693 = vmatprep.mubr.f32.mxu0 %v2692
    %v2694 = vand.u32 %v2485, 4294901760
    %v2695 = vsub.f32 %v2485, %v2694
    %v2696 = vand.u32 %v2695, 4294901760
    %v2697 = vsub.f32 %v2695, %v2696
    %v2698 = vand.u32 %v2697, 4294901760
    %2699 = vmatmul.mubr.f32.gmra.mxu0 %v2698
    %v2700 = vpop.f32.mrf.mxu0
    %v2701 = vadd.f32 %v2518, %v2700
    %v2702 = vpop.f32.mrf.mxu0
    %v2703 = vand.u32 %v2536, 4294901760
    %v2704 = vsub.f32 %v2536, %v2703
    %v2705 = vand.u32 %v2704, 4294901760
    %v2706 = vsub.f32 %v2704, %v2705
    %v2707 = vand.u32 %v2706, 4294901760
    %2708 = vmatprep.mubr.f32.mxu0 %v2707
    %v2709 = vand.u32 %v2487, 4294901760
    %v2710 = vsub.f32 %v2487, %v2709
    %v2711 = vand.u32 %v2710, 4294901760
    %v2712 = vsub.f32 %v2710, %v2711
    %v2713 = vand.u32 %v2712, 4294901760
    %2714 = vmatmul.mubr.f32.gmra.mxu0 %v2713
    %v2715 = vpop.f32.mrf.mxu0
    %v2716 = vadd.f32 %v2518, %v2715
    %v2717 = vpop.f32.mrf.mxu0
    %v2718 = vand.u32 %v2539, 4294901760
    %v2719 = vsub.f32 %v2539, %v2718
    %v2720 = vand.u32 %v2719, 4294901760
    %v2721 = vsub.f32 %v2719, %v2720
    %v2722 = vand.u32 %v2721, 4294901760
    %2723 = vmatprep.mubr.f32.mxu0 %v2722
    %v2724 = vand.u32 %v2489, 4294901760
    %v2725 = vsub.f32 %v2489, %v2724
    %v2726 = vand.u32 %v2725, 4294901760
    %v2727 = vsub.f32 %v2725, %v2726
    %v2728 = vand.u32 %v2727, 4294901760
    %2729 = vmatmul.mubr.f32.gmra.mxu0 %v2728
    %v2730 = vpop.f32.mrf.mxu0
    %v2731 = vadd.f32 %v2518, %v2730
    %v2732 = vpop.f32.mrf.mxu0
    %v2733 = vand.u32 %v2542, 4294901760
    %v2734 = vsub.f32 %v2542, %v2733
    %v2735 = vand.u32 %v2734, 4294901760
    %v2736 = vsub.f32 %v2734, %v2735
    %v2737 = vand.u32 %v2736, 4294901760
    %2738 = vmatprep.mubr.f32.mxu0 %v2737
    %v2739 = vand.u32 %v2491, 4294901760
    %v2740 = vsub.f32 %v2491, %v2739
    %v2741 = vand.u32 %v2740, 4294901760
    %v2742 = vsub.f32 %v2740, %v2741
    %v2743 = vand.u32 %v2742, 4294901760
    %2744 = vmatmul.mubr.f32.gmra.mxu0 %v2743
    %v2745 = vpop.f32.mrf.mxu0
    %v2746 = vadd.f32 %v2518, %v2745
    %v2747 = vpop.f32.mrf.mxu0
    %2748 = vdwg.mxu0
    %2749 = vmatprep.subr.mxu0 0.0
    %v2750 = vand.u32 %v2508, 4294901760
    %v2751 = vsub.f32 %v2508, %v2750
    %v2752 = vand.u32 %v2751, 4294901760
    %v2753 = vsub.f32 %v2751, %v2752
    %v2754 = vand.u32 %v2753, 4294901760
    %2755 = vmatpush1.msra.mxu0 %v2754
    %2756 = vmatprep.subr.mxu0 0.0
    %v2757 = vand.u32 %v2507, 4294901760
    %v2758 = vsub.f32 %v2507, %v2757
    %v2759 = vand.u32 %v2758, 4294901760
    %v2760 = vsub.f32 %v2758, %v2759
    %v2761 = vand.u32 %v2760, 4294901760
    %2762 = vmatpush1.msra.mxu0 %v2761
    %2763 = vmatprep.subr.mxu0 0.0
    %v2764 = vand.u32 %v2506, 4294901760
    %v2765 = vsub.f32 %v2506, %v2764
    %v2766 = vand.u32 %v2765, 4294901760
    %v2767 = vsub.f32 %v2765, %v2766
    %v2768 = vand.u32 %v2767, 4294901760
    %2769 = vmatpush1.msra.mxu0 %v2768
    %2770 = vmatprep.subr.mxu0 0.0
    %v2771 = vand.u32 %v2505, 4294901760
    %v2772 = vsub.f32 %v2505, %v2771
    %v2773 = vand.u32 %v2772, 4294901760
    %v2774 = vsub.f32 %v2772, %v2773
    %v2775 = vand.u32 %v2774, 4294901760
    %2776 = vmatpush1.msra.mxu0 %v2775
    %2777 = vmatprep.subr.mxu0 0.0
    %v2778 = vand.u32 %v2504, 4294901760
    %v2779 = vsub.f32 %v2504, %v2778
    %v2780 = vand.u32 %v2779, 4294901760
    %v2781 = vsub.f32 %v2779, %v2780
    %v2782 = vand.u32 %v2781, 4294901760
    %2783 = vmatpush1.msra.mxu0 %v2782
    %2784 = vmatprep.subr.mxu0 0.0
    %v2785 = vand.u32 %v2503, 4294901760
    %v2786 = vsub.f32 %v2503, %v2785
    %v2787 = vand.u32 %v2786, 4294901760
    %v2788 = vsub.f32 %v2786, %v2787
    %v2789 = vand.u32 %v2788, 4294901760
    %2790 = vmatpush1.msra.mxu0 %v2789
    %2791 = vmatprep.subr.mxu0 0.0
    %v2792 = vand.u32 %v2502, 4294901760
    %v2793 = vsub.f32 %v2502, %v2792
    %v2794 = vand.u32 %v2793, 4294901760
    %v2795 = vsub.f32 %v2793, %v2794
    %v2796 = vand.u32 %v2795, 4294901760
    %2797 = vmatpush1.msra.mxu0 %v2796
    %2798 = vmatprep.subr.mxu0 0.0
    %v2799 = vand.u32 %v2501, 4294901760
    %v2800 = vsub.f32 %v2501, %v2799
    %v2801 = vand.u32 %v2800, 4294901760
    %v2802 = vsub.f32 %v2800, %v2801
    %v2803 = vand.u32 %v2802, 4294901760
    %2804 = vmatpush1.msra.mxu0 %v2803
    %2805 = vmatprep.subr.mxu0 0.0
    %v2806 = vand.u32 %v2500, 4294901760
    %v2807 = vsub.f32 %v2500, %v2806
    %v2808 = vand.u32 %v2807, 4294901760
    %v2809 = vsub.f32 %v2807, %v2808
    %v2810 = vand.u32 %v2809, 4294901760
    %2811 = vmatpush1.msra.mxu0 %v2810
    %2812 = vmatprep.subr.mxu0 0.0
    %v2813 = vand.u32 %v2499, 4294901760
    %v2814 = vsub.f32 %v2499, %v2813
    %v2815 = vand.u32 %v2814, 4294901760
    %v2816 = vsub.f32 %v2814, %v2815
    %v2817 = vand.u32 %v2816, 4294901760
    %2818 = vmatpush1.msra.mxu0 %v2817
    %2819 = vmatprep.subr.mxu0 0.0
    %v2820 = vand.u32 %v2498, 4294901760
    %v2821 = vsub.f32 %v2498, %v2820
    %v2822 = vand.u32 %v2821, 4294901760
    %v2823 = vsub.f32 %v2821, %v2822
    %v2824 = vand.u32 %v2823, 4294901760
    %2825 = vmatpush1.msra.mxu0 %v2824
    %2826 = vmatprep.subr.mxu0 0.0
    %v2827 = vand.u32 %v2497, 4294901760
    %v2828 = vsub.f32 %v2497, %v2827
    %v2829 = vand.u32 %v2828, 4294901760
    %v2830 = vsub.f32 %v2828, %v2829
    %v2831 = vand.u32 %v2830, 4294901760
    %2832 = vmatpush1.msra.mxu0 %v2831
    %2833 = vmatprep.subr.mxu0 0.0
    %v2834 = vand.u32 %v2496, 4294901760
    %v2835 = vsub.f32 %v2496, %v2834
    %v2836 = vand.u32 %v2835, 4294901760
    %v2837 = vsub.f32 %v2835, %v2836
    %v2838 = vand.u32 %v2837, 4294901760
    %2839 = vmatpush1.msra.mxu0 %v2838
    %2840 = vmatprep.subr.mxu0 0.0
    %v2841 = vand.u32 %v2495, 4294901760
    %v2842 = vsub.f32 %v2495, %v2841
    %v2843 = vand.u32 %v2842, 4294901760
    %v2844 = vsub.f32 %v2842, %v2843
    %v2845 = vand.u32 %v2844, 4294901760
    %2846 = vmatpush1.msra.mxu0 %v2845
    %2847 = vmatprep.subr.mxu0 0.0
    %v2848 = vand.u32 %v2494, 4294901760
    %v2849 = vsub.f32 %v2494, %v2848
    %v2850 = vand.u32 %v2849, 4294901760
    %v2851 = vsub.f32 %v2849, %v2850
    %v2852 = vand.u32 %v2851, 4294901760
    %2853 = vmatpush1.msra.mxu0 %v2852
    %2854 = vmatprep.subr.mxu0 0.0
    %v2855 = vand.u32 %v2493, 4294901760
    %v2856 = vsub.f32 %v2493, %v2855
    %v2857 = vand.u32 %v2856, 4294901760
    %v2858 = vsub.f32 %v2856, %v2857
    %v2859 = vand.u32 %v2858, 4294901760
    %2860 = vmatpush1.msra.mxu0 %v2859
    %2861 = vmatprep.subr.mxu0 0.0
    %2862 = vmatpush2.msra.mxu0 0.0
    %2863 = vmatprep.subr.mxu0 0.0
    %2864 = vmatpush2.msra.mxu0 0.0
    %2865 = vmatprep.subr.mxu0 0.0
    %2866 = vmatpush2.msra.mxu0 0.0
    %2867 = vmatprep.subr.mxu0 0.0
    %2868 = vmatpush2.msra.mxu0 0.0
    %2869 = vmatprep.subr.mxu0 0.0
    %2870 = vmatpush2.msra.mxu0 0.0
    %2871 = vmatprep.subr.mxu0 0.0
    %2872 = vmatpush2.msra.mxu0 0.0
    %2873 = vmatprep.subr.mxu0 0.0
    %2874 = vmatpush2.msra.mxu0 0.0
    %2875 = vmatprep.subr.mxu0 0.0
    %2876 = vmatpush2.msra.mxu0 0.0
    %2877 = vmatprep.subr.mxu0 0.0
    %2878 = vmatpush2.msra.mxu0 0.0
    %2879 = vmatprep.subr.mxu0 0.0
    %2880 = vmatpush2.msra.mxu0 0.0
    %2881 = vmatprep.subr.mxu0 0.0
    %2882 = vmatpush2.msra.mxu0 0.0
    %2883 = vmatprep.subr.mxu0 0.0
    %2884 = vmatpush2.msra.mxu0 0.0
    %2885 = vmatprep.subr.mxu0 0.0
    %v2886 = vand.u32 %v2512, 4294901760
    %v2887 = vsub.f32 %v2512, %v2886
    %v2888 = vand.u32 %v2887, 4294901760
    %v2889 = vsub.f32 %v2887, %v2888
    %v2890 = vand.u32 %v2889, 4294901760
    %2891 = vmatpush2.msra.mxu0 %v2890
    %2892 = vmatprep.subr.mxu0 0.0
    %v2893 = vand.u32 %v2511, 4294901760
    %v2894 = vsub.f32 %v2511, %v2893
    %v2895 = vand.u32 %v2894, 4294901760
    %v2896 = vsub.f32 %v2894, %v2895
    %v2897 = vand.u32 %v2896, 4294901760
    %2898 = vmatpush2.msra.mxu0 %v2897
    %2899 = vmatprep.subr.mxu0 0.0
    %v2900 = vand.u32 %v2510, 4294901760
    %v2901 = vsub.f32 %v2510, %v2900
    %v2902 = vand.u32 %v2901, 4294901760
    %v2903 = vsub.f32 %v2901, %v2902
    %v2904 = vand.u32 %v2903, 4294901760
    %2905 = vmatpush2.msra.mxu0 %v2904
    %2906 = vmatprep.subr.mxu0 0.0
    %v2907 = vand.u32 %v2509, 4294901760
    %v2908 = vsub.f32 %v2509, %v2907
    %v2909 = vand.u32 %v2908, 4294901760
    %v2910 = vsub.f32 %v2908, %v2909
    %v2911 = vand.u32 %v2910, 4294901760
    %2912 = vmatpush2.msra.mxu0 %v2911
    %v2913 = vand.u32 %v2521, 4294901760
    %2914 = vmatprep.mubr.f32.mxu0 %v2913
    %v2915 = vand.u32 %v2477, 4294901760
    %2916 = vmatmul.mubr.f32.gmra.mxu0 %v2915
    %v2917 = vpop.f32.mrf.mxu0
    %v2918 = vadd.f32 %v2641, %v2917
    %v2919 = vpop.f32.mrf.mxu0
    %v2920 = vand.u32 %v2524, 4294901760
    %2921 = vmatprep.mubr.f32.mxu0 %v2920
    %v2922 = vand.u32 %v2479, 4294901760
    %2923 = vmatmul.mubr.f32.gmra.mxu0 %v2922
    %v2924 = vpop.f32.mrf.mxu0
    %v2925 = vadd.f32 %v2656, %v2924
    %v2926 = vpop.f32.mrf.mxu0
    %v2927 = vand.u32 %v2527, 4294901760
    %2928 = vmatprep.mubr.f32.mxu0 %v2927
    %v2929 = vand.u32 %v2481, 4294901760
    %2930 = vmatmul.mubr.f32.gmra.mxu0 %v2929
    %v2931 = vpop.f32.mrf.mxu0
    %v2932 = vadd.f32 %v2671, %v2931
    %v2933 = vpop.f32.mrf.mxu0
    %v2934 = vand.u32 %v2530, 4294901760
    %2935 = vmatprep.mubr.f32.mxu0 %v2934
    %v2936 = vand.u32 %v2483, 4294901760
    %2937 = vmatmul.mubr.f32.gmra.mxu0 %v2936
    %v2938 = vpop.f32.mrf.mxu0
    %v2939 = vadd.f32 %v2686, %v2938
    %v2940 = vpop.f32.mrf.mxu0
    %v2941 = vand.u32 %v2533, 4294901760
    %2942 = vmatprep.mubr.f32.mxu0 %v2941
    %v2943 = vand.u32 %v2485, 4294901760
    %2944 = vmatmul.mubr.f32.gmra.mxu0 %v2943
    %v2945 = vpop.f32.mrf.mxu0
    %v2946 = vadd.f32 %v2701, %v2945
    %v2947 = vpop.f32.mrf.mxu0
    %v2948 = vand.u32 %v2536, 4294901760
    %2949 = vmatprep.mubr.f32.mxu0 %v2948
    %v2950 = vand.u32 %v2487, 4294901760
    %2951 = vmatmul.mubr.f32.gmra.mxu0 %v2950
    %v2952 = vpop.f32.mrf.mxu0
    %v2953 = vadd.f32 %v2716, %v2952
    %v2954 = vpop.f32.mrf.mxu0
    %v2955 = vand.u32 %v2539, 4294901760
    %2956 = vmatprep.mubr.f32.mxu0 %v2955
    %v2957 = vand.u32 %v2489, 4294901760
    %2958 = vmatmul.mubr.f32.gmra.mxu0 %v2957
    %v2959 = vpop.f32.mrf.mxu0
    %v2960 = vadd.f32 %v2731, %v2959
    %v2961 = vpop.f32.mrf.mxu0
    %v2962 = vand.u32 %v2542, 4294901760
    %2963 = vmatprep.mubr.f32.mxu0 %v2962
    %v2964 = vand.u32 %v2491, 4294901760
    %2965 = vmatmul.mubr.f32.gmra.mxu0 %v2964
    %v2966 = vpop.f32.mrf.mxu0
    %v2967 = vadd.f32 %v2746, %v2966
    %v2968 = vpop.f32.mrf.mxu0
    %2969 = vdwg.mxu0
    %2970 = vmatprep.subr.mxu0 0.0
    %v2971 = vand.u32 %v2508, 4294901760
    %v2972 = vsub.f32 %v2508, %v2971
    %2973 = vmatpush1.msra.mxu0 %v2972
    %2974 = vmatprep.subr.mxu0 0.0
    %v2975 = vand.u32 %v2507, 4294901760
    %v2976 = vsub.f32 %v2507, %v2975
    %2977 = vmatpush1.msra.mxu0 %v2976
    %2978 = vmatprep.subr.mxu0 0.0
    %v2979 = vand.u32 %v2506, 4294901760
    %v2980 = vsub.f32 %v2506, %v2979
    %2981 = vmatpush1.msra.mxu0 %v2980
    %2982 = vmatprep.subr.mxu0 0.0
    %v2983 = vand.u32 %v2505, 4294901760
    %v2984 = vsub.f32 %v2505, %v2983
    %2985 = vmatpush1.msra.mxu0 %v2984
    %2986 = vmatprep.subr.mxu0 0.0
    %v2987 = vand.u32 %v2504, 4294901760
    %v2988 = vsub.f32 %v2504, %v2987
    %2989 = vmatpush1.msra.mxu0 %v2988
    %2990 = vmatprep.subr.mxu0 0.0
    %v2991 = vand.u32 %v2503, 4294901760
    %v2992 = vsub.f32 %v2503, %v2991
    %2993 = vmatpush1.msra.mxu0 %v2992
    %2994 = vmatprep.subr.mxu0 0.0
    %v2995 = vand.u32 %v2502, 4294901760
    %v2996 = vsub.f32 %v2502, %v2995
    %2997 = vmatpush1.msra.mxu0 %v2996
    %2998 = vmatprep.subr.mxu0 0.0
    %v2999 = vand.u32 %v2501, 4294901760
    %v3000 = vsub.f32 %v2501, %v2999
    %3001 = vmatpush1.msra.mxu0 %v3000
    %3002 = vmatprep.subr.mxu0 0.0
    %v3003 = vand.u32 %v2500, 4294901760
    %v3004 = vsub.f32 %v2500, %v3003
    %3005 = vmatpush1.msra.mxu0 %v3004
    %3006 = vmatprep.subr.mxu0 0.0
    %v3007 = vand.u32 %v2499, 4294901760
    %v3008 = vsub.f32 %v2499, %v3007
    %3009 = vmatpush1.msra.mxu0 %v3008
    %3010 = vmatprep.subr.mxu0 0.0
    %v3011 = vand.u32 %v2498, 4294901760
    %v3012 = vsub.f32 %v2498, %v3011
    %3013 = vmatpush1.msra.mxu0 %v3012
    %3014 = vmatprep.subr.mxu0 0.0
    %v3015 = vand.u32 %v2497, 4294901760
    %v3016 = vsub.f32 %v2497, %v3015
    %3017 = vmatpush1.msra.mxu0 %v3016
    %3018 = vmatprep.subr.mxu0 0.0
    %v3019 = vand.u32 %v2496, 4294901760
    %v3020 = vsub.f32 %v2496, %v3019
    %3021 = vmatpush1.msra.mxu0 %v3020
    %3022 = vmatprep.subr.mxu0 0.0
    %v3023 = vand.u32 %v2495, 4294901760
    %v3024 = vsub.f32 %v2495, %v3023
    %3025 = vmatpush1.msra.mxu0 %v3024
    %3026 = vmatprep.subr.mxu0 0.0
    %v3027 = vand.u32 %v2494, 4294901760
    %v3028 = vsub.f32 %v2494, %v3027
    %3029 = vmatpush1.msra.mxu0 %v3028
    %3030 = vmatprep.subr.mxu0 0.0
    %v3031 = vand.u32 %v2493, 4294901760
    %v3032 = vsub.f32 %v2493, %v3031
    %3033 = vmatpush1.msra.mxu0 %v3032
    %3034 = vmatprep.subr.mxu0 0.0
    %3035 = vmatpush2.msra.mxu0 0.0
    %3036 = vmatprep.subr.mxu0 0.0
    %3037 = vmatpush2.msra.mxu0 0.0
    %3038 = vmatprep.subr.mxu0 0.0
    %3039 = vmatpush2.msra.mxu0 0.0
    %3040 = vmatprep.subr.mxu0 0.0
    %3041 = vmatpush2.msra.mxu0 0.0
    %3042 = vmatprep.subr.mxu0 0.0
    %3043 = vmatpush2.msra.mxu0 0.0
    %3044 = vmatprep.subr.mxu0 0.0
    %3045 = vmatpush2.msra.mxu0 0.0
    %3046 = vmatprep.subr.mxu0 0.0
    %3047 = vmatpush2.msra.mxu0 0.0
    %3048 = vmatprep.subr.mxu0 0.0
    %3049 = vmatpush2.msra.mxu0 0.0
    %3050 = vmatprep.subr.mxu0 0.0
    %3051 = vmatpush2.msra.mxu0 0.0
    %3052 = vmatprep.subr.mxu0 0.0
    %3053 = vmatpush2.msra.mxu0 0.0
    %3054 = vmatprep.subr.mxu0 0.0
    %3055 = vmatpush2.msra.mxu0 0.0
    %3056 = vmatprep.subr.mxu0 0.0
    %3057 = vmatpush2.msra.mxu0 0.0
    %3058 = vmatprep.subr.mxu0 0.0
    %v3059 = vand.u32 %v2512, 4294901760
    %v3060 = vsub.f32 %v2512, %v3059
    %3061 = vmatpush2.msra.mxu0 %v3060
    %3062 = vmatprep.subr.mxu0 0.0
    %v3063 = vand.u32 %v2511, 4294901760
    %v3064 = vsub.f32 %v2511, %v3063
    %3065 = vmatpush2.msra.mxu0 %v3064
    %3066 = vmatprep.subr.mxu0 0.0
    %v3067 = vand.u32 %v2510, 4294901760
    %v3068 = vsub.f32 %v2510, %v3067
    %3069 = vmatpush2.msra.mxu0 %v3068
    %3070 = vmatprep.subr.mxu0 0.0
    %v3071 = vand.u32 %v2509, 4294901760
    %v3072 = vsub.f32 %v2509, %v3071
    %3073 = vmatpush2.msra.mxu0 %v3072
    %v3074 = vand.u32 %v2521, 4294901760
    %v3075 = vsub.f32 %v2521, %v3074
    %3076 = vmatprep.mubr.f32.mxu0 %v3075
    %v3077 = vand.u32 %v2477, 4294901760
    %v3078 = vsub.f32 %v2477, %v3077
    %3079 = vmatmul.mubr.f32.gmra.mxu0 %v3078
    %v3080 = vpop.f32.mrf.mxu0
    %v3081 = vadd.f32 %v2918, %v3080
    %v3082 = vpop.f32.mrf.mxu0
    %v3083 = vand.u32 %v2524, 4294901760
    %v3084 = vsub.f32 %v2524, %v3083
    %3085 = vmatprep.mubr.f32.mxu0 %v3084
    %v3086 = vand.u32 %v2479, 4294901760
    %v3087 = vsub.f32 %v2479, %v3086
    %3088 = vmatmul.mubr.f32.gmra.mxu0 %v3087
    %v3089 = vpop.f32.mrf.mxu0
    %v3090 = vadd.f32 %v2925, %v3089
    %v3091 = vpop.f32.mrf.mxu0
    %v3092 = vand.u32 %v2527, 4294901760
    %v3093 = vsub.f32 %v2527, %v3092
    %3094 = vmatprep.mubr.f32.mxu0 %v3093
    %v3095 = vand.u32 %v2481, 4294901760
    %v3096 = vsub.f32 %v2481, %v3095
    %3097 = vmatmul.mubr.f32.gmra.mxu0 %v3096
    %v3098 = vpop.f32.mrf.mxu0
    %v3099 = vadd.f32 %v2932, %v3098
    %v3100 = vpop.f32.mrf.mxu0
    %v3101 = vand.u32 %v2530, 4294901760
    %v3102 = vsub.f32 %v2530, %v3101
    %3103 = vmatprep.mubr.f32.mxu0 %v3102
    %v3104 = vand.u32 %v2483, 4294901760
    %v3105 = vsub.f32 %v2483, %v3104
    %3106 = vmatmul.mubr.f32.gmra.mxu0 %v3105
    %v3107 = vpop.f32.mrf.mxu0
    %v3108 = vadd.f32 %v2939, %v3107
    %v3109 = vpop.f32.mrf.mxu0
    %v3110 = vand.u32 %v2533, 4294901760
    %v3111 = vsub.f32 %v2533, %v3110
    %3112 = vmatprep.mubr.f32.mxu0 %v3111
    %v3113 = vand.u32 %v2485, 4294901760
    %v3114 = vsub.f32 %v2485, %v3113
    %3115 = vmatmul.mubr.f32.gmra.mxu0 %v3114
    %v3116 = vpop.f32.mrf.mxu0
    %v3117 = vadd.f32 %v2946, %v3116
    %v3118 = vpop.f32.mrf.mxu0
    %v3119 = vand.u32 %v2536, 4294901760
    %v3120 = vsub.f32 %v2536, %v3119
    %3121 = vmatprep.mubr.f32.mxu0 %v3120
    %v3122 = vand.u32 %v2487, 4294901760
    %v3123 = vsub.f32 %v2487, %v3122
    %3124 = vmatmul.mubr.f32.gmra.mxu0 %v3123
    %v3125 = vpop.f32.mrf.mxu0
    %v3126 = vadd.f32 %v2953, %v3125
    %v3127 = vpop.f32.mrf.mxu0
    %v3128 = vand.u32 %v2539, 4294901760
    %v3129 = vsub.f32 %v2539, %v3128
    %3130 = vmatprep.mubr.f32.mxu0 %v3129
    %v3131 = vand.u32 %v2489, 4294901760
    %v3132 = vsub.f32 %v2489, %v3131
    %3133 = vmatmul.mubr.f32.gmra.mxu0 %v3132
    %v3134 = vpop.f32.mrf.mxu0
    %v3135 = vadd.f32 %v2960, %v3134
    %v3136 = vpop.f32.mrf.mxu0
    %v3137 = vand.u32 %v2542, 4294901760
    %v3138 = vsub.f32 %v2542, %v3137
    %3139 = vmatprep.mubr.f32.mxu0 %v3138
    %v3140 = vand.u32 %v2491, 4294901760
    %v3141 = vsub.f32 %v2491, %v3140
    %3142 = vmatmul.mubr.f32.gmra.mxu0 %v3141
    %v3143 = vpop.f32.mrf.mxu0
    %v3144 = vadd.f32 %v2967, %v3143
    %v3145 = vpop.f32.mrf.mxu0
    %3146 = vdwg.mxu0
    %3147 = vmatprep.subr.mxu0 0.0
    %v3148 = vand.u32 %v2508, 4294901760
    %3149 = vmatpush1.msra.mxu0 %v3148
    %3150 = vmatprep.subr.mxu0 0.0
    %v3151 = vand.u32 %v2507, 4294901760
    %3152 = vmatpush1.msra.mxu0 %v3151
    %3153 = vmatprep.subr.mxu0 0.0
    %v3154 = vand.u32 %v2506, 4294901760
    %3155 = vmatpush1.msra.mxu0 %v3154
    %3156 = vmatprep.subr.mxu0 0.0
    %v3157 = vand.u32 %v2505, 4294901760
    %3158 = vmatpush1.msra.mxu0 %v3157
    %3159 = vmatprep.subr.mxu0 0.0
    %v3160 = vand.u32 %v2504, 4294901760
    %3161 = vmatpush1.msra.mxu0 %v3160
    %3162 = vmatprep.subr.mxu0 0.0
    %v3163 = vand.u32 %v2503, 4294901760
    %3164 = vmatpush1.msra.mxu0 %v3163
    %3165 = vmatprep.subr.mxu0 0.0
    %v3166 = vand.u32 %v2502, 4294901760
    %3167 = vmatpush1.msra.mxu0 %v3166
    %3168 = vmatprep.subr.mxu0 0.0
    %v3169 = vand.u32 %v2501, 4294901760
    %3170 = vmatpush1.msra.mxu0 %v3169
    %3171 = vmatprep.subr.mxu0 0.0
    %v3172 = vand.u32 %v2500, 4294901760
    %3173 = vmatpush1.msra.mxu0 %v3172
    %3174 = vmatprep.subr.mxu0 0.0
    %v3175 = vand.u32 %v2499, 4294901760
    %3176 = vmatpush1.msra.mxu0 %v3175
    %3177 = vmatprep.subr.mxu0 0.0
    %v3178 = vand.u32 %v2498, 4294901760
    %3179 = vmatpush1.msra.mxu0 %v3178
    %3180 = vmatprep.subr.mxu0 0.0
    %v3181 = vand.u32 %v2497, 4294901760
    %3182 = vmatpush1.msra.mxu0 %v3181
    %3183 = vmatprep.subr.mxu0 0.0
    %v3184 = vand.u32 %v2496, 4294901760
    %3185 = vmatpush1.msra.mxu0 %v3184
    %3186 = vmatprep.subr.mxu0 0.0
    %v3187 = vand.u32 %v2495, 4294901760
    %3188 = vmatpush1.msra.mxu0 %v3187
    %3189 = vmatprep.subr.mxu0 0.0
    %v3190 = vand.u32 %v2494, 4294901760
    %3191 = vmatpush1.msra.mxu0 %v3190
    %3192 = vmatprep.subr.mxu0 0.0
    %v3193 = vand.u32 %v2493, 4294901760
    %3194 = vmatpush1.msra.mxu0 %v3193
    %3195 = vmatprep.subr.mxu0 0.0
    %3196 = vmatpush2.msra.mxu0 0.0
    %3197 = vmatprep.subr.mxu0 0.0
    %3198 = vmatpush2.msra.mxu0 0.0
    %3199 = vmatprep.subr.mxu0 0.0
    %3200 = vmatpush2.msra.mxu0 0.0
    %3201 = vmatprep.subr.mxu0 0.0
    %3202 = vmatpush2.msra.mxu0 0.0
    %3203 = vmatprep.subr.mxu0 0.0
    %3204 = vmatpush2.msra.mxu0 0.0
    %3205 = vmatprep.subr.mxu0 0.0
    %3206 = vmatpush2.msra.mxu0 0.0
    %3207 = vmatprep.subr.mxu0 0.0
    %3208 = vmatpush2.msra.mxu0 0.0
    %3209 = vmatprep.subr.mxu0 0.0
    %3210 = vmatpush2.msra.mxu0 0.0
    %3211 = vmatprep.subr.mxu0 0.0
    %3212 = vmatpush2.msra.mxu0 0.0
    %3213 = vmatprep.subr.mxu0 0.0
    %3214 = vmatpush2.msra.mxu0 0.0
    %3215 = vmatprep.subr.mxu0 0.0
    %3216 = vmatpush2.msra.mxu0 0.0
    %3217 = vmatprep.subr.mxu0 0.0
    %3218 = vmatpush2.msra.mxu0 0.0
    %3219 = vmatprep.subr.mxu0 0.0
    %v3220 = vand.u32 %v2512, 4294901760
    %3221 = vmatpush2.msra.mxu0 %v3220
    %3222 = vmatprep.subr.mxu0 0.0
    %v3223 = vand.u32 %v2511, 4294901760
    %3224 = vmatpush2.msra.mxu0 %v3223
    %3225 = vmatprep.subr.mxu0 0.0
    %v3226 = vand.u32 %v2510, 4294901760
    %3227 = vmatpush2.msra.mxu0 %v3226
    %3228 = vmatprep.subr.mxu0 0.0
    %v3229 = vand.u32 %v2509, 4294901760
    %3230 = vmatpush2.msra.mxu0 %v3229
    %v3231 = vand.u32 %v2521, 4294901760
    %v3232 = vsub.f32 %v2521, %v3231
    %v3233 = vand.u32 %v3232, 4294901760
    %3234 = vmatprep.mubr.f32.mxu0 %v3233
    %v3235 = vand.u32 %v2477, 4294901760
    %v3236 = vsub.f32 %v2477, %v3235
    %v3237 = vand.u32 %v3236, 4294901760
    %3238 = vmatmul.mubr.f32.gmra.mxu0 %v3237
    %v3239 = vpop.f32.mrf.mxu0
    %v3240 = vadd.f32 %v3081, %v3239
    %v3241 = vpop.f32.mrf.mxu0
    %v3242 = vand.u32 %v2524, 4294901760
    %v3243 = vsub.f32 %v2524, %v3242
    %v3244 = vand.u32 %v3243, 4294901760
    %3245 = vmatprep.mubr.f32.mxu0 %v3244
    %v3246 = vand.u32 %v2479, 4294901760
    %v3247 = vsub.f32 %v2479, %v3246
    %v3248 = vand.u32 %v3247, 4294901760
    %3249 = vmatmul.mubr.f32.gmra.mxu0 %v3248
    %v3250 = vpop.f32.mrf.mxu0
    %v3251 = vadd.f32 %v3090, %v3250
    %v3252 = vpop.f32.mrf.mxu0
    %v3253 = vand.u32 %v2527, 4294901760
    %v3254 = vsub.f32 %v2527, %v3253
    %v3255 = vand.u32 %v3254, 4294901760
    %3256 = vmatprep.mubr.f32.mxu0 %v3255
    %v3257 = vand.u32 %v2481, 4294901760
    %v3258 = vsub.f32 %v2481, %v3257
    %v3259 = vand.u32 %v3258, 4294901760
    %3260 = vmatmul.mubr.f32.gmra.mxu0 %v3259
    %v3261 = vpop.f32.mrf.mxu0
    %v3262 = vadd.f32 %v3099, %v3261
    %v3263 = vpop.f32.mrf.mxu0
    %v3264 = vand.u32 %v2530, 4294901760
    %v3265 = vsub.f32 %v2530, %v3264
    %v3266 = vand.u32 %v3265, 4294901760
    %3267 = vmatprep.mubr.f32.mxu0 %v3266
    %v3268 = vand.u32 %v2483, 4294901760
    %v3269 = vsub.f32 %v2483, %v3268
    %v3270 = vand.u32 %v3269, 4294901760
    %3271 = vmatmul.mubr.f32.gmra.mxu0 %v3270
    %v3272 = vpop.f32.mrf.mxu0
    %v3273 = vadd.f32 %v3108, %v3272
    %v3274 = vpop.f32.mrf.mxu0
    %v3275 = vand.u32 %v2533, 4294901760
    %v3276 = vsub.f32 %v2533, %v3275
    %v3277 = vand.u32 %v3276, 4294901760
    %3278 = vmatprep.mubr.f32.mxu0 %v3277
    %v3279 = vand.u32 %v2485, 4294901760
    %v3280 = vsub.f32 %v2485, %v3279
    %v3281 = vand.u32 %v3280, 4294901760
    %3282 = vmatmul.mubr.f32.gmra.mxu0 %v3281
    %v3283 = vpop.f32.mrf.mxu0
    %v3284 = vadd.f32 %v3117, %v3283
    %v3285 = vpop.f32.mrf.mxu0
    %v3286 = vand.u32 %v2536, 4294901760
    %v3287 = vsub.f32 %v2536, %v3286
    %v3288 = vand.u32 %v3287, 4294901760
    %3289 = vmatprep.mubr.f32.mxu0 %v3288
    %v3290 = vand.u32 %v2487, 4294901760
    %v3291 = vsub.f32 %v2487, %v3290
    %v3292 = vand.u32 %v3291, 4294901760
    %3293 = vmatmul.mubr.f32.gmra.mxu0 %v3292
    %v3294 = vpop.f32.mrf.mxu0
    %v3295 = vadd.f32 %v3126, %v3294
    %v3296 = vpop.f32.mrf.mxu0
    %v3297 = vand.u32 %v2539, 4294901760
    %v3298 = vsub.f32 %v2539, %v3297
    %v3299 = vand.u32 %v3298, 4294901760
    %3300 = vmatprep.mubr.f32.mxu0 %v3299
    %v3301 = vand.u32 %v2489, 4294901760
    %v3302 = vsub.f32 %v2489, %v3301
    %v3303 = vand.u32 %v3302, 4294901760
    %3304 = vmatmul.mubr.f32.gmra.mxu0 %v3303
    %v3305 = vpop.f32.mrf.mxu0
    %v3306 = vadd.f32 %v3135, %v3305
    %v3307 = vpop.f32.mrf.mxu0
    %v3308 = vand.u32 %v2542, 4294901760
    %v3309 = vsub.f32 %v2542, %v3308
    %v3310 = vand.u32 %v3309, 4294901760
    %3311 = vmatprep.mubr.f32.mxu0 %v3310
    %v3312 = vand.u32 %v2491, 4294901760
    %v3313 = vsub.f32 %v2491, %v3312
    %v3314 = vand.u32 %v3313, 4294901760
    %3315 = vmatmul.mubr.f32.gmra.mxu0 %v3314
    %v3316 = vpop.f32.mrf.mxu0
    %v3317 = vadd.f32 %v3144, %v3316
    %v3318 = vpop.f32.mrf.mxu0
    %3319 = vdwg.mxu0
    %3320 = vmatprep.subr.mxu0 0.0
    %v3321 = vand.u32 %v2508, 4294901760
    %v3322 = vsub.f32 %v2508, %v3321
    %v3323 = vand.u32 %v3322, 4294901760
    %3324 = vmatpush1.msra.mxu0 %v3323
    %3325 = vmatprep.subr.mxu0 0.0
    %v3326 = vand.u32 %v2507, 4294901760
    %v3327 = vsub.f32 %v2507, %v3326
    %v3328 = vand.u32 %v3327, 4294901760
    %3329 = vmatpush1.msra.mxu0 %v3328
    %3330 = vmatprep.subr.mxu0 0.0
    %v3331 = vand.u32 %v2506, 4294901760
    %v3332 = vsub.f32 %v2506, %v3331
    %v3333 = vand.u32 %v3332, 4294901760
    %3334 = vmatpush1.msra.mxu0 %v3333
    %3335 = vmatprep.subr.mxu0 0.0
    %v3336 = vand.u32 %v2505, 4294901760
    %v3337 = vsub.f32 %v2505, %v3336
    %v3338 = vand.u32 %v3337, 4294901760
    %3339 = vmatpush1.msra.mxu0 %v3338
    %3340 = vmatprep.subr.mxu0 0.0
    %v3341 = vand.u32 %v2504, 4294901760
    %v3342 = vsub.f32 %v2504, %v3341
    %v3343 = vand.u32 %v3342, 4294901760
    %3344 = vmatpush1.msra.mxu0 %v3343
    %3345 = vmatprep.subr.mxu0 0.0
    %v3346 = vand.u32 %v2503, 4294901760
    %v3347 = vsub.f32 %v2503, %v3346
    %v3348 = vand.u32 %v3347, 4294901760
    %3349 = vmatpush1.msra.mxu0 %v3348
    %3350 = vmatprep.subr.mxu0 0.0
    %v3351 = vand.u32 %v2502, 4294901760
    %v3352 = vsub.f32 %v2502, %v3351
    %v3353 = vand.u32 %v3352, 4294901760
    %3354 = vmatpush1.msra.mxu0 %v3353
    %3355 = vmatprep.subr.mxu0 0.0
    %v3356 = vand.u32 %v2501, 4294901760
    %v3357 = vsub.f32 %v2501, %v3356
    %v3358 = vand.u32 %v3357, 4294901760
    %3359 = vmatpush1.msra.mxu0 %v3358
    %3360 = vmatprep.subr.mxu0 0.0
    %v3361 = vand.u32 %v2500, 4294901760
    %v3362 = vsub.f32 %v2500, %v3361
    %v3363 = vand.u32 %v3362, 4294901760
    %3364 = vmatpush1.msra.mxu0 %v3363
    %3365 = vmatprep.subr.mxu0 0.0
    %v3366 = vand.u32 %v2499, 4294901760
    %v3367 = vsub.f32 %v2499, %v3366
    %v3368 = vand.u32 %v3367, 4294901760
    %3369 = vmatpush1.msra.mxu0 %v3368
    %3370 = vmatprep.subr.mxu0 0.0
    %v3371 = vand.u32 %v2498, 4294901760
    %v3372 = vsub.f32 %v2498, %v3371
    %v3373 = vand.u32 %v3372, 4294901760
    %3374 = vmatpush1.msra.mxu0 %v3373
    %3375 = vmatprep.subr.mxu0 0.0
    %v3376 = vand.u32 %v2497, 4294901760
    %v3377 = vsub.f32 %v2497, %v3376
    %v3378 = vand.u32 %v3377, 4294901760
    %3379 = vmatpush1.msra.mxu0 %v3378
    %3380 = vmatprep.subr.mxu0 0.0
    %v3381 = vand.u32 %v2496, 4294901760
    %v3382 = vsub.f32 %v2496, %v3381
    %v3383 = vand.u32 %v3382, 4294901760
    %3384 = vmatpush1.msra.mxu0 %v3383
    %3385 = vmatprep.subr.mxu0 0.0
    %v3386 = vand.u32 %v2495, 4294901760
    %v3387 = vsub.f32 %v2495, %v3386
    %v3388 = vand.u32 %v3387, 4294901760
    %3389 = vmatpush1.msra.mxu0 %v3388
    %3390 = vmatprep.subr.mxu0 0.0
    %v3391 = vand.u32 %v2494, 4294901760
    %v3392 = vsub.f32 %v2494, %v3391
    %v3393 = vand.u32 %v3392, 4294901760
    %3394 = vmatpush1.msra.mxu0 %v3393
    %3395 = vmatprep.subr.mxu0 0.0
    %v3396 = vand.u32 %v2493, 4294901760
    %v3397 = vsub.f32 %v2493, %v3396
    %v3398 = vand.u32 %v3397, 4294901760
    %3399 = vmatpush1.msra.mxu0 %v3398
    %3400 = vmatprep.subr.mxu0 0.0
    %3401 = vmatpush2.msra.mxu0 0.0
    %3402 = vmatprep.subr.mxu0 0.0
    %3403 = vmatpush2.msra.mxu0 0.0
    %3404 = vmatprep.subr.mxu0 0.0
    %3405 = vmatpush2.msra.mxu0 0.0
    %3406 = vmatprep.subr.mxu0 0.0
    %3407 = vmatpush2.msra.mxu0 0.0
    %3408 = vmatprep.subr.mxu0 0.0
    %3409 = vmatpush2.msra.mxu0 0.0
    %3410 = vmatprep.subr.mxu0 0.0
    %3411 = vmatpush2.msra.mxu0 0.0
    %3412 = vmatprep.subr.mxu0 0.0
    %3413 = vmatpush2.msra.mxu0 0.0
    %3414 = vmatprep.subr.mxu0 0.0
    %3415 = vmatpush2.msra.mxu0 0.0
    %3416 = vmatprep.subr.mxu0 0.0
    %3417 = vmatpush2.msra.mxu0 0.0
    %3418 = vmatprep.subr.mxu0 0.0
    %3419 = vmatpush2.msra.mxu0 0.0
    %3420 = vmatprep.subr.mxu0 0.0
    %3421 = vmatpush2.msra.mxu0 0.0
    %3422 = vmatprep.subr.mxu0 0.0
    %3423 = vmatpush2.msra.mxu0 0.0
    %3424 = vmatprep.subr.mxu0 0.0
    %v3425 = vand.u32 %v2512, 4294901760
    %v3426 = vsub.f32 %v2512, %v3425
    %v3427 = vand.u32 %v3426, 4294901760
    %3428 = vmatpush2.msra.mxu0 %v3427
    %3429 = vmatprep.subr.mxu0 0.0
    %v3430 = vand.u32 %v2511, 4294901760
    %v3431 = vsub.f32 %v2511, %v3430
    %v3432 = vand.u32 %v3431, 4294901760
    %3433 = vmatpush2.msra.mxu0 %v3432
    %3434 = vmatprep.subr.mxu0 0.0
    %v3435 = vand.u32 %v2510, 4294901760
    %v3436 = vsub.f32 %v2510, %v3435
    %v3437 = vand.u32 %v3436, 4294901760
    %3438 = vmatpush2.msra.mxu0 %v3437
    %3439 = vmatprep.subr.mxu0 0.0
    %v3440 = vand.u32 %v2509, 4294901760
    %v3441 = vsub.f32 %v2509, %v3440
    %v3442 = vand.u32 %v3441, 4294901760
    %3443 = vmatpush2.msra.mxu0 %v3442
    %v3444 = vand.u32 %v2521, 4294901760
    %3445 = vmatprep.mubr.f32.mxu0 %v3444
    %v3446 = vand.u32 %v2477, 4294901760
    %3447 = vmatmul.mubr.f32.gmra.mxu0 %v3446
    %v3448 = vpop.f32.mrf.mxu0
    %v3449 = vadd.f32 %v3240, %v3448
    %v3450 = vpop.f32.mrf.mxu0
    %v3451 = vand.u32 %v2524, 4294901760
    %3452 = vmatprep.mubr.f32.mxu0 %v3451
    %v3453 = vand.u32 %v2479, 4294901760
    %3454 = vmatmul.mubr.f32.gmra.mxu0 %v3453
    %v3455 = vpop.f32.mrf.mxu0
    %v3456 = vadd.f32 %v3251, %v3455
    %v3457 = vpop.f32.mrf.mxu0
    %v3458 = vand.u32 %v2527, 4294901760
    %3459 = vmatprep.mubr.f32.mxu0 %v3458
    %v3460 = vand.u32 %v2481, 4294901760
    %3461 = vmatmul.mubr.f32.gmra.mxu0 %v3460
    %v3462 = vpop.f32.mrf.mxu0
    %v3463 = vadd.f32 %v3262, %v3462
    %v3464 = vpop.f32.mrf.mxu0
    %v3465 = vand.u32 %v2530, 4294901760
    %3466 = vmatprep.mubr.f32.mxu0 %v3465
    %v3467 = vand.u32 %v2483, 4294901760
    %3468 = vmatmul.mubr.f32.gmra.mxu0 %v3467
    %v3469 = vpop.f32.mrf.mxu0
    %v3470 = vadd.f32 %v3273, %v3469
    %v3471 = vpop.f32.mrf.mxu0
    %v3472 = vand.u32 %v2533, 4294901760
    %3473 = vmatprep.mubr.f32.mxu0 %v3472
    %v3474 = vand.u32 %v2485, 4294901760
    %3475 = vmatmul.mubr.f32.gmra.mxu0 %v3474
    %v3476 = vpop.f32.mrf.mxu0
    %v3477 = vadd.f32 %v3284, %v3476
    %v3478 = vpop.f32.mrf.mxu0
    %v3479 = vand.u32 %v2536, 4294901760
    %3480 = vmatprep.mubr.f32.mxu0 %v3479
    %v3481 = vand.u32 %v2487, 4294901760
    %3482 = vmatmul.mubr.f32.gmra.mxu0 %v3481
    %v3483 = vpop.f32.mrf.mxu0
    %v3484 = vadd.f32 %v3295, %v3483
    %v3485 = vpop.f32.mrf.mxu0
    %v3486 = vand.u32 %v2539, 4294901760
    %3487 = vmatprep.mubr.f32.mxu0 %v3486
    %v3488 = vand.u32 %v2489, 4294901760
    %3489 = vmatmul.mubr.f32.gmra.mxu0 %v3488
    %v3490 = vpop.f32.mrf.mxu0
    %v3491 = vadd.f32 %v3306, %v3490
    %v3492 = vpop.f32.mrf.mxu0
    %v3493 = vand.u32 %v2542, 4294901760
    %3494 = vmatprep.mubr.f32.mxu0 %v3493
    %v3495 = vand.u32 %v2491, 4294901760
    %3496 = vmatmul.mubr.f32.gmra.mxu0 %v3495
    %v3497 = vpop.f32.mrf.mxu0
    %v3498 = vadd.f32 %v3317, %v3497
    %v3499 = vpop.f32.mrf.mxu0
    %3500 = vdwg.mxu0
    %3501 = vmatprep.subr.mxu0 0.0
    %v3502 = vand.u32 %v2508, 4294901760
    %3503 = vmatpush1.msra.mxu0 %v3502
    %3504 = vmatprep.subr.mxu0 0.0
    %v3505 = vand.u32 %v2507, 4294901760
    %3506 = vmatpush1.msra.mxu0 %v3505
    %3507 = vmatprep.subr.mxu0 0.0
    %v3508 = vand.u32 %v2506, 4294901760
    %3509 = vmatpush1.msra.mxu0 %v3508
    %3510 = vmatprep.subr.mxu0 0.0
    %v3511 = vand.u32 %v2505, 4294901760
    %3512 = vmatpush1.msra.mxu0 %v3511
    %3513 = vmatprep.subr.mxu0 0.0
    %v3514 = vand.u32 %v2504, 4294901760
    %3515 = vmatpush1.msra.mxu0 %v3514
    %3516 = vmatprep.subr.mxu0 0.0
    %v3517 = vand.u32 %v2503, 4294901760
    %3518 = vmatpush1.msra.mxu0 %v3517
    %3519 = vmatprep.subr.mxu0 0.0
    %v3520 = vand.u32 %v2502, 4294901760
    %3521 = vmatpush1.msra.mxu0 %v3520
    %3522 = vmatprep.subr.mxu0 0.0
    %v3523 = vand.u32 %v2501, 4294901760
    %3524 = vmatpush1.msra.mxu0 %v3523
    %3525 = vmatprep.subr.mxu0 0.0
    %v3526 = vand.u32 %v2500, 4294901760
    %3527 = vmatpush1.msra.mxu0 %v3526
    %3528 = vmatprep.subr.mxu0 0.0
    %v3529 = vand.u32 %v2499, 4294901760
    %3530 = vmatpush1.msra.mxu0 %v3529
    %3531 = vmatprep.subr.mxu0 0.0
    %v3532 = vand.u32 %v2498, 4294901760
    %3533 = vmatpush1.msra.mxu0 %v3532
    %3534 = vmatprep.subr.mxu0 0.0
    %v3535 = vand.u32 %v2497, 4294901760
    %3536 = vmatpush1.msra.mxu0 %v3535
    %3537 = vmatprep.subr.mxu0 0.0
    %v3538 = vand.u32 %v2496, 4294901760
    %3539 = vmatpush1.msra.mxu0 %v3538
    %3540 = vmatprep.subr.mxu0 0.0
    %v3541 = vand.u32 %v2495, 4294901760
    %3542 = vmatpush1.msra.mxu0 %v3541
    %3543 = vmatprep.subr.mxu0 0.0
    %v3544 = vand.u32 %v2494, 4294901760
    %3545 = vmatpush1.msra.mxu0 %v3544
    %3546 = vmatprep.subr.mxu0 0.0
    %v3547 = vand.u32 %v2493, 4294901760
    %3548 = vmatpush1.msra.mxu0 %v3547
    %3549 = vmatprep.subr.mxu0 0.0
    %3550 = vmatpush2.msra.mxu0 0.0
    %3551 = vmatprep.subr.mxu0 0.0
    %3552 = vmatpush2.msra.mxu0 0.0
    %3553 = vmatprep.subr.mxu0 0.0
    %3554 = vmatpush2.msra.mxu0 0.0
    %3555 = vmatprep.subr.mxu0 0.0
    %3556 = vmatpush2.msra.mxu0 0.0
    %3557 = vmatprep.subr.mxu0 0.0
    %3558 = vmatpush2.msra.mxu0 0.0
    %3559 = vmatprep.subr.mxu0 0.0
    %3560 = vmatpush2.msra.mxu0 0.0
    %3561 = vmatprep.subr.mxu0 0.0
    %3562 = vmatpush2.msra.mxu0 0.0
    %3563 = vmatprep.subr.mxu0 0.0
    %3564 = vmatpush2.msra.mxu0 0.0
    %3565 = vmatprep.subr.mxu0 0.0
    %3566 = vmatpush2.msra.mxu0 0.0
    %3567 = vmatprep.subr.mxu0 0.0
    %3568 = vmatpush2.msra.mxu0 0.0
    %3569 = vmatprep.subr.mxu0 0.0
    %3570 = vmatpush2.msra.mxu0 0.0
    %3571 = vmatprep.subr.mxu0 0.0
    %3572 = vmatpush2.msra.mxu0 0.0
    %3573 = vmatprep.subr.mxu0 0.0
    %v3574 = vand.u32 %v2512, 4294901760
    %3575 = vmatpush2.msra.mxu0 %v3574
    %3576 = vmatprep.subr.mxu0 0.0
    %v3577 = vand.u32 %v2511, 4294901760
    %3578 = vmatpush2.msra.mxu0 %v3577
    %3579 = vmatprep.subr.mxu0 0.0
    %v3580 = vand.u32 %v2510, 4294901760
    %3581 = vmatpush2.msra.mxu0 %v3580
    %3582 = vmatprep.subr.mxu0 0.0
    %v3583 = vand.u32 %v2509, 4294901760
    %3584 = vmatpush2.msra.mxu0 %v3583
    %v3585 = vand.u32 %v2521, 4294901760
    %3586 = vmatprep.mubr.f32.mxu0 %v3585
    %v3587 = vand.u32 %v2477, 4294901760
    %3588 = vmatmul.mubr.f32.gmra.mxu0 %v3587
    %v3589 = vpop.f32.mrf.mxu0
    %v3590 = vadd.f32 %v3449, %v3589
    %v3591 = vpop.f32.mrf.mxu0
    %v3592 = vand.u32 %v2524, 4294901760
    %3593 = vmatprep.mubr.f32.mxu0 %v3592
    %v3594 = vand.u32 %v2479, 4294901760
    %3595 = vmatmul.mubr.f32.gmra.mxu0 %v3594
    %v3596 = vpop.f32.mrf.mxu0
    %v3597 = vadd.f32 %v3456, %v3596
    %v3598 = vpop.f32.mrf.mxu0
    %v3599 = vand.u32 %v2527, 4294901760
    %3600 = vmatprep.mubr.f32.mxu0 %v3599
    %v3601 = vand.u32 %v2481, 4294901760
    %3602 = vmatmul.mubr.f32.gmra.mxu0 %v3601
    %v3603 = vpop.f32.mrf.mxu0
    %v3604 = vadd.f32 %v3463, %v3603
    %v3605 = vpop.f32.mrf.mxu0
    %v3606 = vand.u32 %v2530, 4294901760
    %3607 = vmatprep.mubr.f32.mxu0 %v3606
    %v3608 = vand.u32 %v2483, 4294901760
    %3609 = vmatmul.mubr.f32.gmra.mxu0 %v3608
    %v3610 = vpop.f32.mrf.mxu0
    %v3611 = vadd.f32 %v3470, %v3610
    %v3612 = vpop.f32.mrf.mxu0
    %v3613 = vand.u32 %v2533, 4294901760
    %3614 = vmatprep.mubr.f32.mxu0 %v3613
    %v3615 = vand.u32 %v2485, 4294901760
    %3616 = vmatmul.mubr.f32.gmra.mxu0 %v3615
    %v3617 = vpop.f32.mrf.mxu0
    %v3618 = vadd.f32 %v3477, %v3617
    %v3619 = vpop.f32.mrf.mxu0
    %v3620 = vand.u32 %v2536, 4294901760
    %3621 = vmatprep.mubr.f32.mxu0 %v3620
    %v3622 = vand.u32 %v2487, 4294901760
    %3623 = vmatmul.mubr.f32.gmra.mxu0 %v3622
    %v3624 = vpop.f32.mrf.mxu0
    %v3625 = vadd.f32 %v3484, %v3624
    %v3626 = vpop.f32.mrf.mxu0
    %v3627 = vand.u32 %v2539, 4294901760
    %3628 = vmatprep.mubr.f32.mxu0 %v3627
    %v3629 = vand.u32 %v2489, 4294901760
    %3630 = vmatmul.mubr.f32.gmra.mxu0 %v3629
    %v3631 = vpop.f32.mrf.mxu0
    %v3632 = vadd.f32 %v3491, %v3631
    %v3633 = vpop.f32.mrf.mxu0
    %v3634 = vand.u32 %v2542, 4294901760
    %3635 = vmatprep.mubr.f32.mxu0 %v3634
    %v3636 = vand.u32 %v2491, 4294901760
    %3637 = vmatmul.mubr.f32.gmra.mxu0 %v3636
    %v3638 = vpop.f32.mrf.mxu0
    %v3639 = vadd.f32 %v3498, %v3638
    %v3640 = vpop.f32.mrf.mxu0
    %3641 = vdwg.mxu0
    %3650 = vrot.lane.b32.xlu0 %v3590, 120
    %v3651 = vpop.permute.xlu0 %3650
    %3652 = vrot.lane.b32.xlu0 %v3597, 120
    %v3653 = vpop.permute.xlu0 %3652
    %3654 = vrot.lane.b32.xlu0 %v3604, 120
    %v3655 = vpop.permute.xlu0 %3654
    %3656 = vrot.lane.b32.xlu0 %v3611, 120
    %v3657 = vpop.permute.xlu0 %3656
    %3658 = vrot.lane.b32.xlu0 %v3618, 120
    %v3659 = vpop.permute.xlu0 %3658
    %3660 = vrot.lane.b32.xlu0 %v3625, 120
    %v3661 = vpop.permute.xlu0 %3660
    %3662 = vrot.lane.b32.xlu0 %v3632, 120
    %v3663 = vpop.permute.xlu0 %3662
    %3664 = vrot.lane.b32.xlu0 %v3639, 120
    %v3665 = vpop.permute.xlu0 %3664
    %v3674 = vmin.f32 %v3590, %v3651
    %v3675 = vmin.f32 %v3597, %v3653
    %v3676 = vmin.f32 %v3604, %v3655
    %v3677 = vmin.f32 %v3611, %v3657
    %v3678 = vmin.f32 %v3618, %v3659
    %v3679 = vmin.f32 %v3625, %v3661
    %v3680 = vmin.f32 %v3632, %v3663
    %v3681 = vmin.f32 %v3639, %v3665
    %v3682 = vmax.f32 %v3590, %v3651
    %v3683 = vmax.f32 %v3597, %v3653
    %v3684 = vmax.f32 %v3604, %v3655
    %v3685 = vmax.f32 %v3611, %v3657
    %v3686 = vmax.f32 %v3618, %v3659
    %v3687 = vmax.f32 %v3625, %v3661
    %v3688 = vmax.f32 %v3632, %v3663
    %v3689 = vmax.f32 %v3639, %v3665
    %3698 = vrot.lane.b32.xlu0 %v3674, 112
    %v3699 = vpop.permute.xlu0 %3698
    %3700 = vrot.lane.b32.xlu0 %v3675, 112
    %v3701 = vpop.permute.xlu0 %3700
    %3702 = vrot.lane.b32.xlu0 %v3676, 112
    %v3703 = vpop.permute.xlu0 %3702
    %3704 = vrot.lane.b32.xlu0 %v3677, 112
    %v3705 = vpop.permute.xlu0 %3704
    %3706 = vrot.lane.b32.xlu0 %v3678, 112
    %v3707 = vpop.permute.xlu0 %3706
    %3708 = vrot.lane.b32.xlu0 %v3679, 112
    %v3709 = vpop.permute.xlu0 %3708
    %3710 = vrot.lane.b32.xlu0 %v3680, 112
    %v3711 = vpop.permute.xlu0 %3710
    %3712 = vrot.lane.b32.xlu0 %v3681, 112
    %v3713 = vpop.permute.xlu0 %3712
    %v3722 = vmax.f32 %v3674, %v3699
    %v3723 = vmax.f32 %v3675, %v3701
    %v3724 = vmax.f32 %v3676, %v3703
    %v3725 = vmax.f32 %v3677, %v3705
    %v3726 = vmax.f32 %v3678, %v3707
    %v3727 = vmax.f32 %v3679, %v3709
    %v3728 = vmax.f32 %v3680, %v3711
    %v3729 = vmax.f32 %v3681, %v3713
    %3738 = vrot.lane.b32.xlu0 %v3682, 112
    %v3739 = vpop.permute.xlu0 %3738
    %3740 = vrot.lane.b32.xlu0 %v3683, 112
    %v3741 = vpop.permute.xlu0 %3740
    %3742 = vrot.lane.b32.xlu0 %v3684, 112
    %v3743 = vpop.permute.xlu0 %3742
    %3744 = vrot.lane.b32.xlu0 %v3685, 112
    %v3745 = vpop.permute.xlu0 %3744
    %3746 = vrot.lane.b32.xlu0 %v3686, 112
    %v3747 = vpop.permute.xlu0 %3746
    %3748 = vrot.lane.b32.xlu0 %v3687, 112
    %v3749 = vpop.permute.xlu0 %3748
    %3750 = vrot.lane.b32.xlu0 %v3688, 112
    %v3751 = vpop.permute.xlu0 %3750
    %3752 = vrot.lane.b32.xlu0 %v3689, 112
    %v3753 = vpop.permute.xlu0 %3752
    %v3762 = vmin.f32 %v3682, %v3739
    %v3763 = vmin.f32 %v3683, %v3741
    %v3764 = vmin.f32 %v3684, %v3743
    %v3765 = vmin.f32 %v3685, %v3745
    %v3766 = vmin.f32 %v3686, %v3747
    %v3767 = vmin.f32 %v3687, %v3749
    %v3768 = vmin.f32 %v3688, %v3751
    %v3769 = vmin.f32 %v3689, %v3753
    %v3770 = vmin.f32 %v3722, %v3762
    %v3771 = vmin.f32 %v3723, %v3763
    %v3772 = vmin.f32 %v3724, %v3764
    %v3773 = vmin.f32 %v3725, %v3765
    %v3774 = vmin.f32 %v3726, %v3766
    %v3775 = vmin.f32 %v3727, %v3767
    %v3776 = vmin.f32 %v3728, %v3768
    %v3777 = vmin.f32 %v3729, %v3769
    %3786 = vrot.lane.b32.xlu0 %v3770, 120
    %v3787 = vpop.permute.xlu0 %3786
    %3788 = vrot.lane.b32.xlu0 %v3771, 120
    %v3789 = vpop.permute.xlu0 %3788
    %3790 = vrot.lane.b32.xlu0 %v3772, 120
    %v3791 = vpop.permute.xlu0 %3790
    %3792 = vrot.lane.b32.xlu0 %v3773, 120
    %v3793 = vpop.permute.xlu0 %3792
    %3794 = vrot.lane.b32.xlu0 %v3774, 120
    %v3795 = vpop.permute.xlu0 %3794
    %3796 = vrot.lane.b32.xlu0 %v3775, 120
    %v3797 = vpop.permute.xlu0 %3796
    %3798 = vrot.lane.b32.xlu0 %v3776, 120
    %v3799 = vpop.permute.xlu0 %3798
    %3800 = vrot.lane.b32.xlu0 %v3777, 120
    %v3801 = vpop.permute.xlu0 %3800
    %v3810 = vsub.f32 %v3590, %v3787
    %v3811 = vsub.f32 %v3597, %v3789
    %v3812 = vsub.f32 %v3604, %v3791
    %v3813 = vsub.f32 %v3611, %v3793
    %v3814 = vsub.f32 %v3618, %v3795
    %v3815 = vsub.f32 %v3625, %v3797
    %v3816 = vsub.f32 %v3632, %v3799
    %v3817 = vsub.f32 %v3639, %v3801
    %vm3818 = vcmask 64512
    %3819 = vst.msk [vmem:[%s7] sm:$0xff] %vm3818, %v3810
    %3820 = vst.msk [vmem:[%s7 + $0x8] sm:$0xff] %vm3818, %v3811
    %3821 = vst.msk [vmem:[%s7 + $0x10] sm:$0xff] %vm3818, %v3812
    %3822 = vst.msk [vmem:[%s7 + $0x18] sm:$0xff] %vm3818, %v3813
    %3823 = vst.msk [vmem:[%s7 + $0x20] sm:$0xff] %vm3818, %v3814
    %3824 = vst.msk [vmem:[%s7 + $0x28] sm:$0xff] %vm3818, %v3815
    %3825 = vst.msk [vmem:[%s7 + $0x30] sm:$0xff] %vm3818, %v3816
    %3826 = vst.msk [vmem:[%s7 + $0x38] sm:$0xff] %vm3818, %v3817
    // Predicated region
    $region34: #{tpu_custom_call.1} parent=1 // pred_check
      _
    $region35: #{tpu_custom_call.1} parent=1 // pred_check_branch
      %3828 = sbr.rel (0) target = $region37
    $region36: #{tpu_custom_call.1} parent=1 // pred_region
      _
    $region37: #{tpu_custom_call.1} parent=1 // pred_fallthru
      _
    // Predicated region
    $region38: #{tpu_custom_call.1} parent=1 // pred_check
      _
    $region39: #{tpu_custom_call.1} parent=1 // pred_check_branch
      %3830 = sbr.rel (0) target = $region41
    $region40: #{tpu_custom_call.1} parent=1 // pred_region
      _
    $region41: #{tpu_custom_call.1} parent=1 // pred_fallthru
      _
    %3831 = vsyncpa [#allocation3], 1

</llo_original>
